<compile_context>
chip_gen: v5e
topology: v5e:2x2
jax: 0.10.0
libtpu: 0.0.40
codegen_flags: <defaults>
</compile_context>

<pallas_src>
import math
import functools

import jax
import jax.numpy as jnp
from jax.experimental import pallas as pl
from jax.experimental.pallas import tpu as pltpu


def mhsa_kernel(x_ref, wqkv_ref, bqkv_ref, wpp_ref, bpp_ref, o_ref, *, n_head, batch):
    BT, C = x_ref.shape                     # (B*T, C)
    T = BT // batch
    hd = C // n_head

    # ---- fused QKV projection: one MXU pass over all B*T rows --------------
    # (1/sqrt(hd) is already folded into the Q columns/bias in the wrapper.)
    x = x_ref[...]
    qkv = jnp.dot(x, wqkv_ref[...], preferred_element_type=jnp.float32)
    qkv = qkv + bqkv_ref[...]                                   # (B*T, 3C)

    # ---- per-batch attention (static unroll over B) -------------------------
    # B=2: unrolling emits the same per-(b,h) MXU ops a (b,h)-batched dot
    # would, with no grid-step overhead and only proven dot_general forms.
    ys = []
    for b in range(batch):
        qkv_b = qkv[b * T:(b + 1) * T]                          # (T, 3C) static row slice
        qkv_b = qkv_b.reshape(T, 3 * n_head, hd)                # (T, 3n, hd) view
        q = qkv_b[:, :n_head]                                   # (T, n, hd), pre-scaled
        k = qkv_b[:, n_head:2 * n_head]                         # (T, n, hd)
        v = qkv_b[:, 2 * n_head:]                               # (T, n, hd)

        # Scores straight off the (t, n, d) views; no explicit transposes —
        # einsum/dot_general picks the operand ordering.
        att = jnp.einsum("tnd,snd->nts", q, k,
                         preferred_element_type=jnp.float32)    # (n, T, T)
        att = att - jnp.max(att, axis=-1, keepdims=True)
        p = jnp.exp(att)
        p = p * pl.reciprocal(jnp.sum(p, axis=-1, keepdims=True), approx=True)

        # Output produced directly in (t, n, d) order so the head merge back
        # to (T, C) is a plain trailing-dim reshape (no transpose).
        y_b = jnp.einsum("nts,snd->tnd", p, v,
                         preferred_element_type=jnp.float32)    # (T, n, hd)
        ys.append(y_b.reshape(T, C))

    y = jnp.concatenate(ys, axis=0)                             # (B*T, C), sublane concat

    # ---- fused double projection (wpp/bpp precomputed wrapper-side) ---------
    out = jnp.dot(y, wpp_ref[...], preferred_element_type=jnp.float32) + bpp_ref[...]
    # TODO(synk): for non-toy C, pad C to a multiple of 128 (lane-dense store).
    o_ref[...] = out.astype(o_ref.dtype)


def multihead_self_attention(x, params, n_head):
    """x: (B, T, C) float32. params: dict of PyTorch-style Linear weights (out, in)."""
    B, T, C = x.shape
    assert C % n_head == 0
    hd = C // n_head
    scale = 1.0 / math.sqrt(hd)
    f32 = jnp.float32

    # --- wrapper-side weight prep (weights are static here; if they were
    # trainable/changing per call, gate the O(C^3) wpp precompute) ------------
    # Fold the attention scale into Q; pack [q | k | v] into one (C, 3C) weight.
    wq_t = params["wq"].T.astype(f32) * scale
    bq_s = params["bq"].astype(f32) * scale
    w_qkv = jnp.concatenate(
        [wq_t, params["wk"].T.astype(f32), params["wv"].T.astype(f32)], axis=1
    )                                                                   # (C, 3C)
    b_qkv = jnp.concatenate(
        [bq_s, params["bk"].astype(f32), params["bv"].astype(f32)]
    ).reshape(1, 3 * C)                                                 # (1, 3C)

    # Collapse proj(proj(y)):  (y Wp^T + bp) Wp^T + bp == y (Wp^T Wp^T) + (bp Wp^T + bp)
    wp_t = params["wp"].T.astype(f32)
    bp = params["bp"].astype(f32)
    wpp = wp_t @ wp_t                                                   # (C, C)
    bpp = (bp @ wp_t + bp).reshape(1, C)                                # (1, C)

    # Fold B into rows outside the kernel (contiguous reshape, free in XLA).
    xf = x.reshape(B * T, C)

    kernel = functools.partial(mhsa_kernel, n_head=n_head, batch=B)
    out = pl.pallas_call(
        kernel,
        out_shape=jax.ShapeDtypeStruct((B * T, C), x.dtype),
        # Single invocation, no grid: every operand is one resident VMEM block
        # (fine at toy size; tile the (C,3C) weight / flash-tile attention for
        # non-toy C, T so blocks stay inside the scoped VMEM limit).
        in_specs=[
            pl.BlockSpec(memory_space=pltpu.MemorySpace.VMEM),   # x (B*T, C)
            pl.BlockSpec(memory_space=pltpu.MemorySpace.VMEM),   # fused QKV weight
            pl.BlockSpec(memory_space=pltpu.MemorySpace.VMEM),   # fused QKV bias
            pl.BlockSpec(memory_space=pltpu.MemorySpace.VMEM),   # fused double-proj weight
            pl.BlockSpec(memory_space=pltpu.MemorySpace.VMEM),   # fused double-proj bias
        ],
        out_specs=pl.BlockSpec(memory_space=pltpu.MemorySpace.VMEM),
    )(xf, w_qkv, b_qkv, wpp, bpp)
    return out.reshape(B, T, C)


def reference_mhsa(x, params, n_head):
    """Pure-JAX reference mirroring the PyTorch forward (eval mode, no mask)."""
    B, T, C = x.shape
    hd = C // n_head

    def lin(x, w, b):
        return jnp.einsum("btc,oc->bto", x, w) + b

    q = lin(x, params["wq"], params["bq"]).reshape(B, T, n_head, hd).transpose(0, 2, 1, 3)
    k = lin(x, params["wk"], params["bk"]).reshape(B, T, n_head, hd).transpose(0, 2, 1, 3)
    v = lin(x, params["wv"], params["bv"]).reshape(B, T, n_head, hd).transpose(0, 2, 1, 3)
    att = jnp.einsum("bhtd,bhsd->bhts", q, k) / math.sqrt(hd)
    att = jax.nn.softmax(att, axis=-1)
    y = jnp.einsum("bhts,bhsd->bhtd", att, v)
    y = y.transpose(0, 2, 1, 3).reshape(B, T, C)
    y = lin(y, params["wp"], params["bp"])     # proj (inside resid_drop branch)
    y = lin(y, params["wp"], params["bp"])     # proj (second application)
    return y


if __name__ == "__main__":
    B, T, C, n_head = 2, 8, 32, 4  # n_embd=32, head_dim=8

    key = jax.random.PRNGKey(0)
    keys = jax.random.split(key, 9)
    bound = 1.0 / math.sqrt(C)  # nn.Linear default init range

    params = {
        "wq": jax.random.uniform(keys[0], (C, C), jnp.float32, -bound, bound),
        "bq": jax.random.uniform(keys[1], (C,), jnp.float32, -bound, bound),
        "wk": jax.random.uniform(keys[2], (C, C), jnp.float32, -bound, bound),
        "bk": jax.random.uniform(keys[3], (C,), jnp.float32, -bound, bound),
        "wv": jax.random.uniform(keys[4], (C, C), jnp.float32, -bound, bound),
        "bv": jax.random.uniform(keys[5], (C,), jnp.float32, -bound, bound),
        "wp": jax.random.uniform(keys[6], (C, C), jnp.float32, -bound, bound),
        "bp": jax.random.uniform(keys[7], (C,), jnp.float32, -bound, bound),
    }
    x = jax.random.normal(keys[8], (B, T, C), jnp.float32)

    out = multihead_self_attention(x, params, n_head)
    out = jax.block_until_ready(out)

    ref = reference_mhsa(x, params, n_head)
    assert out.shape == (B, T, C)
    # Tolerance covers the EUP approximate reciprocal in the softmax (~1e-4
    # relative) and the rounding-order change from the fused scale / wp@wp proj;
    # any structural bug would be orders of magnitude larger.
    assert jnp.allclose(out, ref, atol=2e-3, rtol=2e-3), "mismatch vs reference"

    print("KERNEL_OK")
</pallas_src>

<mosaic_0001>
module attributes {stable_mosaic.version = 11 : i64} {
  func.func @mhsa_kernel(%arg0: memref<16x32xf32, #tpu.memory_space<vmem>>, %arg1: memref<32x96xf32, #tpu.memory_space<vmem>>, %arg2: memref<1x96xf32, #tpu.memory_space<vmem>>, %arg3: memref<32x32xf32, #tpu.memory_space<vmem>>, %arg4: memref<1x32xf32, #tpu.memory_space<vmem>>, %arg5: memref<16x32xf32, #tpu.memory_space<vmem>>) attributes {dimension_semantics = [], scalar_prefetch = 0 : i64, scratch_operands = 0 : i64, tpu.core_type = #tpu.core_type<tc>} {
    %c0 = arith.constant 0 : index
    %c0_0 = arith.constant 0 : index
    %0 = vector.load %arg0[%c0, %c0_0] : memref<16x32xf32, #tpu.memory_space<vmem>>, vector<16x32xf32>
    %c0_1 = arith.constant 0 : index
    %c0_2 = arith.constant 0 : index
    %1 = vector.load %arg1[%c0_1, %c0_2] : memref<32x96xf32, #tpu.memory_space<vmem>>, vector<32x96xf32>
    %cst = arith.constant dense<0.000000e+00> : vector<16x96xf32>
    %2 = tpu.matmul %0, %1, %cst {dimension_numbers = #tpu.dot_dimension_numbers<[1], [0], [0], [1], [0, 0, 1, 1], [], []>} : vector<16x32xf32>, vector<32x96xf32>, vector<16x96xf32> -> vector<16x96xf32>
    %c0_3 = arith.constant 0 : index
    %c0_4 = arith.constant 0 : index
    %3 = vector.load %arg2[%c0_3, %c0_4] : memref<1x96xf32, #tpu.memory_space<vmem>>, vector<1x96xf32>
    %4 = vector.broadcast %3 : vector<1x96xf32> to vector<16x96xf32>
    %5 = arith.addf %2, %4 : vector<16x96xf32>
    %6 = vector.extract_strided_slice %5 {offsets = [0, 0], sizes = [8, 96], strides = [1, 1]} : vector<16x96xf32> to vector<8x96xf32>
    %7 = vector.shape_cast %6 : vector<8x96xf32> to vector<8x12x8xf32>
    %8 = vector.extract_strided_slice %7 {offsets = [0, 0, 0], sizes = [8, 4, 8], strides = [1, 1, 1]} : vector<8x12x8xf32> to vector<8x4x8xf32>
    %9 = vector.extract_strided_slice %7 {offsets = [0, 4, 0], sizes = [8, 4, 8], strides = [1, 1, 1]} : vector<8x12x8xf32> to vector<8x4x8xf32>
    %10 = vector.extract_strided_slice %7 {offsets = [0, 8, 0], sizes = [8, 4, 8], strides = [1, 1, 1]} : vector<8x12x8xf32> to vector<8x4x8xf32>
    "tpu.trace_start"() <{level = 10 : i32, message = "tnd,snd->nts"}> : () -> ()
    %cst_5 = arith.constant dense<0.000000e+00> : vector<4x8x8xf32>
    %11 = tpu.matmul %8, %9, %cst_5 {dimension_numbers = #tpu.dot_dimension_numbers<[2], [2], [0], [0], [0, 1, 0, 0, 1, 0], [1], [1]>} : vector<8x4x8xf32>, vector<8x4x8xf32>, vector<4x8x8xf32> -> vector<4x8x8xf32>
    "tpu.trace_stop"() : () -> ()
    %cst_6 = arith.constant dense<0xFF800000> : vector<4x8xf32>
    %12 = vector.multi_reduction <maximumf>, %11, %cst_6 [2] : vector<4x8x8xf32> to vector<4x8xf32>
    %13 = vector.shape_cast %12 : vector<4x8xf32> to vector<4x8x1xf32>
    %14 = vector.broadcast %13 : vector<4x8x1xf32> to vector<4x8x8xf32>
    %15 = arith.subf %11, %14 : vector<4x8x8xf32>
    %16 = math.exp %15 : vector<4x8x8xf32>
    %cst_7 = arith.constant dense<0.000000e+00> : vector<4x8xf32>
    %17 = vector.multi_reduction <add>, %16, %cst_7 [2] : vector<4x8x8xf32> to vector<4x8xf32>
    %18 = vector.shape_cast %17 : vector<4x8xf32> to vector<4x8x1xf32>
    %19 = tpu.reciprocal %18 {approx = true} : vector<4x8x1xf32> -> vector<4x8x1xf32>
    %20 = vector.broadcast %19 : vector<4x8x1xf32> to vector<4x8x8xf32>
    %21 = arith.mulf %16, %20 : vector<4x8x8xf32>
    "tpu.trace_start"() <{level = 10 : i32, message = "nts,snd->tnd"}> : () -> ()
    %cst_8 = arith.constant dense<0.000000e+00> : vector<4x8x8xf32>
    %22 = tpu.matmul %10, %21, %cst_8 {dimension_numbers = #tpu.dot_dimension_numbers<[0], [2], [2], [1], [0, 1, 0, 2, 1, 1], [1], [0]>} : vector<8x4x8xf32>, vector<4x8x8xf32>, vector<4x8x8xf32> -> vector<4x8x8xf32>
    %23 = tpu.transpose %22, [2, 0, 1] : vector<4x8x8xf32> -> vector<8x4x8xf32>
    "tpu.trace_stop"() : () -> ()
    %24 = vector.shape_cast %23 : vector<8x4x8xf32> to vector<8x32xf32>
    %25 = vector.extract_strided_slice %5 {offsets = [8, 0], sizes = [8, 96], strides = [1, 1]} : vector<16x96xf32> to vector<8x96xf32>
    %26 = vector.shape_cast %25 : vector<8x96xf32> to vector<8x12x8xf32>
    %27 = vector.extract_strided_slice %26 {offsets = [0, 0, 0], sizes = [8, 4, 8], strides = [1, 1, 1]} : vector<8x12x8xf32> to vector<8x4x8xf32>
    %28 = vector.extract_strided_slice %26 {offsets = [0, 4, 0], sizes = [8, 4, 8], strides = [1, 1, 1]} : vector<8x12x8xf32> to vector<8x4x8xf32>
    %29 = vector.extract_strided_slice %26 {offsets = [0, 8, 0], sizes = [8, 4, 8], strides = [1, 1, 1]} : vector<8x12x8xf32> to vector<8x4x8xf32>
    "tpu.trace_start"() <{level = 10 : i32, message = "tnd,snd->nts"}> : () -> ()
    %cst_9 = arith.constant dense<0.000000e+00> : vector<4x8x8xf32>
    %30 = tpu.matmul %27, %28, %cst_9 {dimension_numbers = #tpu.dot_dimension_numbers<[2], [2], [0], [0], [0, 1, 0, 0, 1, 0], [1], [1]>} : vector<8x4x8xf32>, vector<8x4x8xf32>, vector<4x8x8xf32> -> vector<4x8x8xf32>
    "tpu.trace_stop"() : () -> ()
    %cst_10 = arith.constant dense<0xFF800000> : vector<4x8xf32>
    %31 = vector.multi_reduction <maximumf>, %30, %cst_10 [2] : vector<4x8x8xf32> to vector<4x8xf32>
    %32 = vector.shape_cast %31 : vector<4x8xf32> to vector<4x8x1xf32>
    %33 = vector.broadcast %32 : vector<4x8x1xf32> to vector<4x8x8xf32>
    %34 = arith.subf %30, %33 : vector<4x8x8xf32>
    %35 = math.exp %34 : vector<4x8x8xf32>
    %cst_11 = arith.constant dense<0.000000e+00> : vector<4x8xf32>
    %36 = vector.multi_reduction <add>, %35, %cst_11 [2] : vector<4x8x8xf32> to vector<4x8xf32>
    %37 = vector.shape_cast %36 : vector<4x8xf32> to vector<4x8x1xf32>
    %38 = tpu.reciprocal %37 {approx = true} : vector<4x8x1xf32> -> vector<4x8x1xf32>
    %39 = vector.broadcast %38 : vector<4x8x1xf32> to vector<4x8x8xf32>
    %40 = arith.mulf %35, %39 : vector<4x8x8xf32>
    "tpu.trace_start"() <{level = 10 : i32, message = "nts,snd->tnd"}> : () -> ()
    %cst_12 = arith.constant dense<0.000000e+00> : vector<4x8x8xf32>
    %41 = tpu.matmul %29, %40, %cst_12 {dimension_numbers = #tpu.dot_dimension_numbers<[0], [2], [2], [1], [0, 1, 0, 2, 1, 1], [1], [0]>} : vector<8x4x8xf32>, vector<4x8x8xf32>, vector<4x8x8xf32> -> vector<4x8x8xf32>
    %42 = tpu.transpose %41, [2, 0, 1] : vector<4x8x8xf32> -> vector<8x4x8xf32>
    "tpu.trace_stop"() : () -> ()
    %43 = vector.shape_cast %42 : vector<8x4x8xf32> to vector<8x32xf32>
    %44 = tpu.concatenate %24, %43 in 0 : vector<8x32xf32>, vector<8x32xf32> -> vector<16x32xf32>
    %c0_13 = arith.constant 0 : index
    %c0_14 = arith.constant 0 : index
    %45 = vector.load %arg3[%c0_13, %c0_14] : memref<32x32xf32, #tpu.memory_space<vmem>>, vector<32x32xf32>
    %cst_15 = arith.constant dense<0.000000e+00> : vector<16x32xf32>
    %46 = tpu.matmul %44, %45, %cst_15 {dimension_numbers = #tpu.dot_dimension_numbers<[1], [0], [0], [1], [0, 0, 1, 1], [], []>} : vector<16x32xf32>, vector<32x32xf32>, vector<16x32xf32> -> vector<16x32xf32>
    %c0_16 = arith.constant 0 : index
    %c0_17 = arith.constant 0 : index
    %47 = vector.load %arg4[%c0_16, %c0_17] : memref<1x32xf32, #tpu.memory_space<vmem>>, vector<1x32xf32>
    %48 = vector.broadcast %47 : vector<1x32xf32> to vector<16x32xf32>
    %49 = arith.addf %46, %48 : vector<16x32xf32>
    %c0_18 = arith.constant 0 : index
    %c0_19 = arith.constant 0 : index
    %50 = vector.load %arg5[%c0_18, %c0_19] : memref<16x32xf32, #tpu.memory_space<vmem>>, vector<16x32xf32>
    tpu.vector_store %arg5[%c0_18, %c0_19], %49 {strides = array<i32>} : memref<16x32xf32, #tpu.memory_space<vmem>>, vector<16x32xf32>,
    return
  }
}

</mosaic_0001>

<llo_original>
// kernel: tpu_custom_call.1
$region0: #{tpu_custom_call.1}
  #allocation0 [shape = 'u32[]', space=smem, size = 0x4, offset = 0x4, fixed_abs, tag = 'smem constant byte address 0x4 - core index']
  #allocation1 [shape = 'u32[72,128]{1,0:T(1,128)}', space=vmem, size = 0x9000, scoped, tag = 'internal scratch']
  %s0 = inlined_call_operand.hbm [shape: f32[16,32], index: 0, kind: input, shape index: {}]
  %s1 = inlined_call_operand.hbm [shape: f32[32,96], index: 1, kind: input, shape index: {}]
  %s2 = inlined_call_operand.vmem [shape: f32[1,96], index: 2, kind: input, shape index: {}]
  %s3 = inlined_call_operand.hbm [shape: f32[32,32], index: 3, kind: input, shape index: {}]
  %s4 = inlined_call_operand.vmem [shape: f32[1,32], index: 4, kind: input, shape index: {}]
  %s5 = inlined_call_operand.hbm [shape: f32[16,32], index: 5, kind: output, shape index: {}]
  %s6 = sld [smem:[#allocation0]]
  $region42: #{tpu_custom_call.1} parent=0
    _
  %s8 = ssub.s32 1, %s6
  %s9 = scalar_select 0, %s8, %s6
  $region1: #{tpu_custom_call.1} parent=0
    #allocation2 [shape = 'u8[8192]{0}', space=vmem, size = 0x2000, scoped, tag = 'input window, operand 0, single buffered']
    #allocation3 [shape = 's32[1]{0}', space=sflag, size = 0x4, scoped, tag = 'scoped memory for tpu_custom_call.1']
    #allocation4 [shape = 's32[1]{0}', space=sflag, size = 0x4, scoped, tag = 'scoped memory for tpu_custom_call.1']
    #allocation5 [shape = 'u8[16384]{0}', space=vmem, size = 0x4000, scoped, tag = 'input window, operand 1, single buffered']
    #allocation6 [shape = 's32[1]{0}', space=sflag, size = 0x4, scoped, tag = 'scoped memory for tpu_custom_call.1']
    #allocation7 [shape = 'u8[16384]{0}', space=vmem, size = 0x4000, scoped, tag = 'input window, operand 3, single buffered']
    #allocation8 [shape = 'u8[8192]{0}', space=vmem, size = 0x2000, scoped, tag = 'output window, operand 0, single buffered']
    %10 = vsyncpa [#allocation3], 0
    %11 = vsyncpa [#allocation6], 0
    %12 = vsyncpa [#allocation4], 0
    // Predicated region
    $region2: #{tpu_custom_call.1} parent=1 // pred_check
      _
    $region3: #{tpu_custom_call.1} parent=1 // pred_check_branch
      %14 = sbr.rel (0) target = $region5
    $region4: #{tpu_custom_call.1} parent=1 // pred_region
      %16 = vsyncadd [#allocation3], 0
      %s17 = sshll.u32 %s0, 4
      %s18 = int_to_ptr.hbm [resolvable:$true] %s17
      %s19 = sshll.u32 [#allocation2], 4
      %s20 = int_to_ptr.vmem [resolvable:$true] %s19
      %25 = dma.hbm_to_vmem [thread:$0]  %s18, 256, %s20, [#allocation3], 128, 128, 8
    $region5: #{tpu_custom_call.1} parent=1 // pred_fallthru
      _
    // Predicated region
    $region6: #{tpu_custom_call.1} parent=1 // pred_check
      _
    $region7: #{tpu_custom_call.1} parent=1 // pred_check_branch
      %27 = sbr.rel (0) target = $region9
    $region8: #{tpu_custom_call.1} parent=1 // pred_region
      %29 = vsyncadd [#allocation6], 0
      %s30 = sshll.u32 %s1, 4
      %s31 = int_to_ptr.hbm [resolvable:$true] %s30
      %s32 = sshll.u32 [#allocation5], 4
      %s33 = int_to_ptr.vmem [resolvable:$true] %s32
      %38 = dma.hbm_to_vmem [thread:$0]  %s31, 512, %s33, [#allocation6], 128, 128, 8
    $region9: #{tpu_custom_call.1} parent=1 // pred_fallthru
      _
    // Predicated region
    $region10: #{tpu_custom_call.1} parent=1 // pred_check
      _
    $region11: #{tpu_custom_call.1} parent=1 // pred_check_branch
      %40 = sbr.rel (0) target = $region13
    $region12: #{tpu_custom_call.1} parent=1 // pred_region
      _
    $region13: #{tpu_custom_call.1} parent=1 // pred_fallthru
      _
    // Predicated region
    $region14: #{tpu_custom_call.1} parent=1 // pred_check
      _
    $region15: #{tpu_custom_call.1} parent=1 // pred_check_branch
      %42 = sbr.rel (0) target = $region17
    $region16: #{tpu_custom_call.1} parent=1 // pred_region
      %44 = vsyncadd [#allocation6], 0
      %s45 = sshll.u32 %s3, 4
      %s46 = int_to_ptr.hbm [resolvable:$true] %s45
      %s47 = sshll.u32 [#allocation7], 4
      %s48 = int_to_ptr.vmem [resolvable:$true] %s47
      %53 = dma.hbm_to_vmem [thread:$0]  %s46, 512, %s48, [#allocation6], 128, 128, 8
    $region17: #{tpu_custom_call.1} parent=1 // pred_fallthru
      _
    // Predicated region
    $region18: #{tpu_custom_call.1} parent=1 // pred_check
      _
    $region19: #{tpu_custom_call.1} parent=1 // pred_check_branch
      %55 = sbr.rel (0) target = $region21
    $region20: #{tpu_custom_call.1} parent=1 // pred_region
      _
    $region21: #{tpu_custom_call.1} parent=1 // pred_fallthru
      _
    // Predicated region
    $region22: #{tpu_custom_call.1} parent=1 // pred_check
      _
    $region23: #{tpu_custom_call.1} parent=1 // pred_check_branch
      %57 = sbr.rel (0) target = $region25
    $region24: #{tpu_custom_call.1} parent=1 // pred_region
      %59 = dma.done [#allocation3], 256
    $region25: #{tpu_custom_call.1} parent=1 // pred_fallthru
      _
    // Predicated region
    $region26: #{tpu_custom_call.1} parent=1 // pred_check
      _
    $region27: #{tpu_custom_call.1} parent=1 // pred_check_branch
      %61 = sbr.rel (0) target = $region29
    $region28: #{tpu_custom_call.1} parent=1 // pred_region
      %63 = dma.done [#allocation6], 512
    $region29: #{tpu_custom_call.1} parent=1 // pred_fallthru
      _
    // Predicated region
    $region30: #{tpu_custom_call.1} parent=1 // pred_check
      _
    $region31: #{tpu_custom_call.1} parent=1 // pred_check_branch
      %65 = sbr.rel (0) target = $region33
    $region32: #{tpu_custom_call.1} parent=1 // pred_region
      %67 = dma.done [#allocation6], 512
    $region33: #{tpu_custom_call.1} parent=1 // pred_fallthru
      _
    %v68 = vld [vmem:[#allocation2] sm:$0xff]
    %v69 = vld [vmem:[#allocation2 + $0x8] sm:$0xff]
    %v70 = vld [vmem:[#allocation5] sm:$0xff]
    %v71 = vld [vmem:[#allocation5 + $0x8] sm:$0xff]
    %v72 = vld [vmem:[#allocation5 + $0x10] sm:$0xff]
    %v73 = vld [vmem:[#allocation5 + $0x18] sm:$0xff]
    %v74 = vld [vmem:[%s2] sm:$0x1]
    %v76 = vperm.slane %v74, 0
    %vm78 = vcmask 261120
    %v80 = vsel %vm78, %v68, 0
    %v83 = vsel %vm78, %v69, 0
    %85 = vmatpush.msra.mxu0 0.0
    %86 = vmatpush.msra.mxu0 0.0
    %87 = vmatpush.msra.mxu0 0.0
    %88 = vmatpush.msra.mxu0 0.0
    %89 = vmatpush.msra.mxu0 0.0
    %90 = vmatpush.msra.mxu0 0.0
    %91 = vmatpush.msra.mxu0 0.0
    %92 = vmatpush.msra.mxu0 0.0
    %93 = vmatpush.msra.mxu0 0.0
    %94 = vmatpush.msra.mxu0 0.0
    %95 = vmatpush.msra.mxu0 0.0
    %96 = vmatpush.msra.mxu0 0.0
    %97 = vmatpush.msra.mxu0 %v73
    %98 = vmatpush.msra.mxu0 %v72
    %99 = vmatpush.msra.mxu0 %v71
    %100 = vmatpush.msra.mxu0 %v70
    %101 = vmatmul.f32.gmra.mxu0 %v80
    %v102 = vpop.f32.mrf.mxu0
    %v103 = vadd.f32 %v76, %v102
    %104 = vmatmul.f32.gmra.mxu0 %v83
    %v105 = vpop.f32.mrf.mxu0
    %v106 = vadd.f32 %v76, %v105
    %107 = vdwg.mxu0
    %109 = vrot.lane.b32.xlu0 %v103, 120
    %v110 = vpop.permute.xlu0 %109
    %112 = vrot.lane.b32.xlu0 %v103, 112
    %v113 = vpop.permute.xlu0 %112
    %115 = vrot.lane.b32.xlu0 %v103, 104
    %v116 = vpop.permute.xlu0 %115
    %118 = vrot.lane.b32.xlu0 %v103, 96
    %v119 = vpop.permute.xlu0 %118
    %121 = vrot.lane.b32.xlu0 %v103, 88
    %v122 = vpop.permute.xlu0 %121
    %124 = vrot.lane.b32.xlu0 %v103, 80
    %v125 = vpop.permute.xlu0 %124
    %127 = vrot.lane.b32.xlu0 %v103, 72
    %v128 = vpop.permute.xlu0 %127
    %130 = vrot.lane.b32.xlu0 %v103, 64
    %v131 = vpop.permute.xlu0 %130
    %133 = vrot.lane.b32.xlu0 %v103, 56
    %v134 = vpop.permute.xlu0 %133
    %136 = vrot.lane.b32.xlu0 %v103, 48
    %v137 = vpop.permute.xlu0 %136
    %139 = vrot.lane.b32.xlu0 %v103, 40
    %v140 = vpop.permute.xlu0 %139
    %v142 = vrot.slane %v113, 4
    %vm143 = vcmask 1047556
    %v144 = vsel %vm143, %v142, %v103
    %v145 = vrot.slane %v103, 4
    %v146 = vsel %vm143, %v113, %v145
    %v148 = vunpack.c.l.s4 1983009808
    %v149 = vunpack.c.0.s8 %v148
    %v150 = vperm.slane %v144, %v149
    %v152 = vunpack.c.l.s4 1983009808
    %v153 = vunpack.c.0.s8 %v152
    %v154 = vperm.slane %v146, %v153
    %v155 = vrot.slane %v116, 4
    %v156 = vsel %vm143, %v155, %v110
    %v157 = vrot.slane %v110, 4
    %v158 = vsel %vm143, %v116, %v157
    %v160 = vunpack.c.l.s4 1983009808
    %v161 = vunpack.c.0.s8 %v160
    %v162 = vperm.slane %v156, %v161
    %v164 = vunpack.c.l.s4 1983009808
    %v165 = vunpack.c.0.s8 %v164
    %v166 = vperm.slane %v158, %v165
    %v167 = vrot.slane %v125, 4
    %v168 = vsel %vm143, %v167, %v119
    %v169 = vrot.slane %v119, 4
    %v170 = vsel %vm143, %v125, %v169
    %v172 = vunpack.c.l.s4 1983009808
    %v173 = vunpack.c.0.s8 %v172
    %v174 = vperm.slane %v168, %v173
    %v176 = vunpack.c.l.s4 1983009808
    %v177 = vunpack.c.0.s8 %v176
    %v178 = vperm.slane %v170, %v177
    %v179 = vrot.slane %v128, 4
    %v180 = vsel %vm143, %v179, %v122
    %v181 = vrot.slane %v122, 4
    %v182 = vsel %vm143, %v128, %v181
    %v184 = vunpack.c.l.s4 1983009808
    %v185 = vunpack.c.0.s8 %v184
    %v186 = vperm.slane %v180, %v185
    %v188 = vunpack.c.l.s4 1983009808
    %v189 = vunpack.c.0.s8 %v188
    %v190 = vperm.slane %v182, %v189
    %v191 = vrot.slane %v162, 4
    %v192 = vsel %vm143, %v191, %v150
    %v193 = vrot.slane %v150, 4
    %v194 = vsel %vm143, %v162, %v193
    %v196 = vunpack.c.l.s4 1934713408
    %v197 = vunpack.c.0.s8 %v196
    %v198 = vperm.slane %v192, %v197
    %v200 = vunpack.c.l.s4 1934713408
    %v201 = vunpack.c.0.s8 %v200
    %v202 = vperm.slane %v194, %v201
    %v203 = vrot.slane %v166, 4
    %v204 = vsel %vm143, %v203, %v154
    %v205 = vrot.slane %v154, 4
    %v206 = vsel %vm143, %v166, %v205
    %v208 = vunpack.c.l.s4 1934713408
    %v209 = vunpack.c.0.s8 %v208
    %v210 = vperm.slane %v204, %v209
    %v212 = vunpack.c.l.s4 1934713408
    %v213 = vunpack.c.0.s8 %v212
    %v214 = vperm.slane %v206, %v213
    %v215 = vrot.slane %v186, 4
    %v216 = vsel %vm143, %v215, %v174
    %v217 = vrot.slane %v174, 4
    %v218 = vsel %vm143, %v186, %v217
    %v220 = vunpack.c.l.s4 1934713408
    %v221 = vunpack.c.0.s8 %v220
    %v222 = vperm.slane %v216, %v221
    %v224 = vunpack.c.l.s4 1934713408
    %v225 = vunpack.c.0.s8 %v224
    %v226 = vperm.slane %v218, %v225
    %v227 = vrot.slane %v190, 4
    %v228 = vsel %vm143, %v227, %v178
    %v229 = vrot.slane %v178, 4
    %v230 = vsel %vm143, %v190, %v229
    %v232 = vunpack.c.l.s4 1934713408
    %v233 = vunpack.c.0.s8 %v232
    %v234 = vperm.slane %v228, %v233
    %v236 = vunpack.c.l.s4 1934713408
    %v237 = vunpack.c.0.s8 %v236
    %v238 = vperm.slane %v230, %v237
    %v239 = vrot.slane %v222, 4
    %v240 = vsel %vm143, %v239, %v198
    %v241 = vrot.slane %v198, 4
    %v242 = vsel %vm143, %v222, %v241
    %v243 = vrot.slane %v226, 4
    %v244 = vsel %vm143, %v243, %v202
    %v245 = vrot.slane %v202, 4
    %v246 = vsel %vm143, %v226, %v245
    %v247 = vrot.slane %v234, 4
    %v248 = vsel %vm143, %v247, %v210
    %v249 = vrot.slane %v210, 4
    %v250 = vsel %vm143, %v234, %v249
    %v251 = vrot.slane %v238, 4
    %v252 = vsel %vm143, %v251, %v214
    %v253 = vrot.slane %v214, 4
    %v254 = vsel %vm143, %v238, %v253
    %v255 = vrot.slane %v137, 4
    %v256 = vsel %vm143, %v255, %v131
    %v257 = vrot.slane %v131, 4
    %v258 = vsel %vm143, %v137, %v257
    %v260 = vunpack.c.l.s4 1983009808
    %v261 = vunpack.c.0.s8 %v260
    %v262 = vperm.slane %v256, %v261
    %v264 = vunpack.c.l.s4 1983009808
    %v265 = vunpack.c.0.s8 %v264
    %v266 = vperm.slane %v258, %v265
    %v267 = vrot.slane %v140, 4
    %v268 = vsel %vm143, %v267, %v134
    %v269 = vrot.slane %v134, 4
    %v270 = vsel %vm143, %v140, %v269
    %v272 = vunpack.c.l.s4 1983009808
    %v273 = vunpack.c.0.s8 %v272
    %v274 = vperm.slane %v268, %v273
    %v276 = vunpack.c.l.s4 1983009808
    %v277 = vunpack.c.0.s8 %v276
    %v278 = vperm.slane %v270, %v277
    %v279 = vrot.slane %v274, 4
    %v280 = vsel %vm143, %v279, %v262
    %v281 = vrot.slane %v262, 4
    %v282 = vsel %vm143, %v274, %v281
    %v284 = vunpack.c.l.s4 1934713408
    %v285 = vunpack.c.0.s8 %v284
    %v286 = vperm.slane %v280, %v285
    %v288 = vunpack.c.l.s4 1934713408
    %v289 = vunpack.c.0.s8 %v288
    %v290 = vperm.slane %v282, %v289
    %v291 = vrot.slane %v278, 4
    %v292 = vsel %vm143, %v291, %v266
    %v293 = vrot.slane %v266, 4
    %v294 = vsel %vm143, %v278, %v293
    %v296 = vunpack.c.l.s4 1934713408
    %v297 = vunpack.c.0.s8 %v296
    %v298 = vperm.slane %v292, %v297
    %v300 = vunpack.c.l.s4 1934713408
    %v301 = vunpack.c.0.s8 %v300
    %v302 = vperm.slane %v294, %v301
    %v303 = vrot.slane %v286, 4
    %v304 = vsel %vm143, 0.0, %v303
    %v305 = vrot.slane %v290, 4
    %v306 = vsel %vm143, 0.0, %v305
    %v307 = vrot.slane %v298, 4
    %v308 = vsel %vm143, 0.0, %v307
    %v309 = vrot.slane %v302, 4
    %v310 = vsel %vm143, 0.0, %v309
    %v311 = vrot.slane %v244, 4
    %v312 = vsel %vm143, %v311, %v240
    %v314 = vunpack.c.l.s4 1983009808
    %v315 = vunpack.c.0.s8 %v314
    %v316 = vperm.slane %v312, %v315
    %v317 = vrot.slane %v246, 4
    %v318 = vsel %vm143, %v317, %v242
    %v320 = vunpack.c.l.s4 1983009808
    %v321 = vunpack.c.0.s8 %v320
    %v322 = vperm.slane %v318, %v321
    %v323 = vrot.slane %v252, 4
    %v324 = vsel %vm143, %v323, %v248
    %v326 = vunpack.c.l.s4 1983009808
    %v327 = vunpack.c.0.s8 %v326
    %v328 = vperm.slane %v324, %v327
    %v329 = vrot.slane %v254, 4
    %v330 = vsel %vm143, %v329, %v250
    %v332 = vunpack.c.l.s4 1983009808
    %v333 = vunpack.c.0.s8 %v332
    %v334 = vperm.slane %v330, %v333
    %v335 = vrot.slane %v322, 4
    %v336 = vsel %vm143, %v335, %v316
    %v337 = vrot.slane %v316, 4
    %v338 = vsel %vm143, %v322, %v337
    %v340 = vunpack.c.l.s4 1934713408
    %v341 = vunpack.c.0.s8 %v340
    %v342 = vperm.slane %v336, %v341
    %v344 = vunpack.c.l.s4 1934713408
    %v345 = vunpack.c.0.s8 %v344
    %v346 = vperm.slane %v338, %v345
    %v347 = vrot.slane %v334, 4
    %v348 = vsel %vm143, %v347, %v328
    %v349 = vrot.slane %v328, 4
    %v350 = vsel %vm143, %v334, %v349
    %v352 = vunpack.c.l.s4 1934713408
    %v353 = vunpack.c.0.s8 %v352
    %v354 = vperm.slane %v348, %v353
    %v356 = vunpack.c.l.s4 1934713408
    %v357 = vunpack.c.0.s8 %v356
    %v358 = vperm.slane %v350, %v357
    %v359 = vrot.slane %v354, 4
    %v360 = vsel %vm143, %v359, %v342
    %v361 = vrot.slane %v342, 4
    %v362 = vsel %vm143, %v354, %v361
    %v363 = vrot.slane %v358, 4
    %v364 = vsel %vm143, %v363, %v346
    %v365 = vrot.slane %v346, 4
    %v366 = vsel %vm143, %v358, %v365
    %v375 = vrot.slane %v240, 4
    %v376 = vrot.slane %v242, 4
    %v377 = vrot.slane %v244, 4
    %v378 = vrot.slane %v246, 4
    %v379 = vrot.slane %v248, 4
    %v380 = vrot.slane %v250, 4
    %v381 = vrot.slane %v252, 4
    %v382 = vrot.slane %v254, 4
    %391 = vxpose.xlu0.b32.start [1/16] %v375, 128
    %392 = vxpose.xlu0.b32.cont [2/16] 0.0, 128
    %393 = vxpose.xlu0.b32.cont [3/16] 0.0, 128
    %394 = vxpose.xlu0.b32.cont [4/16] 0.0, 128
    %395 = vxpose.xlu0.b32.cont [5/16] 0.0, 128
    %396 = vxpose.xlu0.b32.cont [6/16] 0.0, 128
    %397 = vxpose.xlu0.b32.cont [7/16] 0.0, 128
    %398 = vxpose.xlu0.b32.cont [8/16] 0.0, 128
    %399 = vxpose.xlu0.b32.cont [9/16] 0.0, 128
    %400 = vxpose.xlu0.b32.cont [10/16] 0.0, 128
    %401 = vxpose.xlu0.b32.cont [11/16] 0.0, 128
    %402 = vxpose.xlu0.b32.cont [12/16] 0.0, 128
    %403 = vxpose.xlu0.b32.cont [13/16] 0.0, 128
    %404 = vxpose.xlu0.b32.cont [14/16] 0.0, 128
    %405 = vxpose.xlu0.b32.cont [15/16] 0.0, 128
    %406 = vxpose.xlu0.b32.end [16/16] 0.0, 128
    %v407 = vpop.trf.xlu0
    %v408 = vpop.trf.xlu0
    %v409 = vpop.trf.xlu0
    %v410 = vpop.trf.xlu0
    %v411 = vpop.trf.xlu0
    %v412 = vpop.trf.xlu0
    %v413 = vpop.trf.xlu0
    %v414 = vpop.trf.xlu0
    %v415 = vpop.trf.xlu0
    %v416 = vpop.trf.xlu0
    %v417 = vpop.trf.xlu0
    %v418 = vpop.trf.xlu0
    %v419 = vpop.trf.xlu0
    %v420 = vpop.trf.xlu0
    %v421 = vpop.trf.xlu0
    %v422 = vpop.trf.xlu0
    %423 = vxpose.xlu0.b32.start [1/16] %v376, 128
    %424 = vxpose.xlu0.b32.cont [2/16] 0.0, 128
    %425 = vxpose.xlu0.b32.cont [3/16] 0.0, 128
    %426 = vxpose.xlu0.b32.cont [4/16] 0.0, 128
    %427 = vxpose.xlu0.b32.cont [5/16] 0.0, 128
    %428 = vxpose.xlu0.b32.cont [6/16] 0.0, 128
    %429 = vxpose.xlu0.b32.cont [7/16] 0.0, 128
    %430 = vxpose.xlu0.b32.cont [8/16] 0.0, 128
    %431 = vxpose.xlu0.b32.cont [9/16] 0.0, 128
    %432 = vxpose.xlu0.b32.cont [10/16] 0.0, 128
    %433 = vxpose.xlu0.b32.cont [11/16] 0.0, 128
    %434 = vxpose.xlu0.b32.cont [12/16] 0.0, 128
    %435 = vxpose.xlu0.b32.cont [13/16] 0.0, 128
    %436 = vxpose.xlu0.b32.cont [14/16] 0.0, 128
    %437 = vxpose.xlu0.b32.cont [15/16] 0.0, 128
    %438 = vxpose.xlu0.b32.end [16/16] 0.0, 128
    %v439 = vpop.trf.xlu0
    %v440 = vpop.trf.xlu0
    %v441 = vpop.trf.xlu0
    %v442 = vpop.trf.xlu0
    %v443 = vpop.trf.xlu0
    %v444 = vpop.trf.xlu0
    %v445 = vpop.trf.xlu0
    %v446 = vpop.trf.xlu0
    %v447 = vpop.trf.xlu0
    %v448 = vpop.trf.xlu0
    %v449 = vpop.trf.xlu0
    %v450 = vpop.trf.xlu0
    %v451 = vpop.trf.xlu0
    %v452 = vpop.trf.xlu0
    %v453 = vpop.trf.xlu0
    %v454 = vpop.trf.xlu0
    %455 = vxpose.xlu0.b32.start [1/16] %v377, 128
    %456 = vxpose.xlu0.b32.cont [2/16] 0.0, 128
    %457 = vxpose.xlu0.b32.cont [3/16] 0.0, 128
    %458 = vxpose.xlu0.b32.cont [4/16] 0.0, 128
    %459 = vxpose.xlu0.b32.cont [5/16] 0.0, 128
    %460 = vxpose.xlu0.b32.cont [6/16] 0.0, 128
    %461 = vxpose.xlu0.b32.cont [7/16] 0.0, 128
    %462 = vxpose.xlu0.b32.cont [8/16] 0.0, 128
    %463 = vxpose.xlu0.b32.cont [9/16] 0.0, 128
    %464 = vxpose.xlu0.b32.cont [10/16] 0.0, 128
    %465 = vxpose.xlu0.b32.cont [11/16] 0.0, 128
    %466 = vxpose.xlu0.b32.cont [12/16] 0.0, 128
    %467 = vxpose.xlu0.b32.cont [13/16] 0.0, 128
    %468 = vxpose.xlu0.b32.cont [14/16] 0.0, 128
    %469 = vxpose.xlu0.b32.cont [15/16] 0.0, 128
    %470 = vxpose.xlu0.b32.end [16/16] 0.0, 128
    %v471 = vpop.trf.xlu0
    %v472 = vpop.trf.xlu0
    %v473 = vpop.trf.xlu0
    %v474 = vpop.trf.xlu0
    %v475 = vpop.trf.xlu0
    %v476 = vpop.trf.xlu0
    %v477 = vpop.trf.xlu0
    %v478 = vpop.trf.xlu0
    %v479 = vpop.trf.xlu0
    %v480 = vpop.trf.xlu0
    %v481 = vpop.trf.xlu0
    %v482 = vpop.trf.xlu0
    %v483 = vpop.trf.xlu0
    %v484 = vpop.trf.xlu0
    %v485 = vpop.trf.xlu0
    %v486 = vpop.trf.xlu0
    %487 = vxpose.xlu0.b32.start [1/16] %v378, 128
    %488 = vxpose.xlu0.b32.cont [2/16] 0.0, 128
    %489 = vxpose.xlu0.b32.cont [3/16] 0.0, 128
    %490 = vxpose.xlu0.b32.cont [4/16] 0.0, 128
    %491 = vxpose.xlu0.b32.cont [5/16] 0.0, 128
    %492 = vxpose.xlu0.b32.cont [6/16] 0.0, 128
    %493 = vxpose.xlu0.b32.cont [7/16] 0.0, 128
    %494 = vxpose.xlu0.b32.cont [8/16] 0.0, 128
    %495 = vxpose.xlu0.b32.cont [9/16] 0.0, 128
    %496 = vxpose.xlu0.b32.cont [10/16] 0.0, 128
    %497 = vxpose.xlu0.b32.cont [11/16] 0.0, 128
    %498 = vxpose.xlu0.b32.cont [12/16] 0.0, 128
    %499 = vxpose.xlu0.b32.cont [13/16] 0.0, 128
    %500 = vxpose.xlu0.b32.cont [14/16] 0.0, 128
    %501 = vxpose.xlu0.b32.cont [15/16] 0.0, 128
    %502 = vxpose.xlu0.b32.end [16/16] 0.0, 128
    %v503 = vpop.trf.xlu0
    %v504 = vpop.trf.xlu0
    %v505 = vpop.trf.xlu0
    %v506 = vpop.trf.xlu0
    %v507 = vpop.trf.xlu0
    %v508 = vpop.trf.xlu0
    %v509 = vpop.trf.xlu0
    %v510 = vpop.trf.xlu0
    %v511 = vpop.trf.xlu0
    %v512 = vpop.trf.xlu0
    %v513 = vpop.trf.xlu0
    %v514 = vpop.trf.xlu0
    %v515 = vpop.trf.xlu0
    %v516 = vpop.trf.xlu0
    %v517 = vpop.trf.xlu0
    %v518 = vpop.trf.xlu0
    %519 = vxpose.xlu0.b32.start [1/16] %v379, 128
    %520 = vxpose.xlu0.b32.cont [2/16] 0.0, 128
    %521 = vxpose.xlu0.b32.cont [3/16] 0.0, 128
    %522 = vxpose.xlu0.b32.cont [4/16] 0.0, 128
    %523 = vxpose.xlu0.b32.cont [5/16] 0.0, 128
    %524 = vxpose.xlu0.b32.cont [6/16] 0.0, 128
    %525 = vxpose.xlu0.b32.cont [7/16] 0.0, 128
    %526 = vxpose.xlu0.b32.cont [8/16] 0.0, 128
    %527 = vxpose.xlu0.b32.cont [9/16] 0.0, 128
    %528 = vxpose.xlu0.b32.cont [10/16] 0.0, 128
    %529 = vxpose.xlu0.b32.cont [11/16] 0.0, 128
    %530 = vxpose.xlu0.b32.cont [12/16] 0.0, 128
    %531 = vxpose.xlu0.b32.cont [13/16] 0.0, 128
    %532 = vxpose.xlu0.b32.cont [14/16] 0.0, 128
    %533 = vxpose.xlu0.b32.cont [15/16] 0.0, 128
    %534 = vxpose.xlu0.b32.end [16/16] 0.0, 128
    %v535 = vpop.trf.xlu0
    %v536 = vpop.trf.xlu0
    %v537 = vpop.trf.xlu0
    %v538 = vpop.trf.xlu0
    %v539 = vpop.trf.xlu0
    %v540 = vpop.trf.xlu0
    %v541 = vpop.trf.xlu0
    %v542 = vpop.trf.xlu0
    %v543 = vpop.trf.xlu0
    %v544 = vpop.trf.xlu0
    %v545 = vpop.trf.xlu0
    %v546 = vpop.trf.xlu0
    %v547 = vpop.trf.xlu0
    %v548 = vpop.trf.xlu0
    %v549 = vpop.trf.xlu0
    %v550 = vpop.trf.xlu0
    %551 = vxpose.xlu0.b32.start [1/16] %v380, 128
    %552 = vxpose.xlu0.b32.cont [2/16] 0.0, 128
    %553 = vxpose.xlu0.b32.cont [3/16] 0.0, 128
    %554 = vxpose.xlu0.b32.cont [4/16] 0.0, 128
    %555 = vxpose.xlu0.b32.cont [5/16] 0.0, 128
    %556 = vxpose.xlu0.b32.cont [6/16] 0.0, 128
    %557 = vxpose.xlu0.b32.cont [7/16] 0.0, 128
    %558 = vxpose.xlu0.b32.cont [8/16] 0.0, 128
    %559 = vxpose.xlu0.b32.cont [9/16] 0.0, 128
    %560 = vxpose.xlu0.b32.cont [10/16] 0.0, 128
    %561 = vxpose.xlu0.b32.cont [11/16] 0.0, 128
    %562 = vxpose.xlu0.b32.cont [12/16] 0.0, 128
    %563 = vxpose.xlu0.b32.cont [13/16] 0.0, 128
    %564 = vxpose.xlu0.b32.cont [14/16] 0.0, 128
    %565 = vxpose.xlu0.b32.cont [15/16] 0.0, 128
    %566 = vxpose.xlu0.b32.end [16/16] 0.0, 128
    %v567 = vpop.trf.xlu0
    %v568 = vpop.trf.xlu0
    %v569 = vpop.trf.xlu0
    %v570 = vpop.trf.xlu0
    %v571 = vpop.trf.xlu0
    %v572 = vpop.trf.xlu0
    %v573 = vpop.trf.xlu0
    %v574 = vpop.trf.xlu0
    %v575 = vpop.trf.xlu0
    %v576 = vpop.trf.xlu0
    %v577 = vpop.trf.xlu0
    %v578 = vpop.trf.xlu0
    %v579 = vpop.trf.xlu0
    %v580 = vpop.trf.xlu0
    %v581 = vpop.trf.xlu0
    %v582 = vpop.trf.xlu0
    %583 = vxpose.xlu0.b32.start [1/16] %v381, 128
    %584 = vxpose.xlu0.b32.cont [2/16] 0.0, 128
    %585 = vxpose.xlu0.b32.cont [3/16] 0.0, 128
    %586 = vxpose.xlu0.b32.cont [4/16] 0.0, 128
    %587 = vxpose.xlu0.b32.cont [5/16] 0.0, 128
    %588 = vxpose.xlu0.b32.cont [6/16] 0.0, 128
    %589 = vxpose.xlu0.b32.cont [7/16] 0.0, 128
    %590 = vxpose.xlu0.b32.cont [8/16] 0.0, 128
    %591 = vxpose.xlu0.b32.cont [9/16] 0.0, 128
    %592 = vxpose.xlu0.b32.cont [10/16] 0.0, 128
    %593 = vxpose.xlu0.b32.cont [11/16] 0.0, 128
    %594 = vxpose.xlu0.b32.cont [12/16] 0.0, 128
    %595 = vxpose.xlu0.b32.cont [13/16] 0.0, 128
    %596 = vxpose.xlu0.b32.cont [14/16] 0.0, 128
    %597 = vxpose.xlu0.b32.cont [15/16] 0.0, 128
    %598 = vxpose.xlu0.b32.end [16/16] 0.0, 128
    %v599 = vpop.trf.xlu0
    %v600 = vpop.trf.xlu0
    %v601 = vpop.trf.xlu0
    %v602 = vpop.trf.xlu0
    %v603 = vpop.trf.xlu0
    %v604 = vpop.trf.xlu0
    %v605 = vpop.trf.xlu0
    %v606 = vpop.trf.xlu0
    %v607 = vpop.trf.xlu0
    %v608 = vpop.trf.xlu0
    %v609 = vpop.trf.xlu0
    %v610 = vpop.trf.xlu0
    %v611 = vpop.trf.xlu0
    %v612 = vpop.trf.xlu0
    %v613 = vpop.trf.xlu0
    %v614 = vpop.trf.xlu0
    %615 = vxpose.xlu0.b32.start [1/16] %v382, 128
    %616 = vxpose.xlu0.b32.cont [2/16] 0.0, 128
    %617 = vxpose.xlu0.b32.cont [3/16] 0.0, 128
    %618 = vxpose.xlu0.b32.cont [4/16] 0.0, 128
    %619 = vxpose.xlu0.b32.cont [5/16] 0.0, 128
    %620 = vxpose.xlu0.b32.cont [6/16] 0.0, 128
    %621 = vxpose.xlu0.b32.cont [7/16] 0.0, 128
    %622 = vxpose.xlu0.b32.cont [8/16] 0.0, 128
    %623 = vxpose.xlu0.b32.cont [9/16] 0.0, 128
    %624 = vxpose.xlu0.b32.cont [10/16] 0.0, 128
    %625 = vxpose.xlu0.b32.cont [11/16] 0.0, 128
    %626 = vxpose.xlu0.b32.cont [12/16] 0.0, 128
    %627 = vxpose.xlu0.b32.cont [13/16] 0.0, 128
    %628 = vxpose.xlu0.b32.cont [14/16] 0.0, 128
    %629 = vxpose.xlu0.b32.cont [15/16] 0.0, 128
    %630 = vxpose.xlu0.b32.end [16/16] 0.0, 128
    %v631 = vpop.trf.xlu0
    %v632 = vpop.trf.xlu0
    %v633 = vpop.trf.xlu0
    %v634 = vpop.trf.xlu0
    %v635 = vpop.trf.xlu0
    %v636 = vpop.trf.xlu0
    %v637 = vpop.trf.xlu0
    %v638 = vpop.trf.xlu0
    %v639 = vpop.trf.xlu0
    %v640 = vpop.trf.xlu0
    %v641 = vpop.trf.xlu0
    %v642 = vpop.trf.xlu0
    %v643 = vpop.trf.xlu0
    %v644 = vpop.trf.xlu0
    %v645 = vpop.trf.xlu0
    %v646 = vpop.trf.xlu0
    %v647 = vrot.slane %v471, 4
    %v648 = vsel %vm143, %v647, %v407
    %v649 = vrot.slane %v407, 4
    %v650 = vsel %vm143, %v471, %v649
    %v652 = vunpack.c.l.s4 1983009808
    %v653 = vunpack.c.0.s8 %v652
    %v654 = vperm.slane %v648, %v653
    %v656 = vunpack.c.l.s4 1983009808
    %v657 = vunpack.c.0.s8 %v656
    %v658 = vperm.slane %v650, %v657
    %v659 = vrot.slane %v503, 4
    %v660 = vsel %vm143, %v659, %v439
    %v661 = vrot.slane %v439, 4
    %v662 = vsel %vm143, %v503, %v661
    %v664 = vunpack.c.l.s4 1983009808
    %v665 = vunpack.c.0.s8 %v664
    %v666 = vperm.slane %v660, %v665
    %v668 = vunpack.c.l.s4 1983009808
    %v669 = vunpack.c.0.s8 %v668
    %v670 = vperm.slane %v662, %v669
    %v671 = vrot.slane %v599, 4
    %v672 = vsel %vm143, %v671, %v535
    %v673 = vrot.slane %v535, 4
    %v674 = vsel %vm143, %v599, %v673
    %v676 = vunpack.c.l.s4 1983009808
    %v677 = vunpack.c.0.s8 %v676
    %v678 = vperm.slane %v672, %v677
    %v680 = vunpack.c.l.s4 1983009808
    %v681 = vunpack.c.0.s8 %v680
    %v682 = vperm.slane %v674, %v681
    %v683 = vrot.slane %v631, 4
    %v684 = vsel %vm143, %v683, %v567
    %v685 = vrot.slane %v567, 4
    %v686 = vsel %vm143, %v631, %v685
    %v688 = vunpack.c.l.s4 1983009808
    %v689 = vunpack.c.0.s8 %v688
    %v690 = vperm.slane %v684, %v689
    %v692 = vunpack.c.l.s4 1983009808
    %v693 = vunpack.c.0.s8 %v692
    %v694 = vperm.slane %v686, %v693
    %v695 = vrot.slane %v666, 4
    %v696 = vsel %vm143, %v695, %v654
    %v697 = vrot.slane %v654, 4
    %v698 = vsel %vm143, %v666, %v697
    %v700 = vunpack.c.l.s4 1934713408
    %v701 = vunpack.c.0.s8 %v700
    %v702 = vperm.slane %v696, %v701
    %v704 = vunpack.c.l.s4 1934713408
    %v705 = vunpack.c.0.s8 %v704
    %v706 = vperm.slane %v698, %v705
    %v707 = vrot.slane %v670, 4
    %v708 = vsel %vm143, %v707, %v658
    %v709 = vrot.slane %v658, 4
    %v710 = vsel %vm143, %v670, %v709
    %v712 = vunpack.c.l.s4 1934713408
    %v713 = vunpack.c.0.s8 %v712
    %v714 = vperm.slane %v708, %v713
    %v716 = vunpack.c.l.s4 1934713408
    %v717 = vunpack.c.0.s8 %v716
    %v718 = vperm.slane %v710, %v717
    %v719 = vrot.slane %v690, 4
    %v720 = vsel %vm143, %v719, %v678
    %v721 = vrot.slane %v678, 4
    %v722 = vsel %vm143, %v690, %v721
    %v724 = vunpack.c.l.s4 1934713408
    %v725 = vunpack.c.0.s8 %v724
    %v726 = vperm.slane %v720, %v725
    %v728 = vunpack.c.l.s4 1934713408
    %v729 = vunpack.c.0.s8 %v728
    %v730 = vperm.slane %v722, %v729
    %v731 = vrot.slane %v694, 4
    %v732 = vsel %vm143, %v731, %v682
    %v733 = vrot.slane %v682, 4
    %v734 = vsel %vm143, %v694, %v733
    %v736 = vunpack.c.l.s4 1934713408
    %v737 = vunpack.c.0.s8 %v736
    %v738 = vperm.slane %v732, %v737
    %v740 = vunpack.c.l.s4 1934713408
    %v741 = vunpack.c.0.s8 %v740
    %v742 = vperm.slane %v734, %v741
    %v743 = vrot.slane %v726, 4
    %v744 = vsel %vm143, %v743, %v702
    %v745 = vrot.slane %v702, 4
    %v746 = vsel %vm143, %v726, %v745
    %v747 = vrot.slane %v730, 4
    %v748 = vsel %vm143, %v747, %v706
    %v749 = vrot.slane %v706, 4
    %v750 = vsel %vm143, %v730, %v749
    %v751 = vrot.slane %v738, 4
    %v752 = vsel %vm143, %v751, %v714
    %v753 = vrot.slane %v714, 4
    %v754 = vsel %vm143, %v738, %v753
    %v755 = vrot.slane %v742, 4
    %v756 = vsel %vm143, %v755, %v718
    %v757 = vrot.slane %v718, 4
    %v758 = vsel %vm143, %v742, %v757
    %759 = vxpose.xlu0.b32.start [1/16] %v744, 128
    %760 = vxpose.xlu0.b32.cont [2/16] 0.0, 128
    %761 = vxpose.xlu0.b32.cont [3/16] 0.0, 128
    %762 = vxpose.xlu0.b32.cont [4/16] 0.0, 128
    %763 = vxpose.xlu0.b32.cont [5/16] 0.0, 128
    %764 = vxpose.xlu0.b32.cont [6/16] 0.0, 128
    %765 = vxpose.xlu0.b32.cont [7/16] 0.0, 128
    %766 = vxpose.xlu0.b32.cont [8/16] 0.0, 128
    %767 = vxpose.xlu0.b32.cont [9/16] 0.0, 128
    %768 = vxpose.xlu0.b32.cont [10/16] 0.0, 128
    %769 = vxpose.xlu0.b32.cont [11/16] 0.0, 128
    %770 = vxpose.xlu0.b32.cont [12/16] 0.0, 128
    %771 = vxpose.xlu0.b32.cont [13/16] 0.0, 128
    %772 = vxpose.xlu0.b32.cont [14/16] 0.0, 128
    %773 = vxpose.xlu0.b32.cont [15/16] 0.0, 128
    %774 = vxpose.xlu0.b32.end [16/16] 0.0, 128
    %v775 = vpop.trf.xlu0
    %v776 = vpop.trf.xlu0
    %v777 = vpop.trf.xlu0
    %v778 = vpop.trf.xlu0
    %v779 = vpop.trf.xlu0
    %v780 = vpop.trf.xlu0
    %v781 = vpop.trf.xlu0
    %v782 = vpop.trf.xlu0
    %v783 = vpop.trf.xlu0
    %v784 = vpop.trf.xlu0
    %v785 = vpop.trf.xlu0
    %v786 = vpop.trf.xlu0
    %v787 = vpop.trf.xlu0
    %v788 = vpop.trf.xlu0
    %v789 = vpop.trf.xlu0
    %v790 = vpop.trf.xlu0
    %791 = vxpose.xlu0.b32.start [1/16] %v746, 128
    %792 = vxpose.xlu0.b32.cont [2/16] 0.0, 128
    %793 = vxpose.xlu0.b32.cont [3/16] 0.0, 128
    %794 = vxpose.xlu0.b32.cont [4/16] 0.0, 128
    %795 = vxpose.xlu0.b32.cont [5/16] 0.0, 128
    %796 = vxpose.xlu0.b32.cont [6/16] 0.0, 128
    %797 = vxpose.xlu0.b32.cont [7/16] 0.0, 128
    %798 = vxpose.xlu0.b32.cont [8/16] 0.0, 128
    %799 = vxpose.xlu0.b32.cont [9/16] 0.0, 128
    %800 = vxpose.xlu0.b32.cont [10/16] 0.0, 128
    %801 = vxpose.xlu0.b32.cont [11/16] 0.0, 128
    %802 = vxpose.xlu0.b32.cont [12/16] 0.0, 128
    %803 = vxpose.xlu0.b32.cont [13/16] 0.0, 128
    %804 = vxpose.xlu0.b32.cont [14/16] 0.0, 128
    %805 = vxpose.xlu0.b32.cont [15/16] 0.0, 128
    %806 = vxpose.xlu0.b32.end [16/16] 0.0, 128
    %v807 = vpop.trf.xlu0
    %v808 = vpop.trf.xlu0
    %v809 = vpop.trf.xlu0
    %v810 = vpop.trf.xlu0
    %v811 = vpop.trf.xlu0
    %v812 = vpop.trf.xlu0
    %v813 = vpop.trf.xlu0
    %v814 = vpop.trf.xlu0
    %v815 = vpop.trf.xlu0
    %v816 = vpop.trf.xlu0
    %v817 = vpop.trf.xlu0
    %v818 = vpop.trf.xlu0
    %v819 = vpop.trf.xlu0
    %v820 = vpop.trf.xlu0
    %v821 = vpop.trf.xlu0
    %v822 = vpop.trf.xlu0
    %823 = vxpose.xlu0.b32.start [1/16] %v748, 128
    %824 = vxpose.xlu0.b32.cont [2/16] 0.0, 128
    %825 = vxpose.xlu0.b32.cont [3/16] 0.0, 128
    %826 = vxpose.xlu0.b32.cont [4/16] 0.0, 128
    %827 = vxpose.xlu0.b32.cont [5/16] 0.0, 128
    %828 = vxpose.xlu0.b32.cont [6/16] 0.0, 128
    %829 = vxpose.xlu0.b32.cont [7/16] 0.0, 128
    %830 = vxpose.xlu0.b32.cont [8/16] 0.0, 128
    %831 = vxpose.xlu0.b32.cont [9/16] 0.0, 128
    %832 = vxpose.xlu0.b32.cont [10/16] 0.0, 128
    %833 = vxpose.xlu0.b32.cont [11/16] 0.0, 128
    %834 = vxpose.xlu0.b32.cont [12/16] 0.0, 128
    %835 = vxpose.xlu0.b32.cont [13/16] 0.0, 128
    %836 = vxpose.xlu0.b32.cont [14/16] 0.0, 128
    %837 = vxpose.xlu0.b32.cont [15/16] 0.0, 128
    %838 = vxpose.xlu0.b32.end [16/16] 0.0, 128
    %v839 = vpop.trf.xlu0
    %v840 = vpop.trf.xlu0
    %v841 = vpop.trf.xlu0
    %v842 = vpop.trf.xlu0
    %v843 = vpop.trf.xlu0
    %v844 = vpop.trf.xlu0
    %v845 = vpop.trf.xlu0
    %v846 = vpop.trf.xlu0
    %v847 = vpop.trf.xlu0
    %v848 = vpop.trf.xlu0
    %v849 = vpop.trf.xlu0
    %v850 = vpop.trf.xlu0
    %v851 = vpop.trf.xlu0
    %v852 = vpop.trf.xlu0
    %v853 = vpop.trf.xlu0
    %v854 = vpop.trf.xlu0
    %855 = vxpose.xlu0.b32.start [1/16] %v750, 128
    %856 = vxpose.xlu0.b32.cont [2/16] 0.0, 128
    %857 = vxpose.xlu0.b32.cont [3/16] 0.0, 128
    %858 = vxpose.xlu0.b32.cont [4/16] 0.0, 128
    %859 = vxpose.xlu0.b32.cont [5/16] 0.0, 128
    %860 = vxpose.xlu0.b32.cont [6/16] 0.0, 128
    %861 = vxpose.xlu0.b32.cont [7/16] 0.0, 128
    %862 = vxpose.xlu0.b32.cont [8/16] 0.0, 128
    %863 = vxpose.xlu0.b32.cont [9/16] 0.0, 128
    %864 = vxpose.xlu0.b32.cont [10/16] 0.0, 128
    %865 = vxpose.xlu0.b32.cont [11/16] 0.0, 128
    %866 = vxpose.xlu0.b32.cont [12/16] 0.0, 128
    %867 = vxpose.xlu0.b32.cont [13/16] 0.0, 128
    %868 = vxpose.xlu0.b32.cont [14/16] 0.0, 128
    %869 = vxpose.xlu0.b32.cont [15/16] 0.0, 128
    %870 = vxpose.xlu0.b32.end [16/16] 0.0, 128
    %v871 = vpop.trf.xlu0
    %v872 = vpop.trf.xlu0
    %v873 = vpop.trf.xlu0
    %v874 = vpop.trf.xlu0
    %v875 = vpop.trf.xlu0
    %v876 = vpop.trf.xlu0
    %v877 = vpop.trf.xlu0
    %v878 = vpop.trf.xlu0
    %v879 = vpop.trf.xlu0
    %v880 = vpop.trf.xlu0
    %v881 = vpop.trf.xlu0
    %v882 = vpop.trf.xlu0
    %v883 = vpop.trf.xlu0
    %v884 = vpop.trf.xlu0
    %v885 = vpop.trf.xlu0
    %v886 = vpop.trf.xlu0
    %887 = vxpose.xlu0.b32.start [1/16] %v752, 128
    %888 = vxpose.xlu0.b32.cont [2/16] 0.0, 128
    %889 = vxpose.xlu0.b32.cont [3/16] 0.0, 128
    %890 = vxpose.xlu0.b32.cont [4/16] 0.0, 128
    %891 = vxpose.xlu0.b32.cont [5/16] 0.0, 128
    %892 = vxpose.xlu0.b32.cont [6/16] 0.0, 128
    %893 = vxpose.xlu0.b32.cont [7/16] 0.0, 128
    %894 = vxpose.xlu0.b32.cont [8/16] 0.0, 128
    %895 = vxpose.xlu0.b32.cont [9/16] 0.0, 128
    %896 = vxpose.xlu0.b32.cont [10/16] 0.0, 128
    %897 = vxpose.xlu0.b32.cont [11/16] 0.0, 128
    %898 = vxpose.xlu0.b32.cont [12/16] 0.0, 128
    %899 = vxpose.xlu0.b32.cont [13/16] 0.0, 128
    %900 = vxpose.xlu0.b32.cont [14/16] 0.0, 128
    %901 = vxpose.xlu0.b32.cont [15/16] 0.0, 128
    %902 = vxpose.xlu0.b32.end [16/16] 0.0, 128
    %v903 = vpop.trf.xlu0
    %v904 = vpop.trf.xlu0
    %v905 = vpop.trf.xlu0
    %v906 = vpop.trf.xlu0
    %v907 = vpop.trf.xlu0
    %v908 = vpop.trf.xlu0
    %v909 = vpop.trf.xlu0
    %v910 = vpop.trf.xlu0
    %v911 = vpop.trf.xlu0
    %v912 = vpop.trf.xlu0
    %v913 = vpop.trf.xlu0
    %v914 = vpop.trf.xlu0
    %v915 = vpop.trf.xlu0
    %v916 = vpop.trf.xlu0
    %v917 = vpop.trf.xlu0
    %v918 = vpop.trf.xlu0
    %919 = vxpose.xlu0.b32.start [1/16] %v754, 128
    %920 = vxpose.xlu0.b32.cont [2/16] 0.0, 128
    %921 = vxpose.xlu0.b32.cont [3/16] 0.0, 128
    %922 = vxpose.xlu0.b32.cont [4/16] 0.0, 128
    %923 = vxpose.xlu0.b32.cont [5/16] 0.0, 128
    %924 = vxpose.xlu0.b32.cont [6/16] 0.0, 128
    %925 = vxpose.xlu0.b32.cont [7/16] 0.0, 128
    %926 = vxpose.xlu0.b32.cont [8/16] 0.0, 128
    %927 = vxpose.xlu0.b32.cont [9/16] 0.0, 128
    %928 = vxpose.xlu0.b32.cont [10/16] 0.0, 128
    %929 = vxpose.xlu0.b32.cont [11/16] 0.0, 128
    %930 = vxpose.xlu0.b32.cont [12/16] 0.0, 128
    %931 = vxpose.xlu0.b32.cont [13/16] 0.0, 128
    %932 = vxpose.xlu0.b32.cont [14/16] 0.0, 128
    %933 = vxpose.xlu0.b32.cont [15/16] 0.0, 128
    %934 = vxpose.xlu0.b32.end [16/16] 0.0, 128
    %v935 = vpop.trf.xlu0
    %v936 = vpop.trf.xlu0
    %v937 = vpop.trf.xlu0
    %v938 = vpop.trf.xlu0
    %v939 = vpop.trf.xlu0
    %v940 = vpop.trf.xlu0
    %v941 = vpop.trf.xlu0
    %v942 = vpop.trf.xlu0
    %v943 = vpop.trf.xlu0
    %v944 = vpop.trf.xlu0
    %v945 = vpop.trf.xlu0
    %v946 = vpop.trf.xlu0
    %v947 = vpop.trf.xlu0
    %v948 = vpop.trf.xlu0
    %v949 = vpop.trf.xlu0
    %v950 = vpop.trf.xlu0
    %951 = vxpose.xlu0.b32.start [1/16] %v756, 128
    %952 = vxpose.xlu0.b32.cont [2/16] 0.0, 128
    %953 = vxpose.xlu0.b32.cont [3/16] 0.0, 128
    %954 = vxpose.xlu0.b32.cont [4/16] 0.0, 128
    %955 = vxpose.xlu0.b32.cont [5/16] 0.0, 128
    %956 = vxpose.xlu0.b32.cont [6/16] 0.0, 128
    %957 = vxpose.xlu0.b32.cont [7/16] 0.0, 128
    %958 = vxpose.xlu0.b32.cont [8/16] 0.0, 128
    %959 = vxpose.xlu0.b32.cont [9/16] 0.0, 128
    %960 = vxpose.xlu0.b32.cont [10/16] 0.0, 128
    %961 = vxpose.xlu0.b32.cont [11/16] 0.0, 128
    %962 = vxpose.xlu0.b32.cont [12/16] 0.0, 128
    %963 = vxpose.xlu0.b32.cont [13/16] 0.0, 128
    %964 = vxpose.xlu0.b32.cont [14/16] 0.0, 128
    %965 = vxpose.xlu0.b32.cont [15/16] 0.0, 128
    %966 = vxpose.xlu0.b32.end [16/16] 0.0, 128
    %v967 = vpop.trf.xlu0
    %v968 = vpop.trf.xlu0
    %v969 = vpop.trf.xlu0
    %v970 = vpop.trf.xlu0
    %v971 = vpop.trf.xlu0
    %v972 = vpop.trf.xlu0
    %v973 = vpop.trf.xlu0
    %v974 = vpop.trf.xlu0
    %v975 = vpop.trf.xlu0
    %v976 = vpop.trf.xlu0
    %v977 = vpop.trf.xlu0
    %v978 = vpop.trf.xlu0
    %v979 = vpop.trf.xlu0
    %v980 = vpop.trf.xlu0
    %v981 = vpop.trf.xlu0
    %v982 = vpop.trf.xlu0
    %983 = vxpose.xlu0.b32.start [1/16] %v758, 128
    %984 = vxpose.xlu0.b32.cont [2/16] 0.0, 128
    %985 = vxpose.xlu0.b32.cont [3/16] 0.0, 128
    %986 = vxpose.xlu0.b32.cont [4/16] 0.0, 128
    %987 = vxpose.xlu0.b32.cont [5/16] 0.0, 128
    %988 = vxpose.xlu0.b32.cont [6/16] 0.0, 128
    %989 = vxpose.xlu0.b32.cont [7/16] 0.0, 128
    %990 = vxpose.xlu0.b32.cont [8/16] 0.0, 128
    %991 = vxpose.xlu0.b32.cont [9/16] 0.0, 128
    %992 = vxpose.xlu0.b32.cont [10/16] 0.0, 128
    %993 = vxpose.xlu0.b32.cont [11/16] 0.0, 128
    %994 = vxpose.xlu0.b32.cont [12/16] 0.0, 128
    %995 = vxpose.xlu0.b32.cont [13/16] 0.0, 128
    %996 = vxpose.xlu0.b32.cont [14/16] 0.0, 128
    %997 = vxpose.xlu0.b32.cont [15/16] 0.0, 128
    %998 = vxpose.xlu0.b32.end [16/16] 0.0, 128
    %v999 = vpop.trf.xlu0
    %v1000 = vpop.trf.xlu0
    %v1001 = vpop.trf.xlu0
    %v1002 = vpop.trf.xlu0
    %v1003 = vpop.trf.xlu0
    %v1004 = vpop.trf.xlu0
    %v1005 = vpop.trf.xlu0
    %v1006 = vpop.trf.xlu0
    %v1007 = vpop.trf.xlu0
    %v1008 = vpop.trf.xlu0
    %v1009 = vpop.trf.xlu0
    %v1010 = vpop.trf.xlu0
    %v1011 = vpop.trf.xlu0
    %v1012 = vpop.trf.xlu0
    %v1013 = vpop.trf.xlu0
    %v1014 = vpop.trf.xlu0
    %v1015 = vrot.slane %v839, 4
    %v1016 = vsel %vm143, %v1015, %v775
    %v1018 = vunpack.c.l.s4 1983009808
    %v1019 = vunpack.c.0.s8 %v1018
    %v1020 = vperm.slane %v1016, %v1019
    %v1021 = vrot.slane %v871, 4
    %v1022 = vsel %vm143, %v1021, %v807
    %v1024 = vunpack.c.l.s4 1983009808
    %v1025 = vunpack.c.0.s8 %v1024
    %v1026 = vperm.slane %v1022, %v1025
    %v1027 = vrot.slane %v967, 4
    %v1028 = vsel %vm143, %v1027, %v903
    %v1030 = vunpack.c.l.s4 1983009808
    %v1031 = vunpack.c.0.s8 %v1030
    %v1032 = vperm.slane %v1028, %v1031
    %v1033 = vrot.slane %v999, 4
    %v1034 = vsel %vm143, %v1033, %v935
    %v1036 = vunpack.c.l.s4 1983009808
    %v1037 = vunpack.c.0.s8 %v1036
    %v1038 = vperm.slane %v1034, %v1037
    %v1039 = vrot.slane %v1026, 4
    %v1040 = vsel %vm143, %v1039, %v1020
    %v1041 = vrot.slane %v1020, 4
    %v1042 = vsel %vm143, %v1026, %v1041
    %v1044 = vunpack.c.l.s4 1934713408
    %v1045 = vunpack.c.0.s8 %v1044
    %v1046 = vperm.slane %v1040, %v1045
    %v1048 = vunpack.c.l.s4 1934713408
    %v1049 = vunpack.c.0.s8 %v1048
    %v1050 = vperm.slane %v1042, %v1049
    %v1051 = vrot.slane %v1038, 4
    %v1052 = vsel %vm143, %v1051, %v1032
    %v1053 = vrot.slane %v1032, 4
    %v1054 = vsel %vm143, %v1038, %v1053
    %v1056 = vunpack.c.l.s4 1934713408
    %v1057 = vunpack.c.0.s8 %v1056
    %v1058 = vperm.slane %v1052, %v1057
    %v1060 = vunpack.c.l.s4 1934713408
    %v1061 = vunpack.c.0.s8 %v1060
    %v1062 = vperm.slane %v1054, %v1061
    %v1063 = vrot.slane %v1058, 4
    %v1064 = vsel %vm143, %v1063, %v1046
    %v1065 = vrot.slane %v1046, 4
    %v1066 = vsel %vm143, %v1058, %v1065
    %v1067 = vrot.slane %v1062, 4
    %v1068 = vsel %vm143, %v1067, %v1050
    %v1069 = vrot.slane %v1050, 4
    %v1070 = vsel %vm143, %v1062, %v1069
    %vm1071 = vcmask 64512
    %v1073 = vsel %vm1071, %v360, 0
    %1075 = vmatpush.msra.mxu0 0.0
    %1076 = vmatpush.msra.mxu0 0.0
    %1077 = vmatpush.msra.mxu0 0.0
    %1078 = vmatpush.msra.mxu0 0.0
    %1079 = vmatpush.msra.mxu0 0.0
    %1080 = vmatpush.msra.mxu0 0.0
    %1081 = vmatpush.msra.mxu0 0.0
    %1082 = vmatpush.msra.mxu0 0.0
    %1083 = vmatpush.msra.mxu0 0.0
    %1084 = vmatpush.msra.mxu0 0.0
    %1085 = vmatpush.msra.mxu0 0.0
    %1086 = vmatpush.msra.mxu0 0.0
    %1087 = vmatpush.msra.mxu0 0.0
    %1088 = vmatpush.msra.mxu0 0.0
    %1089 = vmatpush.msra.mxu0 0.0
    %1090 = vmatpush.msra.mxu0 %v1064
    %1091 = vmatmul.f32.gmra.mxu0 %v1073
    %v1092 = vpop.f32.mrf.mxu0
    %v1093 = vadd.f32 0.0, %v1092
    %1094 = vdwg.mxu0
    %v1096 = vsel %vm1071, %v362, 0
    %1098 = vmatpush.msra.mxu0 0.0
    %1099 = vmatpush.msra.mxu0 0.0
    %1100 = vmatpush.msra.mxu0 0.0
    %1101 = vmatpush.msra.mxu0 0.0
    %1102 = vmatpush.msra.mxu0 0.0
    %1103 = vmatpush.msra.mxu0 0.0
    %1104 = vmatpush.msra.mxu0 0.0
    %1105 = vmatpush.msra.mxu0 0.0
    %1106 = vmatpush.msra.mxu0 0.0
    %1107 = vmatpush.msra.mxu0 0.0
    %1108 = vmatpush.msra.mxu0 0.0
    %1109 = vmatpush.msra.mxu0 0.0
    %1110 = vmatpush.msra.mxu0 0.0
    %1111 = vmatpush.msra.mxu0 0.0
    %1112 = vmatpush.msra.mxu0 0.0
    %1113 = vmatpush.msra.mxu0 %v1066
    %1114 = vmatmul.f32.gmra.mxu0 %v1096
    %v1115 = vpop.f32.mrf.mxu0
    %v1116 = vadd.f32 0.0, %v1115
    %1117 = vdwg.mxu0
    %v1119 = vsel %vm1071, %v364, 0
    %1121 = vmatpush.msra.mxu0 0.0
    %1122 = vmatpush.msra.mxu0 0.0
    %1123 = vmatpush.msra.mxu0 0.0
    %1124 = vmatpush.msra.mxu0 0.0
    %1125 = vmatpush.msra.mxu0 0.0
    %1126 = vmatpush.msra.mxu0 0.0
    %1127 = vmatpush.msra.mxu0 0.0
    %1128 = vmatpush.msra.mxu0 0.0
    %1129 = vmatpush.msra.mxu0 0.0
    %1130 = vmatpush.msra.mxu0 0.0
    %1131 = vmatpush.msra.mxu0 0.0
    %1132 = vmatpush.msra.mxu0 0.0
    %1133 = vmatpush.msra.mxu0 0.0
    %1134 = vmatpush.msra.mxu0 0.0
    %1135 = vmatpush.msra.mxu0 0.0
    %1136 = vmatpush.msra.mxu0 %v1068
    %1137 = vmatmul.f32.gmra.mxu0 %v1119
    %v1138 = vpop.f32.mrf.mxu0
    %v1139 = vadd.f32 0.0, %v1138
    %1140 = vdwg.mxu0
    %v1142 = vsel %vm1071, %v366, 0
    %1144 = vmatpush.msra.mxu0 0.0
    %1145 = vmatpush.msra.mxu0 0.0
    %1146 = vmatpush.msra.mxu0 0.0
    %1147 = vmatpush.msra.mxu0 0.0
    %1148 = vmatpush.msra.mxu0 0.0
    %1149 = vmatpush.msra.mxu0 0.0
    %1150 = vmatpush.msra.mxu0 0.0
    %1151 = vmatpush.msra.mxu0 0.0
    %1152 = vmatpush.msra.mxu0 0.0
    %1153 = vmatpush.msra.mxu0 0.0
    %1154 = vmatpush.msra.mxu0 0.0
    %1155 = vmatpush.msra.mxu0 0.0
    %1156 = vmatpush.msra.mxu0 0.0
    %1157 = vmatpush.msra.mxu0 0.0
    %1158 = vmatpush.msra.mxu0 0.0
    %1159 = vmatpush.msra.mxu0 %v1070
    %1160 = vmatmul.f32.gmra.mxu0 %v1142
    %v1161 = vpop.f32.mrf.mxu0
    %v1162 = vadd.f32 0.0, %v1161
    %1163 = vdwg.mxu0
    %v1164 = vsel %vm1071, %v1093, -inf
    %1165 = vmax.xlane.f32.xlu0 %v1164
    %v1166 = vpop.xlane.xlu0 %1165
    %v1167 = vsel %vm1071, %v1116, -inf
    %1168 = vmax.xlane.f32.xlu0 %v1167
    %v1169 = vpop.xlane.xlu0 %1168
    %v1170 = vsel %vm1071, %v1139, -inf
    %1171 = vmax.xlane.f32.xlu0 %v1170
    %v1172 = vpop.xlane.xlu0 %1171
    %v1173 = vsel %vm1071, %v1162, -inf
    %1174 = vmax.xlane.f32.xlu0 %v1173
    %v1175 = vpop.xlane.xlu0 %1174
    %v1176 = vsub.f32 %v1093, %v1166
    %v1177 = vsub.f32 %v1116, %v1169
    %v1178 = vsub.f32 %v1139, %v1172
    %v1179 = vsub.f32 %v1162, %v1175
    %v1180 = vmul.f32 %v1176, 1.442695
    %v1181 = vpow.pop %v1180
    %v1182 = vmul.f32 %v1177, 1.442695
    %v1183 = vpow.pop %v1182
    %v1184 = vmul.f32 %v1178, 1.442695
    %v1185 = vpow.pop %v1184
    %v1186 = vmul.f32 %v1179, 1.442695
    %v1187 = vpow.pop %v1186
    %v1188 = vsel %vm1071, %v1181, 0.0
    %1189 = vadd.xlane.f32.xlu0 %v1188
    %v1190 = vpop.xlane.xlu0 %1189
    %v1191 = vsel %vm1071, %v1183, 0.0
    %1192 = vadd.xlane.f32.xlu0 %v1191
    %v1193 = vpop.xlane.xlu0 %1192
    %v1194 = vsel %vm1071, %v1185, 0.0
    %1195 = vadd.xlane.f32.xlu0 %v1194
    %v1196 = vpop.xlane.xlu0 %1195
    %v1197 = vsel %vm1071, %v1187, 0.0
    %1198 = vadd.xlane.f32.xlu0 %v1197
    %v1199 = vpop.xlane.xlu0 %1198
    %v1200 = vrcp.pop %v1190
    %v1201 = vrcp.pop %v1193
    %v1202 = vrcp.pop %v1196
    %v1203 = vrcp.pop %v1199
    %v1204 = vmul.f32 %v1181, %v1200
    %v1205 = vmul.f32 %v1183, %v1201
    %v1206 = vmul.f32 %v1185, %v1202
    %v1207 = vmul.f32 %v1187, %v1203
    %1208 = vxpose.xlu0.b32.start [1/16] %v286, 128
    %1209 = vxpose.xlu0.b32.cont [2/16] 0.0, 128
    %1210 = vxpose.xlu0.b32.cont [3/16] 0.0, 128
    %1211 = vxpose.xlu0.b32.cont [4/16] 0.0, 128
    %1212 = vxpose.xlu0.b32.cont [5/16] 0.0, 128
    %1213 = vxpose.xlu0.b32.cont [6/16] 0.0, 128
    %1214 = vxpose.xlu0.b32.cont [7/16] 0.0, 128
    %1215 = vxpose.xlu0.b32.cont [8/16] 0.0, 128
    %1216 = vxpose.xlu0.b32.cont [9/16] 0.0, 128
    %1217 = vxpose.xlu0.b32.cont [10/16] 0.0, 128
    %1218 = vxpose.xlu0.b32.cont [11/16] 0.0, 128
    %1219 = vxpose.xlu0.b32.cont [12/16] 0.0, 128
    %1220 = vxpose.xlu0.b32.cont [13/16] 0.0, 128
    %1221 = vxpose.xlu0.b32.cont [14/16] 0.0, 128
    %1222 = vxpose.xlu0.b32.cont [15/16] 0.0, 128
    %1223 = vxpose.xlu0.b32.end [16/16] 0.0, 128
    %v1224 = vpop.trf.xlu0
    %v1225 = vpop.trf.xlu0
    %v1226 = vpop.trf.xlu0
    %v1227 = vpop.trf.xlu0
    %v1228 = vpop.trf.xlu0
    %v1229 = vpop.trf.xlu0
    %v1230 = vpop.trf.xlu0
    %v1231 = vpop.trf.xlu0
    %v1232 = vpop.trf.xlu0
    %v1233 = vpop.trf.xlu0
    %v1234 = vpop.trf.xlu0
    %v1235 = vpop.trf.xlu0
    %v1236 = vpop.trf.xlu0
    %v1237 = vpop.trf.xlu0
    %v1238 = vpop.trf.xlu0
    %v1239 = vpop.trf.xlu0
    %1240 = vxpose.xlu0.b32.start [1/16] %v304, 128
    %1241 = vxpose.xlu0.b32.cont [2/16] 0.0, 128
    %1242 = vxpose.xlu0.b32.cont [3/16] 0.0, 128
    %1243 = vxpose.xlu0.b32.cont [4/16] 0.0, 128
    %1244 = vxpose.xlu0.b32.cont [5/16] 0.0, 128
    %1245 = vxpose.xlu0.b32.cont [6/16] 0.0, 128
    %1246 = vxpose.xlu0.b32.cont [7/16] 0.0, 128
    %1247 = vxpose.xlu0.b32.cont [8/16] 0.0, 128
    %1248 = vxpose.xlu0.b32.cont [9/16] 0.0, 128
    %1249 = vxpose.xlu0.b32.cont [10/16] 0.0, 128
    %1250 = vxpose.xlu0.b32.cont [11/16] 0.0, 128
    %1251 = vxpose.xlu0.b32.cont [12/16] 0.0, 128
    %1252 = vxpose.xlu0.b32.cont [13/16] 0.0, 128
    %1253 = vxpose.xlu0.b32.cont [14/16] 0.0, 128
    %1254 = vxpose.xlu0.b32.cont [15/16] 0.0, 128
    %1255 = vxpose.xlu0.b32.end [16/16] 0.0, 128
    %v1256 = vpop.trf.xlu0
    %v1257 = vpop.trf.xlu0
    %v1258 = vpop.trf.xlu0
    %v1259 = vpop.trf.xlu0
    %v1260 = vpop.trf.xlu0
    %v1261 = vpop.trf.xlu0
    %v1262 = vpop.trf.xlu0
    %v1263 = vpop.trf.xlu0
    %v1264 = vpop.trf.xlu0
    %v1265 = vpop.trf.xlu0
    %v1266 = vpop.trf.xlu0
    %v1267 = vpop.trf.xlu0
    %v1268 = vpop.trf.xlu0
    %v1269 = vpop.trf.xlu0
    %v1270 = vpop.trf.xlu0
    %v1271 = vpop.trf.xlu0
    %1272 = vxpose.xlu0.b32.start [1/16] %v290, 128
    %1273 = vxpose.xlu0.b32.cont [2/16] 0.0, 128
    %1274 = vxpose.xlu0.b32.cont [3/16] 0.0, 128
    %1275 = vxpose.xlu0.b32.cont [4/16] 0.0, 128
    %1276 = vxpose.xlu0.b32.cont [5/16] 0.0, 128
    %1277 = vxpose.xlu0.b32.cont [6/16] 0.0, 128
    %1278 = vxpose.xlu0.b32.cont [7/16] 0.0, 128
    %1279 = vxpose.xlu0.b32.cont [8/16] 0.0, 128
    %1280 = vxpose.xlu0.b32.cont [9/16] 0.0, 128
    %1281 = vxpose.xlu0.b32.cont [10/16] 0.0, 128
    %1282 = vxpose.xlu0.b32.cont [11/16] 0.0, 128
    %1283 = vxpose.xlu0.b32.cont [12/16] 0.0, 128
    %1284 = vxpose.xlu0.b32.cont [13/16] 0.0, 128
    %1285 = vxpose.xlu0.b32.cont [14/16] 0.0, 128
    %1286 = vxpose.xlu0.b32.cont [15/16] 0.0, 128
    %1287 = vxpose.xlu0.b32.end [16/16] 0.0, 128
    %v1288 = vpop.trf.xlu0
    %v1289 = vpop.trf.xlu0
    %v1290 = vpop.trf.xlu0
    %v1291 = vpop.trf.xlu0
    %v1292 = vpop.trf.xlu0
    %v1293 = vpop.trf.xlu0
    %v1294 = vpop.trf.xlu0
    %v1295 = vpop.trf.xlu0
    %v1296 = vpop.trf.xlu0
    %v1297 = vpop.trf.xlu0
    %v1298 = vpop.trf.xlu0
    %v1299 = vpop.trf.xlu0
    %v1300 = vpop.trf.xlu0
    %v1301 = vpop.trf.xlu0
    %v1302 = vpop.trf.xlu0
    %v1303 = vpop.trf.xlu0
    %1304 = vxpose.xlu0.b32.start [1/16] %v306, 128
    %1305 = vxpose.xlu0.b32.cont [2/16] 0.0, 128
    %1306 = vxpose.xlu0.b32.cont [3/16] 0.0, 128
    %1307 = vxpose.xlu0.b32.cont [4/16] 0.0, 128
    %1308 = vxpose.xlu0.b32.cont [5/16] 0.0, 128
    %1309 = vxpose.xlu0.b32.cont [6/16] 0.0, 128
    %1310 = vxpose.xlu0.b32.cont [7/16] 0.0, 128
    %1311 = vxpose.xlu0.b32.cont [8/16] 0.0, 128
    %1312 = vxpose.xlu0.b32.cont [9/16] 0.0, 128
    %1313 = vxpose.xlu0.b32.cont [10/16] 0.0, 128
    %1314 = vxpose.xlu0.b32.cont [11/16] 0.0, 128
    %1315 = vxpose.xlu0.b32.cont [12/16] 0.0, 128
    %1316 = vxpose.xlu0.b32.cont [13/16] 0.0, 128
    %1317 = vxpose.xlu0.b32.cont [14/16] 0.0, 128
    %1318 = vxpose.xlu0.b32.cont [15/16] 0.0, 128
    %1319 = vxpose.xlu0.b32.end [16/16] 0.0, 128
    %v1320 = vpop.trf.xlu0
    %v1321 = vpop.trf.xlu0
    %v1322 = vpop.trf.xlu0
    %v1323 = vpop.trf.xlu0
    %v1324 = vpop.trf.xlu0
    %v1325 = vpop.trf.xlu0
    %v1326 = vpop.trf.xlu0
    %v1327 = vpop.trf.xlu0
    %v1328 = vpop.trf.xlu0
    %v1329 = vpop.trf.xlu0
    %v1330 = vpop.trf.xlu0
    %v1331 = vpop.trf.xlu0
    %v1332 = vpop.trf.xlu0
    %v1333 = vpop.trf.xlu0
    %v1334 = vpop.trf.xlu0
    %v1335 = vpop.trf.xlu0
    %1336 = vxpose.xlu0.b32.start [1/16] %v298, 128
    %1337 = vxpose.xlu0.b32.cont [2/16] 0.0, 128
    %1338 = vxpose.xlu0.b32.cont [3/16] 0.0, 128
    %1339 = vxpose.xlu0.b32.cont [4/16] 0.0, 128
    %1340 = vxpose.xlu0.b32.cont [5/16] 0.0, 128
    %1341 = vxpose.xlu0.b32.cont [6/16] 0.0, 128
    %1342 = vxpose.xlu0.b32.cont [7/16] 0.0, 128
    %1343 = vxpose.xlu0.b32.cont [8/16] 0.0, 128
    %1344 = vxpose.xlu0.b32.cont [9/16] 0.0, 128
    %1345 = vxpose.xlu0.b32.cont [10/16] 0.0, 128
    %1346 = vxpose.xlu0.b32.cont [11/16] 0.0, 128
    %1347 = vxpose.xlu0.b32.cont [12/16] 0.0, 128
    %1348 = vxpose.xlu0.b32.cont [13/16] 0.0, 128
    %1349 = vxpose.xlu0.b32.cont [14/16] 0.0, 128
    %1350 = vxpose.xlu0.b32.cont [15/16] 0.0, 128
    %1351 = vxpose.xlu0.b32.end [16/16] 0.0, 128
    %v1352 = vpop.trf.xlu0
    %v1353 = vpop.trf.xlu0
    %v1354 = vpop.trf.xlu0
    %v1355 = vpop.trf.xlu0
    %v1356 = vpop.trf.xlu0
    %v1357 = vpop.trf.xlu0
    %v1358 = vpop.trf.xlu0
    %v1359 = vpop.trf.xlu0
    %v1360 = vpop.trf.xlu0
    %v1361 = vpop.trf.xlu0
    %v1362 = vpop.trf.xlu0
    %v1363 = vpop.trf.xlu0
    %v1364 = vpop.trf.xlu0
    %v1365 = vpop.trf.xlu0
    %v1366 = vpop.trf.xlu0
    %v1367 = vpop.trf.xlu0
    %1368 = vxpose.xlu0.b32.start [1/16] %v308, 128
    %1369 = vxpose.xlu0.b32.cont [2/16] 0.0, 128
    %1370 = vxpose.xlu0.b32.cont [3/16] 0.0, 128
    %1371 = vxpose.xlu0.b32.cont [4/16] 0.0, 128
    %1372 = vxpose.xlu0.b32.cont [5/16] 0.0, 128
    %1373 = vxpose.xlu0.b32.cont [6/16] 0.0, 128
    %1374 = vxpose.xlu0.b32.cont [7/16] 0.0, 128
    %1375 = vxpose.xlu0.b32.cont [8/16] 0.0, 128
    %1376 = vxpose.xlu0.b32.cont [9/16] 0.0, 128
    %1377 = vxpose.xlu0.b32.cont [10/16] 0.0, 128
    %1378 = vxpose.xlu0.b32.cont [11/16] 0.0, 128
    %1379 = vxpose.xlu0.b32.cont [12/16] 0.0, 128
    %1380 = vxpose.xlu0.b32.cont [13/16] 0.0, 128
    %1381 = vxpose.xlu0.b32.cont [14/16] 0.0, 128
    %1382 = vxpose.xlu0.b32.cont [15/16] 0.0, 128
    %1383 = vxpose.xlu0.b32.end [16/16] 0.0, 128
    %v1384 = vpop.trf.xlu0
    %v1385 = vpop.trf.xlu0
    %v1386 = vpop.trf.xlu0
    %v1387 = vpop.trf.xlu0
    %v1388 = vpop.trf.xlu0
    %v1389 = vpop.trf.xlu0
    %v1390 = vpop.trf.xlu0
    %v1391 = vpop.trf.xlu0
    %v1392 = vpop.trf.xlu0
    %v1393 = vpop.trf.xlu0
    %v1394 = vpop.trf.xlu0
    %v1395 = vpop.trf.xlu0
    %v1396 = vpop.trf.xlu0
    %v1397 = vpop.trf.xlu0
    %v1398 = vpop.trf.xlu0
    %v1399 = vpop.trf.xlu0
    %1400 = vxpose.xlu0.b32.start [1/16] %v302, 128
    %1401 = vxpose.xlu0.b32.cont [2/16] 0.0, 128
    %1402 = vxpose.xlu0.b32.cont [3/16] 0.0, 128
    %1403 = vxpose.xlu0.b32.cont [4/16] 0.0, 128
    %1404 = vxpose.xlu0.b32.cont [5/16] 0.0, 128
    %1405 = vxpose.xlu0.b32.cont [6/16] 0.0, 128
    %1406 = vxpose.xlu0.b32.cont [7/16] 0.0, 128
    %1407 = vxpose.xlu0.b32.cont [8/16] 0.0, 128
    %1408 = vxpose.xlu0.b32.cont [9/16] 0.0, 128
    %1409 = vxpose.xlu0.b32.cont [10/16] 0.0, 128
    %1410 = vxpose.xlu0.b32.cont [11/16] 0.0, 128
    %1411 = vxpose.xlu0.b32.cont [12/16] 0.0, 128
    %1412 = vxpose.xlu0.b32.cont [13/16] 0.0, 128
    %1413 = vxpose.xlu0.b32.cont [14/16] 0.0, 128
    %1414 = vxpose.xlu0.b32.cont [15/16] 0.0, 128
    %1415 = vxpose.xlu0.b32.end [16/16] 0.0, 128
    %v1416 = vpop.trf.xlu0
    %v1417 = vpop.trf.xlu0
    %v1418 = vpop.trf.xlu0
    %v1419 = vpop.trf.xlu0
    %v1420 = vpop.trf.xlu0
    %v1421 = vpop.trf.xlu0
    %v1422 = vpop.trf.xlu0
    %v1423 = vpop.trf.xlu0
    %v1424 = vpop.trf.xlu0
    %v1425 = vpop.trf.xlu0
    %v1426 = vpop.trf.xlu0
    %v1427 = vpop.trf.xlu0
    %v1428 = vpop.trf.xlu0
    %v1429 = vpop.trf.xlu0
    %v1430 = vpop.trf.xlu0
    %v1431 = vpop.trf.xlu0
    %1432 = vxpose.xlu0.b32.start [1/16] %v310, 128
    %1433 = vxpose.xlu0.b32.cont [2/16] 0.0, 128
    %1434 = vxpose.xlu0.b32.cont [3/16] 0.0, 128
    %1435 = vxpose.xlu0.b32.cont [4/16] 0.0, 128
    %1436 = vxpose.xlu0.b32.cont [5/16] 0.0, 128
    %1437 = vxpose.xlu0.b32.cont [6/16] 0.0, 128
    %1438 = vxpose.xlu0.b32.cont [7/16] 0.0, 128
    %1439 = vxpose.xlu0.b32.cont [8/16] 0.0, 128
    %1440 = vxpose.xlu0.b32.cont [9/16] 0.0, 128
    %1441 = vxpose.xlu0.b32.cont [10/16] 0.0, 128
    %1442 = vxpose.xlu0.b32.cont [11/16] 0.0, 128
    %1443 = vxpose.xlu0.b32.cont [12/16] 0.0, 128
    %1444 = vxpose.xlu0.b32.cont [13/16] 0.0, 128
    %1445 = vxpose.xlu0.b32.cont [14/16] 0.0, 128
    %1446 = vxpose.xlu0.b32.cont [15/16] 0.0, 128
    %1447 = vxpose.xlu0.b32.end [16/16] 0.0, 128
    %v1448 = vpop.trf.xlu0
    %v1449 = vpop.trf.xlu0
    %v1450 = vpop.trf.xlu0
    %v1451 = vpop.trf.xlu0
    %v1452 = vpop.trf.xlu0
    %v1453 = vpop.trf.xlu0
    %v1454 = vpop.trf.xlu0
    %v1455 = vpop.trf.xlu0
    %v1456 = vpop.trf.xlu0
    %v1457 = vpop.trf.xlu0
    %v1458 = vpop.trf.xlu0
    %v1459 = vpop.trf.xlu0
    %v1460 = vpop.trf.xlu0
    %v1461 = vpop.trf.xlu0
    %v1462 = vpop.trf.xlu0
    %v1463 = vpop.trf.xlu0
    %v1464 = vrot.slane %v1288, 4
    %v1465 = vsel %vm143, %v1464, %v1224
    %v1466 = vrot.slane %v1224, 4
    %v1467 = vsel %vm143, %v1288, %v1466
    %v1469 = vunpack.c.l.s4 1983009808
    %v1470 = vunpack.c.0.s8 %v1469
    %v1471 = vperm.slane %v1465, %v1470
    %v1473 = vunpack.c.l.s4 1983009808
    %v1474 = vunpack.c.0.s8 %v1473
    %v1475 = vperm.slane %v1467, %v1474
    %v1476 = vrot.slane %v1320, 4
    %v1477 = vsel %vm143, %v1476, %v1256
    %v1478 = vrot.slane %v1256, 4
    %v1479 = vsel %vm143, %v1320, %v1478
    %v1481 = vunpack.c.l.s4 1983009808
    %v1482 = vunpack.c.0.s8 %v1481
    %v1483 = vperm.slane %v1477, %v1482
    %v1485 = vunpack.c.l.s4 1983009808
    %v1486 = vunpack.c.0.s8 %v1485
    %v1487 = vperm.slane %v1479, %v1486
    %v1488 = vrot.slane %v1416, 4
    %v1489 = vsel %vm143, %v1488, %v1352
    %v1490 = vrot.slane %v1352, 4
    %v1491 = vsel %vm143, %v1416, %v1490
    %v1493 = vunpack.c.l.s4 1983009808
    %v1494 = vunpack.c.0.s8 %v1493
    %v1495 = vperm.slane %v1489, %v1494
    %v1497 = vunpack.c.l.s4 1983009808
    %v1498 = vunpack.c.0.s8 %v1497
    %v1499 = vperm.slane %v1491, %v1498
    %v1500 = vrot.slane %v1448, 4
    %v1501 = vsel %vm143, %v1500, %v1384
    %v1502 = vrot.slane %v1384, 4
    %v1503 = vsel %vm143, %v1448, %v1502
    %v1505 = vunpack.c.l.s4 1983009808
    %v1506 = vunpack.c.0.s8 %v1505
    %v1507 = vperm.slane %v1501, %v1506
    %v1509 = vunpack.c.l.s4 1983009808
    %v1510 = vunpack.c.0.s8 %v1509
    %v1511 = vperm.slane %v1503, %v1510
    %v1512 = vrot.slane %v1483, 4
    %v1513 = vsel %vm143, %v1512, %v1471
    %v1514 = vrot.slane %v1471, 4
    %v1515 = vsel %vm143, %v1483, %v1514
    %v1517 = vunpack.c.l.s4 1934713408
    %v1518 = vunpack.c.0.s8 %v1517
    %v1519 = vperm.slane %v1513, %v1518
    %v1521 = vunpack.c.l.s4 1934713408
    %v1522 = vunpack.c.0.s8 %v1521
    %v1523 = vperm.slane %v1515, %v1522
    %v1524 = vrot.slane %v1487, 4
    %v1525 = vsel %vm143, %v1524, %v1475
    %v1526 = vrot.slane %v1475, 4
    %v1527 = vsel %vm143, %v1487, %v1526
    %v1529 = vunpack.c.l.s4 1934713408
    %v1530 = vunpack.c.0.s8 %v1529
    %v1531 = vperm.slane %v1525, %v1530
    %v1533 = vunpack.c.l.s4 1934713408
    %v1534 = vunpack.c.0.s8 %v1533
    %v1535 = vperm.slane %v1527, %v1534
    %v1536 = vrot.slane %v1507, 4
    %v1537 = vsel %vm143, %v1536, %v1495
    %v1538 = vrot.slane %v1495, 4
    %v1539 = vsel %vm143, %v1507, %v1538
    %v1541 = vunpack.c.l.s4 1934713408
    %v1542 = vunpack.c.0.s8 %v1541
    %v1543 = vperm.slane %v1537, %v1542
    %v1545 = vunpack.c.l.s4 1934713408
    %v1546 = vunpack.c.0.s8 %v1545
    %v1547 = vperm.slane %v1539, %v1546
    %v1548 = vrot.slane %v1511, 4
    %v1549 = vsel %vm143, %v1548, %v1499
    %v1550 = vrot.slane %v1499, 4
    %v1551 = vsel %vm143, %v1511, %v1550
    %v1553 = vunpack.c.l.s4 1934713408
    %v1554 = vunpack.c.0.s8 %v1553
    %v1555 = vperm.slane %v1549, %v1554
    %v1557 = vunpack.c.l.s4 1934713408
    %v1558 = vunpack.c.0.s8 %v1557
    %v1559 = vperm.slane %v1551, %v1558
    %v1560 = vrot.slane %v1543, 4
    %v1561 = vsel %vm143, %v1560, %v1519
    %v1562 = vrot.slane %v1519, 4
    %v1563 = vsel %vm143, %v1543, %v1562
    %v1564 = vrot.slane %v1547, 4
    %v1565 = vsel %vm143, %v1564, %v1523
    %v1566 = vrot.slane %v1523, 4
    %v1567 = vsel %vm143, %v1547, %v1566
    %v1568 = vrot.slane %v1555, 4
    %v1569 = vsel %vm143, %v1568, %v1531
    %v1570 = vrot.slane %v1531, 4
    %v1571 = vsel %vm143, %v1555, %v1570
    %v1572 = vrot.slane %v1559, 4
    %v1573 = vsel %vm143, %v1572, %v1535
    %v1574 = vrot.slane %v1535, 4
    %v1575 = vsel %vm143, %v1559, %v1574
    %1576 = vxpose.xlu0.b32.start [1/16] %v1561, 128
    %1577 = vxpose.xlu0.b32.cont [2/16] 0.0, 128
    %1578 = vxpose.xlu0.b32.cont [3/16] 0.0, 128
    %1579 = vxpose.xlu0.b32.cont [4/16] 0.0, 128
    %1580 = vxpose.xlu0.b32.cont [5/16] 0.0, 128
    %1581 = vxpose.xlu0.b32.cont [6/16] 0.0, 128
    %1582 = vxpose.xlu0.b32.cont [7/16] 0.0, 128
    %1583 = vxpose.xlu0.b32.cont [8/16] 0.0, 128
    %1584 = vxpose.xlu0.b32.cont [9/16] 0.0, 128
    %1585 = vxpose.xlu0.b32.cont [10/16] 0.0, 128
    %1586 = vxpose.xlu0.b32.cont [11/16] 0.0, 128
    %1587 = vxpose.xlu0.b32.cont [12/16] 0.0, 128
    %1588 = vxpose.xlu0.b32.cont [13/16] 0.0, 128
    %1589 = vxpose.xlu0.b32.cont [14/16] 0.0, 128
    %1590 = vxpose.xlu0.b32.cont [15/16] 0.0, 128
    %1591 = vxpose.xlu0.b32.end [16/16] 0.0, 128
    %v1592 = vpop.trf.xlu0
    %v1593 = vpop.trf.xlu0
    %v1594 = vpop.trf.xlu0
    %v1595 = vpop.trf.xlu0
    %v1596 = vpop.trf.xlu0
    %v1597 = vpop.trf.xlu0
    %v1598 = vpop.trf.xlu0
    %v1599 = vpop.trf.xlu0
    %v1600 = vpop.trf.xlu0
    %v1601 = vpop.trf.xlu0
    %v1602 = vpop.trf.xlu0
    %v1603 = vpop.trf.xlu0
    %v1604 = vpop.trf.xlu0
    %v1605 = vpop.trf.xlu0
    %v1606 = vpop.trf.xlu0
    %v1607 = vpop.trf.xlu0
    %1608 = vxpose.xlu0.b32.start [1/16] %v1563, 128
    %1609 = vxpose.xlu0.b32.cont [2/16] 0.0, 128
    %1610 = vxpose.xlu0.b32.cont [3/16] 0.0, 128
    %1611 = vxpose.xlu0.b32.cont [4/16] 0.0, 128
    %1612 = vxpose.xlu0.b32.cont [5/16] 0.0, 128
    %1613 = vxpose.xlu0.b32.cont [6/16] 0.0, 128
    %1614 = vxpose.xlu0.b32.cont [7/16] 0.0, 128
    %1615 = vxpose.xlu0.b32.cont [8/16] 0.0, 128
    %1616 = vxpose.xlu0.b32.cont [9/16] 0.0, 128
    %1617 = vxpose.xlu0.b32.cont [10/16] 0.0, 128
    %1618 = vxpose.xlu0.b32.cont [11/16] 0.0, 128
    %1619 = vxpose.xlu0.b32.cont [12/16] 0.0, 128
    %1620 = vxpose.xlu0.b32.cont [13/16] 0.0, 128
    %1621 = vxpose.xlu0.b32.cont [14/16] 0.0, 128
    %1622 = vxpose.xlu0.b32.cont [15/16] 0.0, 128
    %1623 = vxpose.xlu0.b32.end [16/16] 0.0, 128
    %v1624 = vpop.trf.xlu0
    %v1625 = vpop.trf.xlu0
    %v1626 = vpop.trf.xlu0
    %v1627 = vpop.trf.xlu0
    %v1628 = vpop.trf.xlu0
    %v1629 = vpop.trf.xlu0
    %v1630 = vpop.trf.xlu0
    %v1631 = vpop.trf.xlu0
    %v1632 = vpop.trf.xlu0
    %v1633 = vpop.trf.xlu0
    %v1634 = vpop.trf.xlu0
    %v1635 = vpop.trf.xlu0
    %v1636 = vpop.trf.xlu0
    %v1637 = vpop.trf.xlu0
    %v1638 = vpop.trf.xlu0
    %v1639 = vpop.trf.xlu0
    %1640 = vxpose.xlu0.b32.start [1/16] %v1565, 128
    %1641 = vxpose.xlu0.b32.cont [2/16] 0.0, 128
    %1642 = vxpose.xlu0.b32.cont [3/16] 0.0, 128
    %1643 = vxpose.xlu0.b32.cont [4/16] 0.0, 128
    %1644 = vxpose.xlu0.b32.cont [5/16] 0.0, 128
    %1645 = vxpose.xlu0.b32.cont [6/16] 0.0, 128
    %1646 = vxpose.xlu0.b32.cont [7/16] 0.0, 128
    %1647 = vxpose.xlu0.b32.cont [8/16] 0.0, 128
    %1648 = vxpose.xlu0.b32.cont [9/16] 0.0, 128
    %1649 = vxpose.xlu0.b32.cont [10/16] 0.0, 128
    %1650 = vxpose.xlu0.b32.cont [11/16] 0.0, 128
    %1651 = vxpose.xlu0.b32.cont [12/16] 0.0, 128
    %1652 = vxpose.xlu0.b32.cont [13/16] 0.0, 128
    %1653 = vxpose.xlu0.b32.cont [14/16] 0.0, 128
    %1654 = vxpose.xlu0.b32.cont [15/16] 0.0, 128
    %1655 = vxpose.xlu0.b32.end [16/16] 0.0, 128
    %v1656 = vpop.trf.xlu0
    %v1657 = vpop.trf.xlu0
    %v1658 = vpop.trf.xlu0
    %v1659 = vpop.trf.xlu0
    %v1660 = vpop.trf.xlu0
    %v1661 = vpop.trf.xlu0
    %v1662 = vpop.trf.xlu0
    %v1663 = vpop.trf.xlu0
    %v1664 = vpop.trf.xlu0
    %v1665 = vpop.trf.xlu0
    %v1666 = vpop.trf.xlu0
    %v1667 = vpop.trf.xlu0
    %v1668 = vpop.trf.xlu0
    %v1669 = vpop.trf.xlu0
    %v1670 = vpop.trf.xlu0
    %v1671 = vpop.trf.xlu0
    %1672 = vxpose.xlu0.b32.start [1/16] %v1567, 128
    %1673 = vxpose.xlu0.b32.cont [2/16] 0.0, 128
    %1674 = vxpose.xlu0.b32.cont [3/16] 0.0, 128
    %1675 = vxpose.xlu0.b32.cont [4/16] 0.0, 128
    %1676 = vxpose.xlu0.b32.cont [5/16] 0.0, 128
    %1677 = vxpose.xlu0.b32.cont [6/16] 0.0, 128
    %1678 = vxpose.xlu0.b32.cont [7/16] 0.0, 128
    %1679 = vxpose.xlu0.b32.cont [8/16] 0.0, 128
    %1680 = vxpose.xlu0.b32.cont [9/16] 0.0, 128
    %1681 = vxpose.xlu0.b32.cont [10/16] 0.0, 128
    %1682 = vxpose.xlu0.b32.cont [11/16] 0.0, 128
    %1683 = vxpose.xlu0.b32.cont [12/16] 0.0, 128
    %1684 = vxpose.xlu0.b32.cont [13/16] 0.0, 128
    %1685 = vxpose.xlu0.b32.cont [14/16] 0.0, 128
    %1686 = vxpose.xlu0.b32.cont [15/16] 0.0, 128
    %1687 = vxpose.xlu0.b32.end [16/16] 0.0, 128
    %v1688 = vpop.trf.xlu0
    %v1689 = vpop.trf.xlu0
    %v1690 = vpop.trf.xlu0
    %v1691 = vpop.trf.xlu0
    %v1692 = vpop.trf.xlu0
    %v1693 = vpop.trf.xlu0
    %v1694 = vpop.trf.xlu0
    %v1695 = vpop.trf.xlu0
    %v1696 = vpop.trf.xlu0
    %v1697 = vpop.trf.xlu0
    %v1698 = vpop.trf.xlu0
    %v1699 = vpop.trf.xlu0
    %v1700 = vpop.trf.xlu0
    %v1701 = vpop.trf.xlu0
    %v1702 = vpop.trf.xlu0
    %v1703 = vpop.trf.xlu0
    %1704 = vxpose.xlu0.b32.start [1/16] %v1569, 128
    %1705 = vxpose.xlu0.b32.cont [2/16] 0.0, 128
    %1706 = vxpose.xlu0.b32.cont [3/16] 0.0, 128
    %1707 = vxpose.xlu0.b32.cont [4/16] 0.0, 128
    %1708 = vxpose.xlu0.b32.cont [5/16] 0.0, 128
    %1709 = vxpose.xlu0.b32.cont [6/16] 0.0, 128
    %1710 = vxpose.xlu0.b32.cont [7/16] 0.0, 128
    %1711 = vxpose.xlu0.b32.cont [8/16] 0.0, 128
    %1712 = vxpose.xlu0.b32.cont [9/16] 0.0, 128
    %1713 = vxpose.xlu0.b32.cont [10/16] 0.0, 128
    %1714 = vxpose.xlu0.b32.cont [11/16] 0.0, 128
    %1715 = vxpose.xlu0.b32.cont [12/16] 0.0, 128
    %1716 = vxpose.xlu0.b32.cont [13/16] 0.0, 128
    %1717 = vxpose.xlu0.b32.cont [14/16] 0.0, 128
    %1718 = vxpose.xlu0.b32.cont [15/16] 0.0, 128
    %1719 = vxpose.xlu0.b32.end [16/16] 0.0, 128
    %v1720 = vpop.trf.xlu0
    %v1721 = vpop.trf.xlu0
    %v1722 = vpop.trf.xlu0
    %v1723 = vpop.trf.xlu0
    %v1724 = vpop.trf.xlu0
    %v1725 = vpop.trf.xlu0
    %v1726 = vpop.trf.xlu0
    %v1727 = vpop.trf.xlu0
    %v1728 = vpop.trf.xlu0
    %v1729 = vpop.trf.xlu0
    %v1730 = vpop.trf.xlu0
    %v1731 = vpop.trf.xlu0
    %v1732 = vpop.trf.xlu0
    %v1733 = vpop.trf.xlu0
    %v1734 = vpop.trf.xlu0
    %v1735 = vpop.trf.xlu0
    %1736 = vxpose.xlu0.b32.start [1/16] %v1571, 128
    %1737 = vxpose.xlu0.b32.cont [2/16] 0.0, 128
    %1738 = vxpose.xlu0.b32.cont [3/16] 0.0, 128
    %1739 = vxpose.xlu0.b32.cont [4/16] 0.0, 128
    %1740 = vxpose.xlu0.b32.cont [5/16] 0.0, 128
    %1741 = vxpose.xlu0.b32.cont [6/16] 0.0, 128
    %1742 = vxpose.xlu0.b32.cont [7/16] 0.0, 128
    %1743 = vxpose.xlu0.b32.cont [8/16] 0.0, 128
    %1744 = vxpose.xlu0.b32.cont [9/16] 0.0, 128
    %1745 = vxpose.xlu0.b32.cont [10/16] 0.0, 128
    %1746 = vxpose.xlu0.b32.cont [11/16] 0.0, 128
    %1747 = vxpose.xlu0.b32.cont [12/16] 0.0, 128
    %1748 = vxpose.xlu0.b32.cont [13/16] 0.0, 128
    %1749 = vxpose.xlu0.b32.cont [14/16] 0.0, 128
    %1750 = vxpose.xlu0.b32.cont [15/16] 0.0, 128
    %1751 = vxpose.xlu0.b32.end [16/16] 0.0, 128
    %v1752 = vpop.trf.xlu0
    %v1753 = vpop.trf.xlu0
    %v1754 = vpop.trf.xlu0
    %v1755 = vpop.trf.xlu0
    %v1756 = vpop.trf.xlu0
    %v1757 = vpop.trf.xlu0
    %v1758 = vpop.trf.xlu0
    %v1759 = vpop.trf.xlu0
    %v1760 = vpop.trf.xlu0
    %v1761 = vpop.trf.xlu0
    %v1762 = vpop.trf.xlu0
    %v1763 = vpop.trf.xlu0
    %v1764 = vpop.trf.xlu0
    %v1765 = vpop.trf.xlu0
    %v1766 = vpop.trf.xlu0
    %v1767 = vpop.trf.xlu0
    %1768 = vxpose.xlu0.b32.start [1/16] %v1573, 128
    %1769 = vxpose.xlu0.b32.cont [2/16] 0.0, 128
    %1770 = vxpose.xlu0.b32.cont [3/16] 0.0, 128
    %1771 = vxpose.xlu0.b32.cont [4/16] 0.0, 128
    %1772 = vxpose.xlu0.b32.cont [5/16] 0.0, 128
    %1773 = vxpose.xlu0.b32.cont [6/16] 0.0, 128
    %1774 = vxpose.xlu0.b32.cont [7/16] 0.0, 128
    %1775 = vxpose.xlu0.b32.cont [8/16] 0.0, 128
    %1776 = vxpose.xlu0.b32.cont [9/16] 0.0, 128
    %1777 = vxpose.xlu0.b32.cont [10/16] 0.0, 128
    %1778 = vxpose.xlu0.b32.cont [11/16] 0.0, 128
    %1779 = vxpose.xlu0.b32.cont [12/16] 0.0, 128
    %1780 = vxpose.xlu0.b32.cont [13/16] 0.0, 128
    %1781 = vxpose.xlu0.b32.cont [14/16] 0.0, 128
    %1782 = vxpose.xlu0.b32.cont [15/16] 0.0, 128
    %1783 = vxpose.xlu0.b32.end [16/16] 0.0, 128
    %v1784 = vpop.trf.xlu0
    %v1785 = vpop.trf.xlu0
    %v1786 = vpop.trf.xlu0
    %v1787 = vpop.trf.xlu0
    %v1788 = vpop.trf.xlu0
    %v1789 = vpop.trf.xlu0
    %v1790 = vpop.trf.xlu0
    %v1791 = vpop.trf.xlu0
    %v1792 = vpop.trf.xlu0
    %v1793 = vpop.trf.xlu0
    %v1794 = vpop.trf.xlu0
    %v1795 = vpop.trf.xlu0
    %v1796 = vpop.trf.xlu0
    %v1797 = vpop.trf.xlu0
    %v1798 = vpop.trf.xlu0
    %v1799 = vpop.trf.xlu0
    %1800 = vxpose.xlu0.b32.start [1/16] %v1575, 128
    %1801 = vxpose.xlu0.b32.cont [2/16] 0.0, 128
    %1802 = vxpose.xlu0.b32.cont [3/16] 0.0, 128
    %1803 = vxpose.xlu0.b32.cont [4/16] 0.0, 128
    %1804 = vxpose.xlu0.b32.cont [5/16] 0.0, 128
    %1805 = vxpose.xlu0.b32.cont [6/16] 0.0, 128
    %1806 = vxpose.xlu0.b32.cont [7/16] 0.0, 128
    %1807 = vxpose.xlu0.b32.cont [8/16] 0.0, 128
    %1808 = vxpose.xlu0.b32.cont [9/16] 0.0, 128
    %1809 = vxpose.xlu0.b32.cont [10/16] 0.0, 128
    %1810 = vxpose.xlu0.b32.cont [11/16] 0.0, 128
    %1811 = vxpose.xlu0.b32.cont [12/16] 0.0, 128
    %1812 = vxpose.xlu0.b32.cont [13/16] 0.0, 128
    %1813 = vxpose.xlu0.b32.cont [14/16] 0.0, 128
    %1814 = vxpose.xlu0.b32.cont [15/16] 0.0, 128
    %1815 = vxpose.xlu0.b32.end [16/16] 0.0, 128
    %v1816 = vpop.trf.xlu0
    %v1817 = vpop.trf.xlu0
    %v1818 = vpop.trf.xlu0
    %v1819 = vpop.trf.xlu0
    %v1820 = vpop.trf.xlu0
    %v1821 = vpop.trf.xlu0
    %v1822 = vpop.trf.xlu0
    %v1823 = vpop.trf.xlu0
    %v1824 = vpop.trf.xlu0
    %v1825 = vpop.trf.xlu0
    %v1826 = vpop.trf.xlu0
    %v1827 = vpop.trf.xlu0
    %v1828 = vpop.trf.xlu0
    %v1829 = vpop.trf.xlu0
    %v1830 = vpop.trf.xlu0
    %v1831 = vpop.trf.xlu0
    %v1832 = vrot.slane %v1656, 4
    %v1833 = vsel %vm143, %v1832, %v1592
    %v1835 = vunpack.c.l.s4 1983009808
    %v1836 = vunpack.c.0.s8 %v1835
    %v1837 = vperm.slane %v1833, %v1836
    %v1838 = vrot.slane %v1688, 4
    %v1839 = vsel %vm143, %v1838, %v1624
    %v1841 = vunpack.c.l.s4 1983009808
    %v1842 = vunpack.c.0.s8 %v1841
    %v1843 = vperm.slane %v1839, %v1842
    %v1844 = vrot.slane %v1784, 4
    %v1845 = vsel %vm143, %v1844, %v1720
    %v1847 = vunpack.c.l.s4 1983009808
    %v1848 = vunpack.c.0.s8 %v1847
    %v1849 = vperm.slane %v1845, %v1848
    %v1850 = vrot.slane %v1816, 4
    %v1851 = vsel %vm143, %v1850, %v1752
    %v1853 = vunpack.c.l.s4 1983009808
    %v1854 = vunpack.c.0.s8 %v1853
    %v1855 = vperm.slane %v1851, %v1854
    %v1856 = vrot.slane %v1843, 4
    %v1857 = vsel %vm143, %v1856, %v1837
    %v1858 = vrot.slane %v1837, 4
    %v1859 = vsel %vm143, %v1843, %v1858
    %v1861 = vunpack.c.l.s4 1934713408
    %v1862 = vunpack.c.0.s8 %v1861
    %v1863 = vperm.slane %v1857, %v1862
    %v1865 = vunpack.c.l.s4 1934713408
    %v1866 = vunpack.c.0.s8 %v1865
    %v1867 = vperm.slane %v1859, %v1866
    %v1868 = vrot.slane %v1855, 4
    %v1869 = vsel %vm143, %v1868, %v1849
    %v1870 = vrot.slane %v1849, 4
    %v1871 = vsel %vm143, %v1855, %v1870
    %v1873 = vunpack.c.l.s4 1934713408
    %v1874 = vunpack.c.0.s8 %v1873
    %v1875 = vperm.slane %v1869, %v1874
    %v1877 = vunpack.c.l.s4 1934713408
    %v1878 = vunpack.c.0.s8 %v1877
    %v1879 = vperm.slane %v1871, %v1878
    %v1880 = vrot.slane %v1875, 4
    %v1881 = vsel %vm143, %v1880, %v1863
    %v1882 = vrot.slane %v1863, 4
    %v1883 = vsel %vm143, %v1875, %v1882
    %v1884 = vrot.slane %v1879, 4
    %v1885 = vsel %vm143, %v1884, %v1867
    %v1886 = vrot.slane %v1867, 4
    %v1887 = vsel %vm143, %v1879, %v1886
    %v1889 = vsel %vm1071, %v1881, 0
    %v1892 = vsel %vm1071, %v1204, 0
    %1894 = vmatpush.xpose.msra.mxu0 0.0
    %1895 = vmatpush.xpose.msra.mxu0 0.0
    %1896 = vmatpush.xpose.msra.mxu0 0.0
    %1897 = vmatpush.xpose.msra.mxu0 0.0
    %1898 = vmatpush.xpose.msra.mxu0 0.0
    %1899 = vmatpush.xpose.msra.mxu0 0.0
    %1900 = vmatpush.xpose.msra.mxu0 0.0
    %1901 = vmatpush.xpose.msra.mxu0 0.0
    %1902 = vmatpush.xpose.msra.mxu0 0.0
    %1903 = vmatpush.xpose.msra.mxu0 0.0
    %1904 = vmatpush.xpose.msra.mxu0 0.0
    %1905 = vmatpush.xpose.msra.mxu0 0.0
    %1906 = vmatpush.xpose.msra.mxu0 0.0
    %1907 = vmatpush.xpose.msra.mxu0 0.0
    %1908 = vmatpush.xpose.msra.mxu0 0.0
    %1909 = vmatpush.xpose.msra.mxu0 %v1892
    %1910 = vmatmul.f32.gmra.mxu0 %v1889
    %v1911 = vpop.f32.mrf.mxu0
    %v1912 = vadd.f32 0.0, %v1911
    %1913 = vdwg.mxu0
    %v1915 = vsel %vm1071, %v1883, 0
    %v1918 = vsel %vm1071, %v1205, 0
    %1920 = vmatpush.xpose.msra.mxu0 0.0
    %1921 = vmatpush.xpose.msra.mxu0 0.0
    %1922 = vmatpush.xpose.msra.mxu0 0.0
    %1923 = vmatpush.xpose.msra.mxu0 0.0
    %1924 = vmatpush.xpose.msra.mxu0 0.0
    %1925 = vmatpush.xpose.msra.mxu0 0.0
    %1926 = vmatpush.xpose.msra.mxu0 0.0
    %1927 = vmatpush.xpose.msra.mxu0 0.0
    %1928 = vmatpush.xpose.msra.mxu0 0.0
    %1929 = vmatpush.xpose.msra.mxu0 0.0
    %1930 = vmatpush.xpose.msra.mxu0 0.0
    %1931 = vmatpush.xpose.msra.mxu0 0.0
    %1932 = vmatpush.xpose.msra.mxu0 0.0
    %1933 = vmatpush.xpose.msra.mxu0 0.0
    %1934 = vmatpush.xpose.msra.mxu0 0.0
    %1935 = vmatpush.xpose.msra.mxu0 %v1918
    %1936 = vmatmul.f32.gmra.mxu0 %v1915
    %v1937 = vpop.f32.mrf.mxu0
    %v1938 = vadd.f32 0.0, %v1937
    %1939 = vdwg.mxu0
    %v1941 = vsel %vm1071, %v1885, 0
    %v1944 = vsel %vm1071, %v1206, 0
    %1946 = vmatpush.xpose.msra.mxu0 0.0
    %1947 = vmatpush.xpose.msra.mxu0 0.0
    %1948 = vmatpush.xpose.msra.mxu0 0.0
    %1949 = vmatpush.xpose.msra.mxu0 0.0
    %1950 = vmatpush.xpose.msra.mxu0 0.0
    %1951 = vmatpush.xpose.msra.mxu0 0.0
    %1952 = vmatpush.xpose.msra.mxu0 0.0
    %1953 = vmatpush.xpose.msra.mxu0 0.0
    %1954 = vmatpush.xpose.msra.mxu0 0.0
    %1955 = vmatpush.xpose.msra.mxu0 0.0
    %1956 = vmatpush.xpose.msra.mxu0 0.0
    %1957 = vmatpush.xpose.msra.mxu0 0.0
    %1958 = vmatpush.xpose.msra.mxu0 0.0
    %1959 = vmatpush.xpose.msra.mxu0 0.0
    %1960 = vmatpush.xpose.msra.mxu0 0.0
    %1961 = vmatpush.xpose.msra.mxu0 %v1944
    %1962 = vmatmul.f32.gmra.mxu0 %v1941
    %v1963 = vpop.f32.mrf.mxu0
    %v1964 = vadd.f32 0.0, %v1963
    %1965 = vdwg.mxu0
    %v1967 = vsel %vm1071, %v1887, 0
    %v1970 = vsel %vm1071, %v1207, 0
    %1972 = vmatpush.xpose.msra.mxu0 0.0
    %1973 = vmatpush.xpose.msra.mxu0 0.0
    %1974 = vmatpush.xpose.msra.mxu0 0.0
    %1975 = vmatpush.xpose.msra.mxu0 0.0
    %1976 = vmatpush.xpose.msra.mxu0 0.0
    %1977 = vmatpush.xpose.msra.mxu0 0.0
    %1978 = vmatpush.xpose.msra.mxu0 0.0
    %1979 = vmatpush.xpose.msra.mxu0 0.0
    %1980 = vmatpush.xpose.msra.mxu0 0.0
    %1981 = vmatpush.xpose.msra.mxu0 0.0
    %1982 = vmatpush.xpose.msra.mxu0 0.0
    %1983 = vmatpush.xpose.msra.mxu0 0.0
    %1984 = vmatpush.xpose.msra.mxu0 0.0
    %1985 = vmatpush.xpose.msra.mxu0 0.0
    %1986 = vmatpush.xpose.msra.mxu0 0.0
    %1987 = vmatpush.xpose.msra.mxu0 %v1970
    %1988 = vmatmul.f32.gmra.mxu0 %v1967
    %v1989 = vpop.f32.mrf.mxu0
    %v1990 = vadd.f32 0.0, %v1989
    %1991 = vdwg.mxu0
    %1992 = vxpose.xlu0.b32.start [1/16] %v1912, 128
    %1993 = vxpose.xlu0.b32.cont [2/16] 0.0, 128
    %1994 = vxpose.xlu0.b32.cont [3/16] 0.0, 128
    %1995 = vxpose.xlu0.b32.cont [4/16] 0.0, 128
    %1996 = vxpose.xlu0.b32.cont [5/16] 0.0, 128
    %1997 = vxpose.xlu0.b32.cont [6/16] 0.0, 128
    %1998 = vxpose.xlu0.b32.cont [7/16] 0.0, 128
    %1999 = vxpose.xlu0.b32.cont [8/16] 0.0, 128
    %2000 = vxpose.xlu0.b32.cont [9/16] 0.0, 128
    %2001 = vxpose.xlu0.b32.cont [10/16] 0.0, 128
    %2002 = vxpose.xlu0.b32.cont [11/16] 0.0, 128
    %2003 = vxpose.xlu0.b32.cont [12/16] 0.0, 128
    %2004 = vxpose.xlu0.b32.cont [13/16] 0.0, 128
    %2005 = vxpose.xlu0.b32.cont [14/16] 0.0, 128
    %2006 = vxpose.xlu0.b32.cont [15/16] 0.0, 128
    %2007 = vxpose.xlu0.b32.end [16/16] 0.0, 128
    %v2008 = vpop.trf.xlu0
    %v2009 = vpop.trf.xlu0
    %v2010 = vpop.trf.xlu0
    %v2011 = vpop.trf.xlu0
    %v2012 = vpop.trf.xlu0
    %v2013 = vpop.trf.xlu0
    %v2014 = vpop.trf.xlu0
    %v2015 = vpop.trf.xlu0
    %v2016 = vpop.trf.xlu0
    %v2017 = vpop.trf.xlu0
    %v2018 = vpop.trf.xlu0
    %v2019 = vpop.trf.xlu0
    %v2020 = vpop.trf.xlu0
    %v2021 = vpop.trf.xlu0
    %v2022 = vpop.trf.xlu0
    %v2023 = vpop.trf.xlu0
    %2024 = vxpose.xlu0.b32.start [1/16] %v1938, 128
    %2025 = vxpose.xlu0.b32.cont [2/16] 0.0, 128
    %2026 = vxpose.xlu0.b32.cont [3/16] 0.0, 128
    %2027 = vxpose.xlu0.b32.cont [4/16] 0.0, 128
    %2028 = vxpose.xlu0.b32.cont [5/16] 0.0, 128
    %2029 = vxpose.xlu0.b32.cont [6/16] 0.0, 128
    %2030 = vxpose.xlu0.b32.cont [7/16] 0.0, 128
    %2031 = vxpose.xlu0.b32.cont [8/16] 0.0, 128
    %2032 = vxpose.xlu0.b32.cont [9/16] 0.0, 128
    %2033 = vxpose.xlu0.b32.cont [10/16] 0.0, 128
    %2034 = vxpose.xlu0.b32.cont [11/16] 0.0, 128
    %2035 = vxpose.xlu0.b32.cont [12/16] 0.0, 128
    %2036 = vxpose.xlu0.b32.cont [13/16] 0.0, 128
    %2037 = vxpose.xlu0.b32.cont [14/16] 0.0, 128
    %2038 = vxpose.xlu0.b32.cont [15/16] 0.0, 128
    %2039 = vxpose.xlu0.b32.end [16/16] 0.0, 128
    %v2040 = vpop.trf.xlu0
    %v2041 = vpop.trf.xlu0
    %v2042 = vpop.trf.xlu0
    %v2043 = vpop.trf.xlu0
    %v2044 = vpop.trf.xlu0
    %v2045 = vpop.trf.xlu0
    %v2046 = vpop.trf.xlu0
    %v2047 = vpop.trf.xlu0
    %v2048 = vpop.trf.xlu0
    %v2049 = vpop.trf.xlu0
    %v2050 = vpop.trf.xlu0
    %v2051 = vpop.trf.xlu0
    %v2052 = vpop.trf.xlu0
    %v2053 = vpop.trf.xlu0
    %v2054 = vpop.trf.xlu0
    %v2055 = vpop.trf.xlu0
    %2056 = vxpose.xlu0.b32.start [1/16] %v1964, 128
    %2057 = vxpose.xlu0.b32.cont [2/16] 0.0, 128
    %2058 = vxpose.xlu0.b32.cont [3/16] 0.0, 128
    %2059 = vxpose.xlu0.b32.cont [4/16] 0.0, 128
    %2060 = vxpose.xlu0.b32.cont [5/16] 0.0, 128
    %2061 = vxpose.xlu0.b32.cont [6/16] 0.0, 128
    %2062 = vxpose.xlu0.b32.cont [7/16] 0.0, 128
    %2063 = vxpose.xlu0.b32.cont [8/16] 0.0, 128
    %2064 = vxpose.xlu0.b32.cont [9/16] 0.0, 128
    %2065 = vxpose.xlu0.b32.cont [10/16] 0.0, 128
    %2066 = vxpose.xlu0.b32.cont [11/16] 0.0, 128
    %2067 = vxpose.xlu0.b32.cont [12/16] 0.0, 128
    %2068 = vxpose.xlu0.b32.cont [13/16] 0.0, 128
    %2069 = vxpose.xlu0.b32.cont [14/16] 0.0, 128
    %2070 = vxpose.xlu0.b32.cont [15/16] 0.0, 128
    %2071 = vxpose.xlu0.b32.end [16/16] 0.0, 128
    %v2072 = vpop.trf.xlu0
    %v2073 = vpop.trf.xlu0
    %v2074 = vpop.trf.xlu0
    %v2075 = vpop.trf.xlu0
    %v2076 = vpop.trf.xlu0
    %v2077 = vpop.trf.xlu0
    %v2078 = vpop.trf.xlu0
    %v2079 = vpop.trf.xlu0
    %v2080 = vpop.trf.xlu0
    %v2081 = vpop.trf.xlu0
    %v2082 = vpop.trf.xlu0
    %v2083 = vpop.trf.xlu0
    %v2084 = vpop.trf.xlu0
    %v2085 = vpop.trf.xlu0
    %v2086 = vpop.trf.xlu0
    %v2087 = vpop.trf.xlu0
    %2088 = vxpose.xlu0.b32.start [1/16] %v1990, 128
    %2089 = vxpose.xlu0.b32.cont [2/16] 0.0, 128
    %2090 = vxpose.xlu0.b32.cont [3/16] 0.0, 128
    %2091 = vxpose.xlu0.b32.cont [4/16] 0.0, 128
    %2092 = vxpose.xlu0.b32.cont [5/16] 0.0, 128
    %2093 = vxpose.xlu0.b32.cont [6/16] 0.0, 128
    %2094 = vxpose.xlu0.b32.cont [7/16] 0.0, 128
    %2095 = vxpose.xlu0.b32.cont [8/16] 0.0, 128
    %2096 = vxpose.xlu0.b32.cont [9/16] 0.0, 128
    %2097 = vxpose.xlu0.b32.cont [10/16] 0.0, 128
    %2098 = vxpose.xlu0.b32.cont [11/16] 0.0, 128
    %2099 = vxpose.xlu0.b32.cont [12/16] 0.0, 128
    %2100 = vxpose.xlu0.b32.cont [13/16] 0.0, 128
    %2101 = vxpose.xlu0.b32.cont [14/16] 0.0, 128
    %2102 = vxpose.xlu0.b32.cont [15/16] 0.0, 128
    %2103 = vxpose.xlu0.b32.end [16/16] 0.0, 128
    %v2104 = vpop.trf.xlu0
    %v2105 = vpop.trf.xlu0
    %v2106 = vpop.trf.xlu0
    %v2107 = vpop.trf.xlu0
    %v2108 = vpop.trf.xlu0
    %v2109 = vpop.trf.xlu0
    %v2110 = vpop.trf.xlu0
    %v2111 = vpop.trf.xlu0
    %v2112 = vpop.trf.xlu0
    %v2113 = vpop.trf.xlu0
    %v2114 = vpop.trf.xlu0
    %v2115 = vpop.trf.xlu0
    %v2116 = vpop.trf.xlu0
    %v2117 = vpop.trf.xlu0
    %v2118 = vpop.trf.xlu0
    %v2119 = vpop.trf.xlu0
    %v2120 = vrot.slane %v2072, 4
    %v2121 = vsel %vm143, %v2120, %v2008
    %v2122 = vrot.slane %v2008, 4
    %v2123 = vsel %vm143, %v2072, %v2122
    %v2125 = vunpack.c.l.s4 1983009808
    %v2126 = vunpack.c.0.s8 %v2125
    %v2127 = vperm.slane %v2121, %v2126
    %v2129 = vunpack.c.l.s4 1983009808
    %v2130 = vunpack.c.0.s8 %v2129
    %v2131 = vperm.slane %v2123, %v2130
    %v2132 = vrot.slane %v2104, 4
    %v2133 = vsel %vm143, %v2132, %v2040
    %v2134 = vrot.slane %v2040, 4
    %v2135 = vsel %vm143, %v2104, %v2134
    %v2137 = vunpack.c.l.s4 1983009808
    %v2138 = vunpack.c.0.s8 %v2137
    %v2139 = vperm.slane %v2133, %v2138
    %v2141 = vunpack.c.l.s4 1983009808
    %v2142 = vunpack.c.0.s8 %v2141
    %v2143 = vperm.slane %v2135, %v2142
    %v2144 = vrot.slane %v2139, 4
    %v2145 = vsel %vm143, %v2144, %v2127
    %v2146 = vrot.slane %v2127, 4
    %v2147 = vsel %vm143, %v2139, %v2146
    %v2149 = vunpack.c.l.s4 1934713408
    %v2150 = vunpack.c.0.s8 %v2149
    %v2151 = vperm.slane %v2145, %v2150
    %v2153 = vunpack.c.l.s4 1934713408
    %v2154 = vunpack.c.0.s8 %v2153
    %v2155 = vperm.slane %v2147, %v2154
    %v2156 = vrot.slane %v2143, 4
    %v2157 = vsel %vm143, %v2156, %v2131
    %v2158 = vrot.slane %v2131, 4
    %v2159 = vsel %vm143, %v2143, %v2158
    %v2161 = vunpack.c.l.s4 1934713408
    %v2162 = vunpack.c.0.s8 %v2161
    %v2163 = vperm.slane %v2157, %v2162
    %v2165 = vunpack.c.l.s4 1934713408
    %v2166 = vunpack.c.0.s8 %v2165
    %v2167 = vperm.slane %v2159, %v2166
    %v2168 = vrot.slane %v2151, 4
    %v2169 = vsel %vm143, 0.0, %v2168
    %v2170 = vrot.slane %v2155, 4
    %v2171 = vsel %vm143, 0.0, %v2170
    %v2172 = vrot.slane %v2163, 4
    %v2173 = vsel %vm143, 0.0, %v2172
    %v2174 = vrot.slane %v2167, 4
    %v2175 = vsel %vm143, 0.0, %v2174
    %v2176 = vsel %vm143, %v2170, %v2151
    %v2178 = vunpack.c.l.s4 1983009808
    %v2179 = vunpack.c.0.s8 %v2178
    %v2180 = vperm.slane %v2176, %v2179
    %v2181 = vrot.slane %v2171, 4
    %v2182 = vsel %vm143, %v2181, %v2169
    %v2184 = vunpack.c.l.s4 1983009808
    %v2185 = vunpack.c.0.s8 %v2184
    %v2186 = vperm.slane %v2182, %v2185
    %v2187 = vsel %vm143, %v2174, %v2163
    %v2189 = vunpack.c.l.s4 1983009808
    %v2190 = vunpack.c.0.s8 %v2189
    %v2191 = vperm.slane %v2187, %v2190
    %v2192 = vrot.slane %v2175, 4
    %v2193 = vsel %vm143, %v2192, %v2173
    %v2195 = vunpack.c.l.s4 1983009808
    %v2196 = vunpack.c.0.s8 %v2195
    %v2197 = vperm.slane %v2193, %v2196
    %v2198 = vrot.slane %v2186, 4
    %v2199 = vsel %vm143, %v2198, %v2180
    %v2200 = vrot.slane %v2180, 4
    %v2201 = vsel %vm143, %v2186, %v2200
    %v2203 = vunpack.c.l.s4 1934713408
    %v2204 = vunpack.c.0.s8 %v2203
    %v2205 = vperm.slane %v2199, %v2204
    %v2207 = vunpack.c.l.s4 1934713408
    %v2208 = vunpack.c.0.s8 %v2207
    %v2209 = vperm.slane %v2201, %v2208
    %v2210 = vrot.slane %v2197, 4
    %v2211 = vsel %vm143, %v2210, %v2191
    %v2212 = vrot.slane %v2191, 4
    %v2213 = vsel %vm143, %v2197, %v2212
    %v2215 = vunpack.c.l.s4 1934713408
    %v2216 = vunpack.c.0.s8 %v2215
    %v2217 = vperm.slane %v2211, %v2216
    %v2219 = vunpack.c.l.s4 1934713408
    %v2220 = vunpack.c.0.s8 %v2219
    %v2221 = vperm.slane %v2213, %v2220
    %v2222 = vrot.slane %v2217, 4
    %v2223 = vsel %vm143, %v2222, %v2205
    %v2224 = vrot.slane %v2205, 4
    %v2225 = vsel %vm143, %v2217, %v2224
    %v2226 = vrot.slane %v2221, 4
    %v2227 = vsel %vm143, %v2226, %v2209
    %v2228 = vrot.slane %v2209, 4
    %v2229 = vsel %vm143, %v2221, %v2228
    %2231 = vrot.lane.b32.xlu0 %v2225, 8
    %v2232 = vpop.permute.xlu0 %2231
    %2235 = vrot.lane.b32.xlu0 %v2227, 16
    %v2236 = vpop.permute.xlu0 %2235
    %2239 = vrot.lane.b32.xlu0 %v2229, 24
    %v2240 = vpop.permute.xlu0 %2239
    %v2242 = vsel %vm1071, %v2223, %v2232
    %vm2243 = vcmask 130048
    %v2244 = vsel %vm2243, %v2242, %v2236
    %vm2245 = vcmask 195584
    %v2246 = vsel %vm2245, %v2244, %v2240
    %2248 = vrot.lane.b32.xlu0 %v106, 120
    %v2249 = vpop.permute.xlu0 %2248
    %2251 = vrot.lane.b32.xlu0 %v106, 112
    %v2252 = vpop.permute.xlu0 %2251
    %2254 = vrot.lane.b32.xlu0 %v106, 104
    %v2255 = vpop.permute.xlu0 %2254
    %2257 = vrot.lane.b32.xlu0 %v106, 96
    %v2258 = vpop.permute.xlu0 %2257
    %2260 = vrot.lane.b32.xlu0 %v106, 88
    %v2261 = vpop.permute.xlu0 %2260
    %2263 = vrot.lane.b32.xlu0 %v106, 80
    %v2264 = vpop.permute.xlu0 %2263
    %2266 = vrot.lane.b32.xlu0 %v106, 72
    %v2267 = vpop.permute.xlu0 %2266
    %2269 = vrot.lane.b32.xlu0 %v106, 64
    %v2270 = vpop.permute.xlu0 %2269
    %2272 = vrot.lane.b32.xlu0 %v106, 56
    %v2273 = vpop.permute.xlu0 %2272
    %2275 = vrot.lane.b32.xlu0 %v106, 48
    %v2276 = vpop.permute.xlu0 %2275
    %2278 = vrot.lane.b32.xlu0 %v106, 40
    %v2279 = vpop.permute.xlu0 %2278
    %v2281 = vrot.slane %v2252, 4
    %v2282 = vsel %vm143, %v2281, %v106
    %v2283 = vrot.slane %v106, 4
    %v2284 = vsel %vm143, %v2252, %v2283
    %v2286 = vunpack.c.l.s4 1983009808
    %v2287 = vunpack.c.0.s8 %v2286
    %v2288 = vperm.slane %v2282, %v2287
    %v2290 = vunpack.c.l.s4 1983009808
    %v2291 = vunpack.c.0.s8 %v2290
    %v2292 = vperm.slane %v2284, %v2291
    %v2293 = vrot.slane %v2255, 4
    %v2294 = vsel %vm143, %v2293, %v2249
    %v2295 = vrot.slane %v2249, 4
    %v2296 = vsel %vm143, %v2255, %v2295
    %v2298 = vunpack.c.l.s4 1983009808
    %v2299 = vunpack.c.0.s8 %v2298
    %v2300 = vperm.slane %v2294, %v2299
    %v2302 = vunpack.c.l.s4 1983009808
    %v2303 = vunpack.c.0.s8 %v2302
    %v2304 = vperm.slane %v2296, %v2303
    %v2305 = vrot.slane %v2264, 4
    %v2306 = vsel %vm143, %v2305, %v2258
    %v2307 = vrot.slane %v2258, 4
    %v2308 = vsel %vm143, %v2264, %v2307
    %v2310 = vunpack.c.l.s4 1983009808
    %v2311 = vunpack.c.0.s8 %v2310
    %v2312 = vperm.slane %v2306, %v2311
    %v2314 = vunpack.c.l.s4 1983009808
    %v2315 = vunpack.c.0.s8 %v2314
    %v2316 = vperm.slane %v2308, %v2315
    %v2317 = vrot.slane %v2267, 4
    %v2318 = vsel %vm143, %v2317, %v2261
    %v2319 = vrot.slane %v2261, 4
    %v2320 = vsel %vm143, %v2267, %v2319
    %v2322 = vunpack.c.l.s4 1983009808
    %v2323 = vunpack.c.0.s8 %v2322
    %v2324 = vperm.slane %v2318, %v2323
    %v2326 = vunpack.c.l.s4 1983009808
    %v2327 = vunpack.c.0.s8 %v2326
    %v2328 = vperm.slane %v2320, %v2327
    %v2329 = vrot.slane %v2300, 4
    %v2330 = vsel %vm143, %v2329, %v2288
    %v2331 = vrot.slane %v2288, 4
    %v2332 = vsel %vm143, %v2300, %v2331
    %v2334 = vunpack.c.l.s4 1934713408
    %v2335 = vunpack.c.0.s8 %v2334
    %v2336 = vperm.slane %v2330, %v2335
    %v2338 = vunpack.c.l.s4 1934713408
    %v2339 = vunpack.c.0.s8 %v2338
    %v2340 = vperm.slane %v2332, %v2339
    %v2341 = vrot.slane %v2304, 4
    %v2342 = vsel %vm143, %v2341, %v2292
    %v2343 = vrot.slane %v2292, 4
    %v2344 = vsel %vm143, %v2304, %v2343
    %v2346 = vunpack.c.l.s4 1934713408
    %v2347 = vunpack.c.0.s8 %v2346
    %v2348 = vperm.slane %v2342, %v2347
    %v2350 = vunpack.c.l.s4 1934713408
    %v2351 = vunpack.c.0.s8 %v2350
    %v2352 = vperm.slane %v2344, %v2351
    %v2353 = vrot.slane %v2324, 4
    %v2354 = vsel %vm143, %v2353, %v2312
    %v2355 = vrot.slane %v2312, 4
    %v2356 = vsel %vm143, %v2324, %v2355
    %v2358 = vunpack.c.l.s4 1934713408
    %v2359 = vunpack.c.0.s8 %v2358
    %v2360 = vperm.slane %v2354, %v2359
    %v2362 = vunpack.c.l.s4 1934713408
    %v2363 = vunpack.c.0.s8 %v2362
    %v2364 = vperm.slane %v2356, %v2363
    %v2365 = vrot.slane %v2328, 4
    %v2366 = vsel %vm143, %v2365, %v2316
    %v2367 = vrot.slane %v2316, 4
    %v2368 = vsel %vm143, %v2328, %v2367
    %v2370 = vunpack.c.l.s4 1934713408
    %v2371 = vunpack.c.0.s8 %v2370
    %v2372 = vperm.slane %v2366, %v2371
    %v2374 = vunpack.c.l.s4 1934713408
    %v2375 = vunpack.c.0.s8 %v2374
    %v2376 = vperm.slane %v2368, %v2375
    %v2377 = vrot.slane %v2360, 4
    %v2378 = vsel %vm143, %v2377, %v2336
    %v2379 = vrot.slane %v2336, 4
    %v2380 = vsel %vm143, %v2360, %v2379
    %v2381 = vrot.slane %v2364, 4
    %v2382 = vsel %vm143, %v2381, %v2340
    %v2383 = vrot.slane %v2340, 4
    %v2384 = vsel %vm143, %v2364, %v2383
    %v2385 = vrot.slane %v2372, 4
    %v2386 = vsel %vm143, %v2385, %v2348
    %v2387 = vrot.slane %v2348, 4
    %v2388 = vsel %vm143, %v2372, %v2387
    %v2389 = vrot.slane %v2376, 4
    %v2390 = vsel %vm143, %v2389, %v2352
    %v2391 = vrot.slane %v2352, 4
    %v2392 = vsel %vm143, %v2376, %v2391
    %v2393 = vrot.slane %v2276, 4
    %v2394 = vsel %vm143, %v2393, %v2270
    %v2395 = vrot.slane %v2270, 4
    %v2396 = vsel %vm143, %v2276, %v2395
    %v2398 = vunpack.c.l.s4 1983009808
    %v2399 = vunpack.c.0.s8 %v2398
    %v2400 = vperm.slane %v2394, %v2399
    %v2402 = vunpack.c.l.s4 1983009808
    %v2403 = vunpack.c.0.s8 %v2402
    %v2404 = vperm.slane %v2396, %v2403
    %v2405 = vrot.slane %v2279, 4
    %v2406 = vsel %vm143, %v2405, %v2273
    %v2407 = vrot.slane %v2273, 4
    %v2408 = vsel %vm143, %v2279, %v2407
    %v2410 = vunpack.c.l.s4 1983009808
    %v2411 = vunpack.c.0.s8 %v2410
    %v2412 = vperm.slane %v2406, %v2411
    %v2414 = vunpack.c.l.s4 1983009808
    %v2415 = vunpack.c.0.s8 %v2414
    %v2416 = vperm.slane %v2408, %v2415
    %v2417 = vrot.slane %v2412, 4
    %v2418 = vsel %vm143, %v2417, %v2400
    %v2419 = vrot.slane %v2400, 4
    %v2420 = vsel %vm143, %v2412, %v2419
    %v2422 = vunpack.c.l.s4 1934713408
    %v2423 = vunpack.c.0.s8 %v2422
    %v2424 = vperm.slane %v2418, %v2423
    %v2426 = vunpack.c.l.s4 1934713408
    %v2427 = vunpack.c.0.s8 %v2426
    %v2428 = vperm.slane %v2420, %v2427
    %v2429 = vrot.slane %v2416, 4
    %v2430 = vsel %vm143, %v2429, %v2404
    %v2431 = vrot.slane %v2404, 4
    %v2432 = vsel %vm143, %v2416, %v2431
    %v2434 = vunpack.c.l.s4 1934713408
    %v2435 = vunpack.c.0.s8 %v2434
    %v2436 = vperm.slane %v2430, %v2435
    %v2438 = vunpack.c.l.s4 1934713408
    %v2439 = vunpack.c.0.s8 %v2438
    %v2440 = vperm.slane %v2432, %v2439
    %v2441 = vrot.slane %v2424, 4
    %v2442 = vsel %vm143, 0.0, %v2441
    %v2443 = vrot.slane %v2428, 4
    %v2444 = vsel %vm143, 0.0, %v2443
    %v2445 = vrot.slane %v2436, 4
    %v2446 = vsel %vm143, 0.0, %v2445
    %v2447 = vrot.slane %v2440, 4
    %v2448 = vsel %vm143, 0.0, %v2447
    %v2449 = vrot.slane %v2382, 4
    %v2450 = vsel %vm143, %v2449, %v2378
    %v2452 = vunpack.c.l.s4 1983009808
    %v2453 = vunpack.c.0.s8 %v2452
    %v2454 = vperm.slane %v2450, %v2453
    %v2455 = vrot.slane %v2384, 4
    %v2456 = vsel %vm143, %v2455, %v2380
    %v2458 = vunpack.c.l.s4 1983009808
    %v2459 = vunpack.c.0.s8 %v2458
    %v2460 = vperm.slane %v2456, %v2459
    %v2461 = vrot.slane %v2390, 4
    %v2462 = vsel %vm143, %v2461, %v2386
    %v2464 = vunpack.c.l.s4 1983009808
    %v2465 = vunpack.c.0.s8 %v2464
    %v2466 = vperm.slane %v2462, %v2465
    %v2467 = vrot.slane %v2392, 4
    %v2468 = vsel %vm143, %v2467, %v2388
    %v2470 = vunpack.c.l.s4 1983009808
    %v2471 = vunpack.c.0.s8 %v2470
    %v2472 = vperm.slane %v2468, %v2471
    %v2473 = vrot.slane %v2460, 4
    %v2474 = vsel %vm143, %v2473, %v2454
    %v2475 = vrot.slane %v2454, 4
    %v2476 = vsel %vm143, %v2460, %v2475
    %v2478 = vunpack.c.l.s4 1934713408
    %v2479 = vunpack.c.0.s8 %v2478
    %v2480 = vperm.slane %v2474, %v2479
    %v2482 = vunpack.c.l.s4 1934713408
    %v2483 = vunpack.c.0.s8 %v2482
    %v2484 = vperm.slane %v2476, %v2483
    %v2485 = vrot.slane %v2472, 4
    %v2486 = vsel %vm143, %v2485, %v2466
    %v2487 = vrot.slane %v2466, 4
    %v2488 = vsel %vm143, %v2472, %v2487
    %v2490 = vunpack.c.l.s4 1934713408
    %v2491 = vunpack.c.0.s8 %v2490
    %v2492 = vperm.slane %v2486, %v2491
    %v2494 = vunpack.c.l.s4 1934713408
    %v2495 = vunpack.c.0.s8 %v2494
    %v2496 = vperm.slane %v2488, %v2495
    %v2497 = vrot.slane %v2492, 4
    %v2498 = vsel %vm143, %v2497, %v2480
    %v2499 = vrot.slane %v2480, 4
    %v2500 = vsel %vm143, %v2492, %v2499
    %v2501 = vrot.slane %v2496, 4
    %v2502 = vsel %vm143, %v2501, %v2484
    %v2503 = vrot.slane %v2484, 4
    %v2504 = vsel %vm143, %v2496, %v2503
    %v2513 = vrot.slane %v2378, 4
    %v2514 = vrot.slane %v2380, 4
    %v2515 = vrot.slane %v2382, 4
    %v2516 = vrot.slane %v2384, 4
    %v2517 = vrot.slane %v2386, 4
    %v2518 = vrot.slane %v2388, 4
    %v2519 = vrot.slane %v2390, 4
    %v2520 = vrot.slane %v2392, 4
    %2529 = vxpose.xlu0.b32.start [1/16] %v2513, 128
    %2530 = vxpose.xlu0.b32.cont [2/16] 0.0, 128
    %2531 = vxpose.xlu0.b32.cont [3/16] 0.0, 128
    %2532 = vxpose.xlu0.b32.cont [4/16] 0.0, 128
    %2533 = vxpose.xlu0.b32.cont [5/16] 0.0, 128
    %2534 = vxpose.xlu0.b32.cont [6/16] 0.0, 128
    %2535 = vxpose.xlu0.b32.cont [7/16] 0.0, 128
    %2536 = vxpose.xlu0.b32.cont [8/16] 0.0, 128
    %2537 = vxpose.xlu0.b32.cont [9/16] 0.0, 128
    %2538 = vxpose.xlu0.b32.cont [10/16] 0.0, 128
    %2539 = vxpose.xlu0.b32.cont [11/16] 0.0, 128
    %2540 = vxpose.xlu0.b32.cont [12/16] 0.0, 128
    %2541 = vxpose.xlu0.b32.cont [13/16] 0.0, 128
    %2542 = vxpose.xlu0.b32.cont [14/16] 0.0, 128
    %2543 = vxpose.xlu0.b32.cont [15/16] 0.0, 128
    %2544 = vxpose.xlu0.b32.end [16/16] 0.0, 128
    %v2545 = vpop.trf.xlu0
    %v2546 = vpop.trf.xlu0
    %v2547 = vpop.trf.xlu0
    %v2548 = vpop.trf.xlu0
    %v2549 = vpop.trf.xlu0
    %v2550 = vpop.trf.xlu0
    %v2551 = vpop.trf.xlu0
    %v2552 = vpop.trf.xlu0
    %v2553 = vpop.trf.xlu0
    %v2554 = vpop.trf.xlu0
    %v2555 = vpop.trf.xlu0
    %v2556 = vpop.trf.xlu0
    %v2557 = vpop.trf.xlu0
    %v2558 = vpop.trf.xlu0
    %v2559 = vpop.trf.xlu0
    %v2560 = vpop.trf.xlu0
    %2561 = vxpose.xlu0.b32.start [1/16] %v2514, 128
    %2562 = vxpose.xlu0.b32.cont [2/16] 0.0, 128
    %2563 = vxpose.xlu0.b32.cont [3/16] 0.0, 128
    %2564 = vxpose.xlu0.b32.cont [4/16] 0.0, 128
    %2565 = vxpose.xlu0.b32.cont [5/16] 0.0, 128
    %2566 = vxpose.xlu0.b32.cont [6/16] 0.0, 128
    %2567 = vxpose.xlu0.b32.cont [7/16] 0.0, 128
    %2568 = vxpose.xlu0.b32.cont [8/16] 0.0, 128
    %2569 = vxpose.xlu0.b32.cont [9/16] 0.0, 128
    %2570 = vxpose.xlu0.b32.cont [10/16] 0.0, 128
    %2571 = vxpose.xlu0.b32.cont [11/16] 0.0, 128
    %2572 = vxpose.xlu0.b32.cont [12/16] 0.0, 128
    %2573 = vxpose.xlu0.b32.cont [13/16] 0.0, 128
    %2574 = vxpose.xlu0.b32.cont [14/16] 0.0, 128
    %2575 = vxpose.xlu0.b32.cont [15/16] 0.0, 128
    %2576 = vxpose.xlu0.b32.end [16/16] 0.0, 128
    %v2577 = vpop.trf.xlu0
    %v2578 = vpop.trf.xlu0
    %v2579 = vpop.trf.xlu0
    %v2580 = vpop.trf.xlu0
    %v2581 = vpop.trf.xlu0
    %v2582 = vpop.trf.xlu0
    %v2583 = vpop.trf.xlu0
    %v2584 = vpop.trf.xlu0
    %v2585 = vpop.trf.xlu0
    %v2586 = vpop.trf.xlu0
    %v2587 = vpop.trf.xlu0
    %v2588 = vpop.trf.xlu0
    %v2589 = vpop.trf.xlu0
    %v2590 = vpop.trf.xlu0
    %v2591 = vpop.trf.xlu0
    %v2592 = vpop.trf.xlu0
    %2593 = vxpose.xlu0.b32.start [1/16] %v2515, 128
    %2594 = vxpose.xlu0.b32.cont [2/16] 0.0, 128
    %2595 = vxpose.xlu0.b32.cont [3/16] 0.0, 128
    %2596 = vxpose.xlu0.b32.cont [4/16] 0.0, 128
    %2597 = vxpose.xlu0.b32.cont [5/16] 0.0, 128
    %2598 = vxpose.xlu0.b32.cont [6/16] 0.0, 128
    %2599 = vxpose.xlu0.b32.cont [7/16] 0.0, 128
    %2600 = vxpose.xlu0.b32.cont [8/16] 0.0, 128
    %2601 = vxpose.xlu0.b32.cont [9/16] 0.0, 128
    %2602 = vxpose.xlu0.b32.cont [10/16] 0.0, 128
    %2603 = vxpose.xlu0.b32.cont [11/16] 0.0, 128
    %2604 = vxpose.xlu0.b32.cont [12/16] 0.0, 128
    %2605 = vxpose.xlu0.b32.cont [13/16] 0.0, 128
    %2606 = vxpose.xlu0.b32.cont [14/16] 0.0, 128
    %2607 = vxpose.xlu0.b32.cont [15/16] 0.0, 128
    %2608 = vxpose.xlu0.b32.end [16/16] 0.0, 128
    %v2609 = vpop.trf.xlu0
    %v2610 = vpop.trf.xlu0
    %v2611 = vpop.trf.xlu0
    %v2612 = vpop.trf.xlu0
    %v2613 = vpop.trf.xlu0
    %v2614 = vpop.trf.xlu0
    %v2615 = vpop.trf.xlu0
    %v2616 = vpop.trf.xlu0
    %v2617 = vpop.trf.xlu0
    %v2618 = vpop.trf.xlu0
    %v2619 = vpop.trf.xlu0
    %v2620 = vpop.trf.xlu0
    %v2621 = vpop.trf.xlu0
    %v2622 = vpop.trf.xlu0
    %v2623 = vpop.trf.xlu0
    %v2624 = vpop.trf.xlu0
    %2625 = vxpose.xlu0.b32.start [1/16] %v2516, 128
    %2626 = vxpose.xlu0.b32.cont [2/16] 0.0, 128
    %2627 = vxpose.xlu0.b32.cont [3/16] 0.0, 128
    %2628 = vxpose.xlu0.b32.cont [4/16] 0.0, 128
    %2629 = vxpose.xlu0.b32.cont [5/16] 0.0, 128
    %2630 = vxpose.xlu0.b32.cont [6/16] 0.0, 128
    %2631 = vxpose.xlu0.b32.cont [7/16] 0.0, 128
    %2632 = vxpose.xlu0.b32.cont [8/16] 0.0, 128
    %2633 = vxpose.xlu0.b32.cont [9/16] 0.0, 128
    %2634 = vxpose.xlu0.b32.cont [10/16] 0.0, 128
    %2635 = vxpose.xlu0.b32.cont [11/16] 0.0, 128
    %2636 = vxpose.xlu0.b32.cont [12/16] 0.0, 128
    %2637 = vxpose.xlu0.b32.cont [13/16] 0.0, 128
    %2638 = vxpose.xlu0.b32.cont [14/16] 0.0, 128
    %2639 = vxpose.xlu0.b32.cont [15/16] 0.0, 128
    %2640 = vxpose.xlu0.b32.end [16/16] 0.0, 128
    %v2641 = vpop.trf.xlu0
    %v2642 = vpop.trf.xlu0
    %v2643 = vpop.trf.xlu0
    %v2644 = vpop.trf.xlu0
    %v2645 = vpop.trf.xlu0
    %v2646 = vpop.trf.xlu0
    %v2647 = vpop.trf.xlu0
    %v2648 = vpop.trf.xlu0
    %v2649 = vpop.trf.xlu0
    %v2650 = vpop.trf.xlu0
    %v2651 = vpop.trf.xlu0
    %v2652 = vpop.trf.xlu0
    %v2653 = vpop.trf.xlu0
    %v2654 = vpop.trf.xlu0
    %v2655 = vpop.trf.xlu0
    %v2656 = vpop.trf.xlu0
    %2657 = vxpose.xlu0.b32.start [1/16] %v2517, 128
    %2658 = vxpose.xlu0.b32.cont [2/16] 0.0, 128
    %2659 = vxpose.xlu0.b32.cont [3/16] 0.0, 128
    %2660 = vxpose.xlu0.b32.cont [4/16] 0.0, 128
    %2661 = vxpose.xlu0.b32.cont [5/16] 0.0, 128
    %2662 = vxpose.xlu0.b32.cont [6/16] 0.0, 128
    %2663 = vxpose.xlu0.b32.cont [7/16] 0.0, 128
    %2664 = vxpose.xlu0.b32.cont [8/16] 0.0, 128
    %2665 = vxpose.xlu0.b32.cont [9/16] 0.0, 128
    %2666 = vxpose.xlu0.b32.cont [10/16] 0.0, 128
    %2667 = vxpose.xlu0.b32.cont [11/16] 0.0, 128
    %2668 = vxpose.xlu0.b32.cont [12/16] 0.0, 128
    %2669 = vxpose.xlu0.b32.cont [13/16] 0.0, 128
    %2670 = vxpose.xlu0.b32.cont [14/16] 0.0, 128
    %2671 = vxpose.xlu0.b32.cont [15/16] 0.0, 128
    %2672 = vxpose.xlu0.b32.end [16/16] 0.0, 128
    %v2673 = vpop.trf.xlu0
    %v2674 = vpop.trf.xlu0
    %v2675 = vpop.trf.xlu0
    %v2676 = vpop.trf.xlu0
    %v2677 = vpop.trf.xlu0
    %v2678 = vpop.trf.xlu0
    %v2679 = vpop.trf.xlu0
    %v2680 = vpop.trf.xlu0
    %v2681 = vpop.trf.xlu0
    %v2682 = vpop.trf.xlu0
    %v2683 = vpop.trf.xlu0
    %v2684 = vpop.trf.xlu0
    %v2685 = vpop.trf.xlu0
    %v2686 = vpop.trf.xlu0
    %v2687 = vpop.trf.xlu0
    %v2688 = vpop.trf.xlu0
    %2689 = vxpose.xlu0.b32.start [1/16] %v2518, 128
    %2690 = vxpose.xlu0.b32.cont [2/16] 0.0, 128
    %2691 = vxpose.xlu0.b32.cont [3/16] 0.0, 128
    %2692 = vxpose.xlu0.b32.cont [4/16] 0.0, 128
    %2693 = vxpose.xlu0.b32.cont [5/16] 0.0, 128
    %2694 = vxpose.xlu0.b32.cont [6/16] 0.0, 128
    %2695 = vxpose.xlu0.b32.cont [7/16] 0.0, 128
    %2696 = vxpose.xlu0.b32.cont [8/16] 0.0, 128
    %2697 = vxpose.xlu0.b32.cont [9/16] 0.0, 128
    %2698 = vxpose.xlu0.b32.cont [10/16] 0.0, 128
    %2699 = vxpose.xlu0.b32.cont [11/16] 0.0, 128
    %2700 = vxpose.xlu0.b32.cont [12/16] 0.0, 128
    %2701 = vxpose.xlu0.b32.cont [13/16] 0.0, 128
    %2702 = vxpose.xlu0.b32.cont [14/16] 0.0, 128
    %2703 = vxpose.xlu0.b32.cont [15/16] 0.0, 128
    %2704 = vxpose.xlu0.b32.end [16/16] 0.0, 128
    %v2705 = vpop.trf.xlu0
    %v2706 = vpop.trf.xlu0
    %v2707 = vpop.trf.xlu0
    %v2708 = vpop.trf.xlu0
    %v2709 = vpop.trf.xlu0
    %v2710 = vpop.trf.xlu0
    %v2711 = vpop.trf.xlu0
    %v2712 = vpop.trf.xlu0
    %v2713 = vpop.trf.xlu0
    %v2714 = vpop.trf.xlu0
    %v2715 = vpop.trf.xlu0
    %v2716 = vpop.trf.xlu0
    %v2717 = vpop.trf.xlu0
    %v2718 = vpop.trf.xlu0
    %v2719 = vpop.trf.xlu0
    %v2720 = vpop.trf.xlu0
    %2721 = vxpose.xlu0.b32.start [1/16] %v2519, 128
    %2722 = vxpose.xlu0.b32.cont [2/16] 0.0, 128
    %2723 = vxpose.xlu0.b32.cont [3/16] 0.0, 128
    %2724 = vxpose.xlu0.b32.cont [4/16] 0.0, 128
    %2725 = vxpose.xlu0.b32.cont [5/16] 0.0, 128
    %2726 = vxpose.xlu0.b32.cont [6/16] 0.0, 128
    %2727 = vxpose.xlu0.b32.cont [7/16] 0.0, 128
    %2728 = vxpose.xlu0.b32.cont [8/16] 0.0, 128
    %2729 = vxpose.xlu0.b32.cont [9/16] 0.0, 128
    %2730 = vxpose.xlu0.b32.cont [10/16] 0.0, 128
    %2731 = vxpose.xlu0.b32.cont [11/16] 0.0, 128
    %2732 = vxpose.xlu0.b32.cont [12/16] 0.0, 128
    %2733 = vxpose.xlu0.b32.cont [13/16] 0.0, 128
    %2734 = vxpose.xlu0.b32.cont [14/16] 0.0, 128
    %2735 = vxpose.xlu0.b32.cont [15/16] 0.0, 128
    %2736 = vxpose.xlu0.b32.end [16/16] 0.0, 128
    %v2737 = vpop.trf.xlu0
    %v2738 = vpop.trf.xlu0
    %v2739 = vpop.trf.xlu0
    %v2740 = vpop.trf.xlu0
    %v2741 = vpop.trf.xlu0
    %v2742 = vpop.trf.xlu0
    %v2743 = vpop.trf.xlu0
    %v2744 = vpop.trf.xlu0
    %v2745 = vpop.trf.xlu0
    %v2746 = vpop.trf.xlu0
    %v2747 = vpop.trf.xlu0
    %v2748 = vpop.trf.xlu0
    %v2749 = vpop.trf.xlu0
    %v2750 = vpop.trf.xlu0
    %v2751 = vpop.trf.xlu0
    %v2752 = vpop.trf.xlu0
    %2753 = vxpose.xlu0.b32.start [1/16] %v2520, 128
    %2754 = vxpose.xlu0.b32.cont [2/16] 0.0, 128
    %2755 = vxpose.xlu0.b32.cont [3/16] 0.0, 128
    %2756 = vxpose.xlu0.b32.cont [4/16] 0.0, 128
    %2757 = vxpose.xlu0.b32.cont [5/16] 0.0, 128
    %2758 = vxpose.xlu0.b32.cont [6/16] 0.0, 128
    %2759 = vxpose.xlu0.b32.cont [7/16] 0.0, 128
    %2760 = vxpose.xlu0.b32.cont [8/16] 0.0, 128
    %2761 = vxpose.xlu0.b32.cont [9/16] 0.0, 128
    %2762 = vxpose.xlu0.b32.cont [10/16] 0.0, 128
    %2763 = vxpose.xlu0.b32.cont [11/16] 0.0, 128
    %2764 = vxpose.xlu0.b32.cont [12/16] 0.0, 128
    %2765 = vxpose.xlu0.b32.cont [13/16] 0.0, 128
    %2766 = vxpose.xlu0.b32.cont [14/16] 0.0, 128
    %2767 = vxpose.xlu0.b32.cont [15/16] 0.0, 128
    %2768 = vxpose.xlu0.b32.end [16/16] 0.0, 128
    %v2769 = vpop.trf.xlu0
    %v2770 = vpop.trf.xlu0
    %v2771 = vpop.trf.xlu0
    %v2772 = vpop.trf.xlu0
    %v2773 = vpop.trf.xlu0
    %v2774 = vpop.trf.xlu0
    %v2775 = vpop.trf.xlu0
    %v2776 = vpop.trf.xlu0
    %v2777 = vpop.trf.xlu0
    %v2778 = vpop.trf.xlu0
    %v2779 = vpop.trf.xlu0
    %v2780 = vpop.trf.xlu0
    %v2781 = vpop.trf.xlu0
    %v2782 = vpop.trf.xlu0
    %v2783 = vpop.trf.xlu0
    %v2784 = vpop.trf.xlu0
    %v2785 = vrot.slane %v2609, 4
    %v2786 = vsel %vm143, %v2785, %v2545
    %v2787 = vrot.slane %v2545, 4
    %v2788 = vsel %vm143, %v2609, %v2787
    %v2790 = vunpack.c.l.s4 1983009808
    %v2791 = vunpack.c.0.s8 %v2790
    %v2792 = vperm.slane %v2786, %v2791
    %v2794 = vunpack.c.l.s4 1983009808
    %v2795 = vunpack.c.0.s8 %v2794
    %v2796 = vperm.slane %v2788, %v2795
    %v2797 = vrot.slane %v2641, 4
    %v2798 = vsel %vm143, %v2797, %v2577
    %v2799 = vrot.slane %v2577, 4
    %v2800 = vsel %vm143, %v2641, %v2799
    %v2802 = vunpack.c.l.s4 1983009808
    %v2803 = vunpack.c.0.s8 %v2802
    %v2804 = vperm.slane %v2798, %v2803
    %v2806 = vunpack.c.l.s4 1983009808
    %v2807 = vunpack.c.0.s8 %v2806
    %v2808 = vperm.slane %v2800, %v2807
    %v2809 = vrot.slane %v2737, 4
    %v2810 = vsel %vm143, %v2809, %v2673
    %v2811 = vrot.slane %v2673, 4
    %v2812 = vsel %vm143, %v2737, %v2811
    %v2814 = vunpack.c.l.s4 1983009808
    %v2815 = vunpack.c.0.s8 %v2814
    %v2816 = vperm.slane %v2810, %v2815
    %v2818 = vunpack.c.l.s4 1983009808
    %v2819 = vunpack.c.0.s8 %v2818
    %v2820 = vperm.slane %v2812, %v2819
    %v2821 = vrot.slane %v2769, 4
    %v2822 = vsel %vm143, %v2821, %v2705
    %v2823 = vrot.slane %v2705, 4
    %v2824 = vsel %vm143, %v2769, %v2823
    %v2826 = vunpack.c.l.s4 1983009808
    %v2827 = vunpack.c.0.s8 %v2826
    %v2828 = vperm.slane %v2822, %v2827
    %v2830 = vunpack.c.l.s4 1983009808
    %v2831 = vunpack.c.0.s8 %v2830
    %v2832 = vperm.slane %v2824, %v2831
    %v2833 = vrot.slane %v2804, 4
    %v2834 = vsel %vm143, %v2833, %v2792
    %v2835 = vrot.slane %v2792, 4
    %v2836 = vsel %vm143, %v2804, %v2835
    %v2838 = vunpack.c.l.s4 1934713408
    %v2839 = vunpack.c.0.s8 %v2838
    %v2840 = vperm.slane %v2834, %v2839
    %v2842 = vunpack.c.l.s4 1934713408
    %v2843 = vunpack.c.0.s8 %v2842
    %v2844 = vperm.slane %v2836, %v2843
    %v2845 = vrot.slane %v2808, 4
    %v2846 = vsel %vm143, %v2845, %v2796
    %v2847 = vrot.slane %v2796, 4
    %v2848 = vsel %vm143, %v2808, %v2847
    %v2850 = vunpack.c.l.s4 1934713408
    %v2851 = vunpack.c.0.s8 %v2850
    %v2852 = vperm.slane %v2846, %v2851
    %v2854 = vunpack.c.l.s4 1934713408
    %v2855 = vunpack.c.0.s8 %v2854
    %v2856 = vperm.slane %v2848, %v2855
    %v2857 = vrot.slane %v2828, 4
    %v2858 = vsel %vm143, %v2857, %v2816
    %v2859 = vrot.slane %v2816, 4
    %v2860 = vsel %vm143, %v2828, %v2859
    %v2862 = vunpack.c.l.s4 1934713408
    %v2863 = vunpack.c.0.s8 %v2862
    %v2864 = vperm.slane %v2858, %v2863
    %v2866 = vunpack.c.l.s4 1934713408
    %v2867 = vunpack.c.0.s8 %v2866
    %v2868 = vperm.slane %v2860, %v2867
    %v2869 = vrot.slane %v2832, 4
    %v2870 = vsel %vm143, %v2869, %v2820
    %v2871 = vrot.slane %v2820, 4
    %v2872 = vsel %vm143, %v2832, %v2871
    %v2874 = vunpack.c.l.s4 1934713408
    %v2875 = vunpack.c.0.s8 %v2874
    %v2876 = vperm.slane %v2870, %v2875
    %v2878 = vunpack.c.l.s4 1934713408
    %v2879 = vunpack.c.0.s8 %v2878
    %v2880 = vperm.slane %v2872, %v2879
    %v2881 = vrot.slane %v2864, 4
    %v2882 = vsel %vm143, %v2881, %v2840
    %v2883 = vrot.slane %v2840, 4
    %v2884 = vsel %vm143, %v2864, %v2883
    %v2885 = vrot.slane %v2868, 4
    %v2886 = vsel %vm143, %v2885, %v2844
    %v2887 = vrot.slane %v2844, 4
    %v2888 = vsel %vm143, %v2868, %v2887
    %v2889 = vrot.slane %v2876, 4
    %v2890 = vsel %vm143, %v2889, %v2852
    %v2891 = vrot.slane %v2852, 4
    %v2892 = vsel %vm143, %v2876, %v2891
    %v2893 = vrot.slane %v2880, 4
    %v2894 = vsel %vm143, %v2893, %v2856
    %v2895 = vrot.slane %v2856, 4
    %v2896 = vsel %vm143, %v2880, %v2895
    %2897 = vxpose.xlu0.b32.start [1/16] %v2882, 128
    %2898 = vxpose.xlu0.b32.cont [2/16] 0.0, 128
    %2899 = vxpose.xlu0.b32.cont [3/16] 0.0, 128
    %2900 = vxpose.xlu0.b32.cont [4/16] 0.0, 128
    %2901 = vxpose.xlu0.b32.cont [5/16] 0.0, 128
    %2902 = vxpose.xlu0.b32.cont [6/16] 0.0, 128
    %2903 = vxpose.xlu0.b32.cont [7/16] 0.0, 128
    %2904 = vxpose.xlu0.b32.cont [8/16] 0.0, 128
    %2905 = vxpose.xlu0.b32.cont [9/16] 0.0, 128
    %2906 = vxpose.xlu0.b32.cont [10/16] 0.0, 128
    %2907 = vxpose.xlu0.b32.cont [11/16] 0.0, 128
    %2908 = vxpose.xlu0.b32.cont [12/16] 0.0, 128
    %2909 = vxpose.xlu0.b32.cont [13/16] 0.0, 128
    %2910 = vxpose.xlu0.b32.cont [14/16] 0.0, 128
    %2911 = vxpose.xlu0.b32.cont [15/16] 0.0, 128
    %2912 = vxpose.xlu0.b32.end [16/16] 0.0, 128
    %v2913 = vpop.trf.xlu0
    %v2914 = vpop.trf.xlu0
    %v2915 = vpop.trf.xlu0
    %v2916 = vpop.trf.xlu0
    %v2917 = vpop.trf.xlu0
    %v2918 = vpop.trf.xlu0
    %v2919 = vpop.trf.xlu0
    %v2920 = vpop.trf.xlu0
    %v2921 = vpop.trf.xlu0
    %v2922 = vpop.trf.xlu0
    %v2923 = vpop.trf.xlu0
    %v2924 = vpop.trf.xlu0
    %v2925 = vpop.trf.xlu0
    %v2926 = vpop.trf.xlu0
    %v2927 = vpop.trf.xlu0
    %v2928 = vpop.trf.xlu0
    %2929 = vxpose.xlu0.b32.start [1/16] %v2884, 128
    %2930 = vxpose.xlu0.b32.cont [2/16] 0.0, 128
    %2931 = vxpose.xlu0.b32.cont [3/16] 0.0, 128
    %2932 = vxpose.xlu0.b32.cont [4/16] 0.0, 128
    %2933 = vxpose.xlu0.b32.cont [5/16] 0.0, 128
    %2934 = vxpose.xlu0.b32.cont [6/16] 0.0, 128
    %2935 = vxpose.xlu0.b32.cont [7/16] 0.0, 128
    %2936 = vxpose.xlu0.b32.cont [8/16] 0.0, 128
    %2937 = vxpose.xlu0.b32.cont [9/16] 0.0, 128
    %2938 = vxpose.xlu0.b32.cont [10/16] 0.0, 128
    %2939 = vxpose.xlu0.b32.cont [11/16] 0.0, 128
    %2940 = vxpose.xlu0.b32.cont [12/16] 0.0, 128
    %2941 = vxpose.xlu0.b32.cont [13/16] 0.0, 128
    %2942 = vxpose.xlu0.b32.cont [14/16] 0.0, 128
    %2943 = vxpose.xlu0.b32.cont [15/16] 0.0, 128
    %2944 = vxpose.xlu0.b32.end [16/16] 0.0, 128
    %v2945 = vpop.trf.xlu0
    %v2946 = vpop.trf.xlu0
    %v2947 = vpop.trf.xlu0
    %v2948 = vpop.trf.xlu0
    %v2949 = vpop.trf.xlu0
    %v2950 = vpop.trf.xlu0
    %v2951 = vpop.trf.xlu0
    %v2952 = vpop.trf.xlu0
    %v2953 = vpop.trf.xlu0
    %v2954 = vpop.trf.xlu0
    %v2955 = vpop.trf.xlu0
    %v2956 = vpop.trf.xlu0
    %v2957 = vpop.trf.xlu0
    %v2958 = vpop.trf.xlu0
    %v2959 = vpop.trf.xlu0
    %v2960 = vpop.trf.xlu0
    %2961 = vxpose.xlu0.b32.start [1/16] %v2886, 128
    %2962 = vxpose.xlu0.b32.cont [2/16] 0.0, 128
    %2963 = vxpose.xlu0.b32.cont [3/16] 0.0, 128
    %2964 = vxpose.xlu0.b32.cont [4/16] 0.0, 128
    %2965 = vxpose.xlu0.b32.cont [5/16] 0.0, 128
    %2966 = vxpose.xlu0.b32.cont [6/16] 0.0, 128
    %2967 = vxpose.xlu0.b32.cont [7/16] 0.0, 128
    %2968 = vxpose.xlu0.b32.cont [8/16] 0.0, 128
    %2969 = vxpose.xlu0.b32.cont [9/16] 0.0, 128
    %2970 = vxpose.xlu0.b32.cont [10/16] 0.0, 128
    %2971 = vxpose.xlu0.b32.cont [11/16] 0.0, 128
    %2972 = vxpose.xlu0.b32.cont [12/16] 0.0, 128
    %2973 = vxpose.xlu0.b32.cont [13/16] 0.0, 128
    %2974 = vxpose.xlu0.b32.cont [14/16] 0.0, 128
    %2975 = vxpose.xlu0.b32.cont [15/16] 0.0, 128
    %2976 = vxpose.xlu0.b32.end [16/16] 0.0, 128
    %v2977 = vpop.trf.xlu0
    %v2978 = vpop.trf.xlu0
    %v2979 = vpop.trf.xlu0
    %v2980 = vpop.trf.xlu0
    %v2981 = vpop.trf.xlu0
    %v2982 = vpop.trf.xlu0
    %v2983 = vpop.trf.xlu0
    %v2984 = vpop.trf.xlu0
    %v2985 = vpop.trf.xlu0
    %v2986 = vpop.trf.xlu0
    %v2987 = vpop.trf.xlu0
    %v2988 = vpop.trf.xlu0
    %v2989 = vpop.trf.xlu0
    %v2990 = vpop.trf.xlu0
    %v2991 = vpop.trf.xlu0
    %v2992 = vpop.trf.xlu0
    %2993 = vxpose.xlu0.b32.start [1/16] %v2888, 128
    %2994 = vxpose.xlu0.b32.cont [2/16] 0.0, 128
    %2995 = vxpose.xlu0.b32.cont [3/16] 0.0, 128
    %2996 = vxpose.xlu0.b32.cont [4/16] 0.0, 128
    %2997 = vxpose.xlu0.b32.cont [5/16] 0.0, 128
    %2998 = vxpose.xlu0.b32.cont [6/16] 0.0, 128
    %2999 = vxpose.xlu0.b32.cont [7/16] 0.0, 128
    %3000 = vxpose.xlu0.b32.cont [8/16] 0.0, 128
    %3001 = vxpose.xlu0.b32.cont [9/16] 0.0, 128
    %3002 = vxpose.xlu0.b32.cont [10/16] 0.0, 128
    %3003 = vxpose.xlu0.b32.cont [11/16] 0.0, 128
    %3004 = vxpose.xlu0.b32.cont [12/16] 0.0, 128
    %3005 = vxpose.xlu0.b32.cont [13/16] 0.0, 128
    %3006 = vxpose.xlu0.b32.cont [14/16] 0.0, 128
    %3007 = vxpose.xlu0.b32.cont [15/16] 0.0, 128
    %3008 = vxpose.xlu0.b32.end [16/16] 0.0, 128
    %v3009 = vpop.trf.xlu0
    %v3010 = vpop.trf.xlu0
    %v3011 = vpop.trf.xlu0
    %v3012 = vpop.trf.xlu0
    %v3013 = vpop.trf.xlu0
    %v3014 = vpop.trf.xlu0
    %v3015 = vpop.trf.xlu0
    %v3016 = vpop.trf.xlu0
    %v3017 = vpop.trf.xlu0
    %v3018 = vpop.trf.xlu0
    %v3019 = vpop.trf.xlu0
    %v3020 = vpop.trf.xlu0
    %v3021 = vpop.trf.xlu0
    %v3022 = vpop.trf.xlu0
    %v3023 = vpop.trf.xlu0
    %v3024 = vpop.trf.xlu0
    %3025 = vxpose.xlu0.b32.start [1/16] %v2890, 128
    %3026 = vxpose.xlu0.b32.cont [2/16] 0.0, 128
    %3027 = vxpose.xlu0.b32.cont [3/16] 0.0, 128
    %3028 = vxpose.xlu0.b32.cont [4/16] 0.0, 128
    %3029 = vxpose.xlu0.b32.cont [5/16] 0.0, 128
    %3030 = vxpose.xlu0.b32.cont [6/16] 0.0, 128
    %3031 = vxpose.xlu0.b32.cont [7/16] 0.0, 128
    %3032 = vxpose.xlu0.b32.cont [8/16] 0.0, 128
    %3033 = vxpose.xlu0.b32.cont [9/16] 0.0, 128
    %3034 = vxpose.xlu0.b32.cont [10/16] 0.0, 128
    %3035 = vxpose.xlu0.b32.cont [11/16] 0.0, 128
    %3036 = vxpose.xlu0.b32.cont [12/16] 0.0, 128
    %3037 = vxpose.xlu0.b32.cont [13/16] 0.0, 128
    %3038 = vxpose.xlu0.b32.cont [14/16] 0.0, 128
    %3039 = vxpose.xlu0.b32.cont [15/16] 0.0, 128
    %3040 = vxpose.xlu0.b32.end [16/16] 0.0, 128
    %v3041 = vpop.trf.xlu0
    %v3042 = vpop.trf.xlu0
    %v3043 = vpop.trf.xlu0
    %v3044 = vpop.trf.xlu0
    %v3045 = vpop.trf.xlu0
    %v3046 = vpop.trf.xlu0
    %v3047 = vpop.trf.xlu0
    %v3048 = vpop.trf.xlu0
    %v3049 = vpop.trf.xlu0
    %v3050 = vpop.trf.xlu0
    %v3051 = vpop.trf.xlu0
    %v3052 = vpop.trf.xlu0
    %v3053 = vpop.trf.xlu0
    %v3054 = vpop.trf.xlu0
    %v3055 = vpop.trf.xlu0
    %v3056 = vpop.trf.xlu0
    %3057 = vxpose.xlu0.b32.start [1/16] %v2892, 128
    %3058 = vxpose.xlu0.b32.cont [2/16] 0.0, 128
    %3059 = vxpose.xlu0.b32.cont [3/16] 0.0, 128
    %3060 = vxpose.xlu0.b32.cont [4/16] 0.0, 128
    %3061 = vxpose.xlu0.b32.cont [5/16] 0.0, 128
    %3062 = vxpose.xlu0.b32.cont [6/16] 0.0, 128
    %3063 = vxpose.xlu0.b32.cont [7/16] 0.0, 128
    %3064 = vxpose.xlu0.b32.cont [8/16] 0.0, 128
    %3065 = vxpose.xlu0.b32.cont [9/16] 0.0, 128
    %3066 = vxpose.xlu0.b32.cont [10/16] 0.0, 128
    %3067 = vxpose.xlu0.b32.cont [11/16] 0.0, 128
    %3068 = vxpose.xlu0.b32.cont [12/16] 0.0, 128
    %3069 = vxpose.xlu0.b32.cont [13/16] 0.0, 128
    %3070 = vxpose.xlu0.b32.cont [14/16] 0.0, 128
    %3071 = vxpose.xlu0.b32.cont [15/16] 0.0, 128
    %3072 = vxpose.xlu0.b32.end [16/16] 0.0, 128
    %v3073 = vpop.trf.xlu0
    %v3074 = vpop.trf.xlu0
    %v3075 = vpop.trf.xlu0
    %v3076 = vpop.trf.xlu0
    %v3077 = vpop.trf.xlu0
    %v3078 = vpop.trf.xlu0
    %v3079 = vpop.trf.xlu0
    %v3080 = vpop.trf.xlu0
    %v3081 = vpop.trf.xlu0
    %v3082 = vpop.trf.xlu0
    %v3083 = vpop.trf.xlu0
    %v3084 = vpop.trf.xlu0
    %v3085 = vpop.trf.xlu0
    %v3086 = vpop.trf.xlu0
    %v3087 = vpop.trf.xlu0
    %v3088 = vpop.trf.xlu0
    %3089 = vxpose.xlu0.b32.start [1/16] %v2894, 128
    %3090 = vxpose.xlu0.b32.cont [2/16] 0.0, 128
    %3091 = vxpose.xlu0.b32.cont [3/16] 0.0, 128
    %3092 = vxpose.xlu0.b32.cont [4/16] 0.0, 128
    %3093 = vxpose.xlu0.b32.cont [5/16] 0.0, 128
    %3094 = vxpose.xlu0.b32.cont [6/16] 0.0, 128
    %3095 = vxpose.xlu0.b32.cont [7/16] 0.0, 128
    %3096 = vxpose.xlu0.b32.cont [8/16] 0.0, 128
    %3097 = vxpose.xlu0.b32.cont [9/16] 0.0, 128
    %3098 = vxpose.xlu0.b32.cont [10/16] 0.0, 128
    %3099 = vxpose.xlu0.b32.cont [11/16] 0.0, 128
    %3100 = vxpose.xlu0.b32.cont [12/16] 0.0, 128
    %3101 = vxpose.xlu0.b32.cont [13/16] 0.0, 128
    %3102 = vxpose.xlu0.b32.cont [14/16] 0.0, 128
    %3103 = vxpose.xlu0.b32.cont [15/16] 0.0, 128
    %3104 = vxpose.xlu0.b32.end [16/16] 0.0, 128
    %v3105 = vpop.trf.xlu0
    %v3106 = vpop.trf.xlu0
    %v3107 = vpop.trf.xlu0
    %v3108 = vpop.trf.xlu0
    %v3109 = vpop.trf.xlu0
    %v3110 = vpop.trf.xlu0
    %v3111 = vpop.trf.xlu0
    %v3112 = vpop.trf.xlu0
    %v3113 = vpop.trf.xlu0
    %v3114 = vpop.trf.xlu0
    %v3115 = vpop.trf.xlu0
    %v3116 = vpop.trf.xlu0
    %v3117 = vpop.trf.xlu0
    %v3118 = vpop.trf.xlu0
    %v3119 = vpop.trf.xlu0
    %v3120 = vpop.trf.xlu0
    %3121 = vxpose.xlu0.b32.start [1/16] %v2896, 128
    %3122 = vxpose.xlu0.b32.cont [2/16] 0.0, 128
    %3123 = vxpose.xlu0.b32.cont [3/16] 0.0, 128
    %3124 = vxpose.xlu0.b32.cont [4/16] 0.0, 128
    %3125 = vxpose.xlu0.b32.cont [5/16] 0.0, 128
    %3126 = vxpose.xlu0.b32.cont [6/16] 0.0, 128
    %3127 = vxpose.xlu0.b32.cont [7/16] 0.0, 128
    %3128 = vxpose.xlu0.b32.cont [8/16] 0.0, 128
    %3129 = vxpose.xlu0.b32.cont [9/16] 0.0, 128
    %3130 = vxpose.xlu0.b32.cont [10/16] 0.0, 128
    %3131 = vxpose.xlu0.b32.cont [11/16] 0.0, 128
    %3132 = vxpose.xlu0.b32.cont [12/16] 0.0, 128
    %3133 = vxpose.xlu0.b32.cont [13/16] 0.0, 128
    %3134 = vxpose.xlu0.b32.cont [14/16] 0.0, 128
    %3135 = vxpose.xlu0.b32.cont [15/16] 0.0, 128
    %3136 = vxpose.xlu0.b32.end [16/16] 0.0, 128
    %v3137 = vpop.trf.xlu0
    %v3138 = vpop.trf.xlu0
    %v3139 = vpop.trf.xlu0
    %v3140 = vpop.trf.xlu0
    %v3141 = vpop.trf.xlu0
    %v3142 = vpop.trf.xlu0
    %v3143 = vpop.trf.xlu0
    %v3144 = vpop.trf.xlu0
    %v3145 = vpop.trf.xlu0
    %v3146 = vpop.trf.xlu0
    %v3147 = vpop.trf.xlu0
    %v3148 = vpop.trf.xlu0
    %v3149 = vpop.trf.xlu0
    %v3150 = vpop.trf.xlu0
    %v3151 = vpop.trf.xlu0
    %v3152 = vpop.trf.xlu0
    %v3153 = vrot.slane %v2977, 4
    %v3154 = vsel %vm143, %v3153, %v2913
    %v3156 = vunpack.c.l.s4 1983009808
    %v3157 = vunpack.c.0.s8 %v3156
    %v3158 = vperm.slane %v3154, %v3157
    %v3159 = vrot.slane %v3009, 4
    %v3160 = vsel %vm143, %v3159, %v2945
    %v3162 = vunpack.c.l.s4 1983009808
    %v3163 = vunpack.c.0.s8 %v3162
    %v3164 = vperm.slane %v3160, %v3163
    %v3165 = vrot.slane %v3105, 4
    %v3166 = vsel %vm143, %v3165, %v3041
    %v3168 = vunpack.c.l.s4 1983009808
    %v3169 = vunpack.c.0.s8 %v3168
    %v3170 = vperm.slane %v3166, %v3169
    %v3171 = vrot.slane %v3137, 4
    %v3172 = vsel %vm143, %v3171, %v3073
    %v3174 = vunpack.c.l.s4 1983009808
    %v3175 = vunpack.c.0.s8 %v3174
    %v3176 = vperm.slane %v3172, %v3175
    %v3177 = vrot.slane %v3164, 4
    %v3178 = vsel %vm143, %v3177, %v3158
    %v3179 = vrot.slane %v3158, 4
    %v3180 = vsel %vm143, %v3164, %v3179
    %v3182 = vunpack.c.l.s4 1934713408
    %v3183 = vunpack.c.0.s8 %v3182
    %v3184 = vperm.slane %v3178, %v3183
    %v3186 = vunpack.c.l.s4 1934713408
    %v3187 = vunpack.c.0.s8 %v3186
    %v3188 = vperm.slane %v3180, %v3187
    %v3189 = vrot.slane %v3176, 4
    %v3190 = vsel %vm143, %v3189, %v3170
    %v3191 = vrot.slane %v3170, 4
    %v3192 = vsel %vm143, %v3176, %v3191
    %v3194 = vunpack.c.l.s4 1934713408
    %v3195 = vunpack.c.0.s8 %v3194
    %v3196 = vperm.slane %v3190, %v3195
    %v3198 = vunpack.c.l.s4 1934713408
    %v3199 = vunpack.c.0.s8 %v3198
    %v3200 = vperm.slane %v3192, %v3199
    %v3201 = vrot.slane %v3196, 4
    %v3202 = vsel %vm143, %v3201, %v3184
    %v3203 = vrot.slane %v3184, 4
    %v3204 = vsel %vm143, %v3196, %v3203
    %v3205 = vrot.slane %v3200, 4
    %v3206 = vsel %vm143, %v3205, %v3188
    %v3207 = vrot.slane %v3188, 4
    %v3208 = vsel %vm143, %v3200, %v3207
    %v3210 = vsel %vm1071, %v2498, 0
    %3212 = vmatpush.msra.mxu0 0.0
    %3213 = vmatpush.msra.mxu0 0.0
    %3214 = vmatpush.msra.mxu0 0.0
    %3215 = vmatpush.msra.mxu0 0.0
    %3216 = vmatpush.msra.mxu0 0.0
    %3217 = vmatpush.msra.mxu0 0.0
    %3218 = vmatpush.msra.mxu0 0.0
    %3219 = vmatpush.msra.mxu0 0.0
    %3220 = vmatpush.msra.mxu0 0.0
    %3221 = vmatpush.msra.mxu0 0.0
    %3222 = vmatpush.msra.mxu0 0.0
    %3223 = vmatpush.msra.mxu0 0.0
    %3224 = vmatpush.msra.mxu0 0.0
    %3225 = vmatpush.msra.mxu0 0.0
    %3226 = vmatpush.msra.mxu0 0.0
    %3227 = vmatpush.msra.mxu0 %v3202
    %3228 = vmatmul.f32.gmra.mxu0 %v3210
    %v3229 = vpop.f32.mrf.mxu0
    %v3230 = vadd.f32 0.0, %v3229
    %3231 = vdwg.mxu0
    %v3233 = vsel %vm1071, %v2500, 0
    %3235 = vmatpush.msra.mxu0 0.0
    %3236 = vmatpush.msra.mxu0 0.0
    %3237 = vmatpush.msra.mxu0 0.0
    %3238 = vmatpush.msra.mxu0 0.0
    %3239 = vmatpush.msra.mxu0 0.0
    %3240 = vmatpush.msra.mxu0 0.0
    %3241 = vmatpush.msra.mxu0 0.0
    %3242 = vmatpush.msra.mxu0 0.0
    %3243 = vmatpush.msra.mxu0 0.0
    %3244 = vmatpush.msra.mxu0 0.0
    %3245 = vmatpush.msra.mxu0 0.0
    %3246 = vmatpush.msra.mxu0 0.0
    %3247 = vmatpush.msra.mxu0 0.0
    %3248 = vmatpush.msra.mxu0 0.0
    %3249 = vmatpush.msra.mxu0 0.0
    %3250 = vmatpush.msra.mxu0 %v3204
    %3251 = vmatmul.f32.gmra.mxu0 %v3233
    %v3252 = vpop.f32.mrf.mxu0
    %v3253 = vadd.f32 0.0, %v3252
    %3254 = vdwg.mxu0
    %v3256 = vsel %vm1071, %v2502, 0
    %3258 = vmatpush.msra.mxu0 0.0
    %3259 = vmatpush.msra.mxu0 0.0
    %3260 = vmatpush.msra.mxu0 0.0
    %3261 = vmatpush.msra.mxu0 0.0
    %3262 = vmatpush.msra.mxu0 0.0
    %3263 = vmatpush.msra.mxu0 0.0
    %3264 = vmatpush.msra.mxu0 0.0
    %3265 = vmatpush.msra.mxu0 0.0
    %3266 = vmatpush.msra.mxu0 0.0
    %3267 = vmatpush.msra.mxu0 0.0
    %3268 = vmatpush.msra.mxu0 0.0
    %3269 = vmatpush.msra.mxu0 0.0
    %3270 = vmatpush.msra.mxu0 0.0
    %3271 = vmatpush.msra.mxu0 0.0
    %3272 = vmatpush.msra.mxu0 0.0
    %3273 = vmatpush.msra.mxu0 %v3206
    %3274 = vmatmul.f32.gmra.mxu0 %v3256
    %v3275 = vpop.f32.mrf.mxu0
    %v3276 = vadd.f32 0.0, %v3275
    %3277 = vdwg.mxu0
    %v3279 = vsel %vm1071, %v2504, 0
    %3281 = vmatpush.msra.mxu0 0.0
    %3282 = vmatpush.msra.mxu0 0.0
    %3283 = vmatpush.msra.mxu0 0.0
    %3284 = vmatpush.msra.mxu0 0.0
    %3285 = vmatpush.msra.mxu0 0.0
    %3286 = vmatpush.msra.mxu0 0.0
    %3287 = vmatpush.msra.mxu0 0.0
    %3288 = vmatpush.msra.mxu0 0.0
    %3289 = vmatpush.msra.mxu0 0.0
    %3290 = vmatpush.msra.mxu0 0.0
    %3291 = vmatpush.msra.mxu0 0.0
    %3292 = vmatpush.msra.mxu0 0.0
    %3293 = vmatpush.msra.mxu0 0.0
    %3294 = vmatpush.msra.mxu0 0.0
    %3295 = vmatpush.msra.mxu0 0.0
    %3296 = vmatpush.msra.mxu0 %v3208
    %3297 = vmatmul.f32.gmra.mxu0 %v3279
    %v3298 = vpop.f32.mrf.mxu0
    %v3299 = vadd.f32 0.0, %v3298
    %3300 = vdwg.mxu0
    %v3301 = vsel %vm1071, %v3230, -inf
    %3302 = vmax.xlane.f32.xlu0 %v3301
    %v3303 = vpop.xlane.xlu0 %3302
    %v3304 = vsel %vm1071, %v3253, -inf
    %3305 = vmax.xlane.f32.xlu0 %v3304
    %v3306 = vpop.xlane.xlu0 %3305
    %v3307 = vsel %vm1071, %v3276, -inf
    %3308 = vmax.xlane.f32.xlu0 %v3307
    %v3309 = vpop.xlane.xlu0 %3308
    %v3310 = vsel %vm1071, %v3299, -inf
    %3311 = vmax.xlane.f32.xlu0 %v3310
    %v3312 = vpop.xlane.xlu0 %3311
    %v3313 = vsub.f32 %v3230, %v3303
    %v3314 = vsub.f32 %v3253, %v3306
    %v3315 = vsub.f32 %v3276, %v3309
    %v3316 = vsub.f32 %v3299, %v3312
    %v3317 = vmul.f32 %v3313, 1.442695
    %v3318 = vpow.pop %v3317
    %v3319 = vmul.f32 %v3314, 1.442695
    %v3320 = vpow.pop %v3319
    %v3321 = vmul.f32 %v3315, 1.442695
    %v3322 = vpow.pop %v3321
    %v3323 = vmul.f32 %v3316, 1.442695
    %v3324 = vpow.pop %v3323
    %v3325 = vsel %vm1071, %v3318, 0.0
    %3326 = vadd.xlane.f32.xlu0 %v3325
    %v3327 = vpop.xlane.xlu0 %3326
    %v3328 = vsel %vm1071, %v3320, 0.0
    %3329 = vadd.xlane.f32.xlu0 %v3328
    %v3330 = vpop.xlane.xlu0 %3329
    %v3331 = vsel %vm1071, %v3322, 0.0
    %3332 = vadd.xlane.f32.xlu0 %v3331
    %v3333 = vpop.xlane.xlu0 %3332
    %v3334 = vsel %vm1071, %v3324, 0.0
    %3335 = vadd.xlane.f32.xlu0 %v3334
    %v3336 = vpop.xlane.xlu0 %3335
    %v3337 = vrcp.pop %v3327
    %v3338 = vrcp.pop %v3330
    %v3339 = vrcp.pop %v3333
    %v3340 = vrcp.pop %v3336
    %v3341 = vmul.f32 %v3318, %v3337
    %v3342 = vmul.f32 %v3320, %v3338
    %v3343 = vmul.f32 %v3322, %v3339
    %v3344 = vmul.f32 %v3324, %v3340
    %3345 = vxpose.xlu0.b32.start [1/16] %v2424, 128
    %3346 = vxpose.xlu0.b32.cont [2/16] 0.0, 128
    %3347 = vxpose.xlu0.b32.cont [3/16] 0.0, 128
    %3348 = vxpose.xlu0.b32.cont [4/16] 0.0, 128
    %3349 = vxpose.xlu0.b32.cont [5/16] 0.0, 128
    %3350 = vxpose.xlu0.b32.cont [6/16] 0.0, 128
    %3351 = vxpose.xlu0.b32.cont [7/16] 0.0, 128
    %3352 = vxpose.xlu0.b32.cont [8/16] 0.0, 128
    %3353 = vxpose.xlu0.b32.cont [9/16] 0.0, 128
    %3354 = vxpose.xlu0.b32.cont [10/16] 0.0, 128
    %3355 = vxpose.xlu0.b32.cont [11/16] 0.0, 128
    %3356 = vxpose.xlu0.b32.cont [12/16] 0.0, 128
    %3357 = vxpose.xlu0.b32.cont [13/16] 0.0, 128
    %3358 = vxpose.xlu0.b32.cont [14/16] 0.0, 128
    %3359 = vxpose.xlu0.b32.cont [15/16] 0.0, 128
    %3360 = vxpose.xlu0.b32.end [16/16] 0.0, 128
    %v3361 = vpop.trf.xlu0
    %v3362 = vpop.trf.xlu0
    %v3363 = vpop.trf.xlu0
    %v3364 = vpop.trf.xlu0
    %v3365 = vpop.trf.xlu0
    %v3366 = vpop.trf.xlu0
    %v3367 = vpop.trf.xlu0
    %v3368 = vpop.trf.xlu0
    %v3369 = vpop.trf.xlu0
    %v3370 = vpop.trf.xlu0
    %v3371 = vpop.trf.xlu0
    %v3372 = vpop.trf.xlu0
    %v3373 = vpop.trf.xlu0
    %v3374 = vpop.trf.xlu0
    %v3375 = vpop.trf.xlu0
    %v3376 = vpop.trf.xlu0
    %3377 = vxpose.xlu0.b32.start [1/16] %v2442, 128
    %3378 = vxpose.xlu0.b32.cont [2/16] 0.0, 128
    %3379 = vxpose.xlu0.b32.cont [3/16] 0.0, 128
    %3380 = vxpose.xlu0.b32.cont [4/16] 0.0, 128
    %3381 = vxpose.xlu0.b32.cont [5/16] 0.0, 128
    %3382 = vxpose.xlu0.b32.cont [6/16] 0.0, 128
    %3383 = vxpose.xlu0.b32.cont [7/16] 0.0, 128
    %3384 = vxpose.xlu0.b32.cont [8/16] 0.0, 128
    %3385 = vxpose.xlu0.b32.cont [9/16] 0.0, 128
    %3386 = vxpose.xlu0.b32.cont [10/16] 0.0, 128
    %3387 = vxpose.xlu0.b32.cont [11/16] 0.0, 128
    %3388 = vxpose.xlu0.b32.cont [12/16] 0.0, 128
    %3389 = vxpose.xlu0.b32.cont [13/16] 0.0, 128
    %3390 = vxpose.xlu0.b32.cont [14/16] 0.0, 128
    %3391 = vxpose.xlu0.b32.cont [15/16] 0.0, 128
    %3392 = vxpose.xlu0.b32.end [16/16] 0.0, 128
    %v3393 = vpop.trf.xlu0
    %v3394 = vpop.trf.xlu0
    %v3395 = vpop.trf.xlu0
    %v3396 = vpop.trf.xlu0
    %v3397 = vpop.trf.xlu0
    %v3398 = vpop.trf.xlu0
    %v3399 = vpop.trf.xlu0
    %v3400 = vpop.trf.xlu0
    %v3401 = vpop.trf.xlu0
    %v3402 = vpop.trf.xlu0
    %v3403 = vpop.trf.xlu0
    %v3404 = vpop.trf.xlu0
    %v3405 = vpop.trf.xlu0
    %v3406 = vpop.trf.xlu0
    %v3407 = vpop.trf.xlu0
    %v3408 = vpop.trf.xlu0
    %3409 = vxpose.xlu0.b32.start [1/16] %v2428, 128
    %3410 = vxpose.xlu0.b32.cont [2/16] 0.0, 128
    %3411 = vxpose.xlu0.b32.cont [3/16] 0.0, 128
    %3412 = vxpose.xlu0.b32.cont [4/16] 0.0, 128
    %3413 = vxpose.xlu0.b32.cont [5/16] 0.0, 128
    %3414 = vxpose.xlu0.b32.cont [6/16] 0.0, 128
    %3415 = vxpose.xlu0.b32.cont [7/16] 0.0, 128
    %3416 = vxpose.xlu0.b32.cont [8/16] 0.0, 128
    %3417 = vxpose.xlu0.b32.cont [9/16] 0.0, 128
    %3418 = vxpose.xlu0.b32.cont [10/16] 0.0, 128
    %3419 = vxpose.xlu0.b32.cont [11/16] 0.0, 128
    %3420 = vxpose.xlu0.b32.cont [12/16] 0.0, 128
    %3421 = vxpose.xlu0.b32.cont [13/16] 0.0, 128
    %3422 = vxpose.xlu0.b32.cont [14/16] 0.0, 128
    %3423 = vxpose.xlu0.b32.cont [15/16] 0.0, 128
    %3424 = vxpose.xlu0.b32.end [16/16] 0.0, 128
    %v3425 = vpop.trf.xlu0
    %v3426 = vpop.trf.xlu0
    %v3427 = vpop.trf.xlu0
    %v3428 = vpop.trf.xlu0
    %v3429 = vpop.trf.xlu0
    %v3430 = vpop.trf.xlu0
    %v3431 = vpop.trf.xlu0
    %v3432 = vpop.trf.xlu0
    %v3433 = vpop.trf.xlu0
    %v3434 = vpop.trf.xlu0
    %v3435 = vpop.trf.xlu0
    %v3436 = vpop.trf.xlu0
    %v3437 = vpop.trf.xlu0
    %v3438 = vpop.trf.xlu0
    %v3439 = vpop.trf.xlu0
    %v3440 = vpop.trf.xlu0
    %3441 = vxpose.xlu0.b32.start [1/16] %v2444, 128
    %3442 = vxpose.xlu0.b32.cont [2/16] 0.0, 128
    %3443 = vxpose.xlu0.b32.cont [3/16] 0.0, 128
    %3444 = vxpose.xlu0.b32.cont [4/16] 0.0, 128
    %3445 = vxpose.xlu0.b32.cont [5/16] 0.0, 128
    %3446 = vxpose.xlu0.b32.cont [6/16] 0.0, 128
    %3447 = vxpose.xlu0.b32.cont [7/16] 0.0, 128
    %3448 = vxpose.xlu0.b32.cont [8/16] 0.0, 128
    %3449 = vxpose.xlu0.b32.cont [9/16] 0.0, 128
    %3450 = vxpose.xlu0.b32.cont [10/16] 0.0, 128
    %3451 = vxpose.xlu0.b32.cont [11/16] 0.0, 128
    %3452 = vxpose.xlu0.b32.cont [12/16] 0.0, 128
    %3453 = vxpose.xlu0.b32.cont [13/16] 0.0, 128
    %3454 = vxpose.xlu0.b32.cont [14/16] 0.0, 128
    %3455 = vxpose.xlu0.b32.cont [15/16] 0.0, 128
    %3456 = vxpose.xlu0.b32.end [16/16] 0.0, 128
    %v3457 = vpop.trf.xlu0
    %v3458 = vpop.trf.xlu0
    %v3459 = vpop.trf.xlu0
    %v3460 = vpop.trf.xlu0
    %v3461 = vpop.trf.xlu0
    %v3462 = vpop.trf.xlu0
    %v3463 = vpop.trf.xlu0
    %v3464 = vpop.trf.xlu0
    %v3465 = vpop.trf.xlu0
    %v3466 = vpop.trf.xlu0
    %v3467 = vpop.trf.xlu0
    %v3468 = vpop.trf.xlu0
    %v3469 = vpop.trf.xlu0
    %v3470 = vpop.trf.xlu0
    %v3471 = vpop.trf.xlu0
    %v3472 = vpop.trf.xlu0
    %3473 = vxpose.xlu0.b32.start [1/16] %v2436, 128
    %3474 = vxpose.xlu0.b32.cont [2/16] 0.0, 128
    %3475 = vxpose.xlu0.b32.cont [3/16] 0.0, 128
    %3476 = vxpose.xlu0.b32.cont [4/16] 0.0, 128
    %3477 = vxpose.xlu0.b32.cont [5/16] 0.0, 128
    %3478 = vxpose.xlu0.b32.cont [6/16] 0.0, 128
    %3479 = vxpose.xlu0.b32.cont [7/16] 0.0, 128
    %3480 = vxpose.xlu0.b32.cont [8/16] 0.0, 128
    %3481 = vxpose.xlu0.b32.cont [9/16] 0.0, 128
    %3482 = vxpose.xlu0.b32.cont [10/16] 0.0, 128
    %3483 = vxpose.xlu0.b32.cont [11/16] 0.0, 128
    %3484 = vxpose.xlu0.b32.cont [12/16] 0.0, 128
    %3485 = vxpose.xlu0.b32.cont [13/16] 0.0, 128
    %3486 = vxpose.xlu0.b32.cont [14/16] 0.0, 128
    %3487 = vxpose.xlu0.b32.cont [15/16] 0.0, 128
    %3488 = vxpose.xlu0.b32.end [16/16] 0.0, 128
    %v3489 = vpop.trf.xlu0
    %v3490 = vpop.trf.xlu0
    %v3491 = vpop.trf.xlu0
    %v3492 = vpop.trf.xlu0
    %v3493 = vpop.trf.xlu0
    %v3494 = vpop.trf.xlu0
    %v3495 = vpop.trf.xlu0
    %v3496 = vpop.trf.xlu0
    %v3497 = vpop.trf.xlu0
    %v3498 = vpop.trf.xlu0
    %v3499 = vpop.trf.xlu0
    %v3500 = vpop.trf.xlu0
    %v3501 = vpop.trf.xlu0
    %v3502 = vpop.trf.xlu0
    %v3503 = vpop.trf.xlu0
    %v3504 = vpop.trf.xlu0
    %3505 = vxpose.xlu0.b32.start [1/16] %v2446, 128
    %3506 = vxpose.xlu0.b32.cont [2/16] 0.0, 128
    %3507 = vxpose.xlu0.b32.cont [3/16] 0.0, 128
    %3508 = vxpose.xlu0.b32.cont [4/16] 0.0, 128
    %3509 = vxpose.xlu0.b32.cont [5/16] 0.0, 128
    %3510 = vxpose.xlu0.b32.cont [6/16] 0.0, 128
    %3511 = vxpose.xlu0.b32.cont [7/16] 0.0, 128
    %3512 = vxpose.xlu0.b32.cont [8/16] 0.0, 128
    %3513 = vxpose.xlu0.b32.cont [9/16] 0.0, 128
    %3514 = vxpose.xlu0.b32.cont [10/16] 0.0, 128
    %3515 = vxpose.xlu0.b32.cont [11/16] 0.0, 128
    %3516 = vxpose.xlu0.b32.cont [12/16] 0.0, 128
    %3517 = vxpose.xlu0.b32.cont [13/16] 0.0, 128
    %3518 = vxpose.xlu0.b32.cont [14/16] 0.0, 128
    %3519 = vxpose.xlu0.b32.cont [15/16] 0.0, 128
    %3520 = vxpose.xlu0.b32.end [16/16] 0.0, 128
    %v3521 = vpop.trf.xlu0
    %v3522 = vpop.trf.xlu0
    %v3523 = vpop.trf.xlu0
    %v3524 = vpop.trf.xlu0
    %v3525 = vpop.trf.xlu0
    %v3526 = vpop.trf.xlu0
    %v3527 = vpop.trf.xlu0
    %v3528 = vpop.trf.xlu0
    %v3529 = vpop.trf.xlu0
    %v3530 = vpop.trf.xlu0
    %v3531 = vpop.trf.xlu0
    %v3532 = vpop.trf.xlu0
    %v3533 = vpop.trf.xlu0
    %v3534 = vpop.trf.xlu0
    %v3535 = vpop.trf.xlu0
    %v3536 = vpop.trf.xlu0
    %3537 = vxpose.xlu0.b32.start [1/16] %v2440, 128
    %3538 = vxpose.xlu0.b32.cont [2/16] 0.0, 128
    %3539 = vxpose.xlu0.b32.cont [3/16] 0.0, 128
    %3540 = vxpose.xlu0.b32.cont [4/16] 0.0, 128
    %3541 = vxpose.xlu0.b32.cont [5/16] 0.0, 128
    %3542 = vxpose.xlu0.b32.cont [6/16] 0.0, 128
    %3543 = vxpose.xlu0.b32.cont [7/16] 0.0, 128
    %3544 = vxpose.xlu0.b32.cont [8/16] 0.0, 128
    %3545 = vxpose.xlu0.b32.cont [9/16] 0.0, 128
    %3546 = vxpose.xlu0.b32.cont [10/16] 0.0, 128
    %3547 = vxpose.xlu0.b32.cont [11/16] 0.0, 128
    %3548 = vxpose.xlu0.b32.cont [12/16] 0.0, 128
    %3549 = vxpose.xlu0.b32.cont [13/16] 0.0, 128
    %3550 = vxpose.xlu0.b32.cont [14/16] 0.0, 128
    %3551 = vxpose.xlu0.b32.cont [15/16] 0.0, 128
    %3552 = vxpose.xlu0.b32.end [16/16] 0.0, 128
    %v3553 = vpop.trf.xlu0
    %v3554 = vpop.trf.xlu0
    %v3555 = vpop.trf.xlu0
    %v3556 = vpop.trf.xlu0
    %v3557 = vpop.trf.xlu0
    %v3558 = vpop.trf.xlu0
    %v3559 = vpop.trf.xlu0
    %v3560 = vpop.trf.xlu0
    %v3561 = vpop.trf.xlu0
    %v3562 = vpop.trf.xlu0
    %v3563 = vpop.trf.xlu0
    %v3564 = vpop.trf.xlu0
    %v3565 = vpop.trf.xlu0
    %v3566 = vpop.trf.xlu0
    %v3567 = vpop.trf.xlu0
    %v3568 = vpop.trf.xlu0
    %3569 = vxpose.xlu0.b32.start [1/16] %v2448, 128
    %3570 = vxpose.xlu0.b32.cont [2/16] 0.0, 128
    %3571 = vxpose.xlu0.b32.cont [3/16] 0.0, 128
    %3572 = vxpose.xlu0.b32.cont [4/16] 0.0, 128
    %3573 = vxpose.xlu0.b32.cont [5/16] 0.0, 128
    %3574 = vxpose.xlu0.b32.cont [6/16] 0.0, 128
    %3575 = vxpose.xlu0.b32.cont [7/16] 0.0, 128
    %3576 = vxpose.xlu0.b32.cont [8/16] 0.0, 128
    %3577 = vxpose.xlu0.b32.cont [9/16] 0.0, 128
    %3578 = vxpose.xlu0.b32.cont [10/16] 0.0, 128
    %3579 = vxpose.xlu0.b32.cont [11/16] 0.0, 128
    %3580 = vxpose.xlu0.b32.cont [12/16] 0.0, 128
    %3581 = vxpose.xlu0.b32.cont [13/16] 0.0, 128
    %3582 = vxpose.xlu0.b32.cont [14/16] 0.0, 128
    %3583 = vxpose.xlu0.b32.cont [15/16] 0.0, 128
    %3584 = vxpose.xlu0.b32.end [16/16] 0.0, 128
    %v3585 = vpop.trf.xlu0
    %v3586 = vpop.trf.xlu0
    %v3587 = vpop.trf.xlu0
    %v3588 = vpop.trf.xlu0
    %v3589 = vpop.trf.xlu0
    %v3590 = vpop.trf.xlu0
    %v3591 = vpop.trf.xlu0
    %v3592 = vpop.trf.xlu0
    %v3593 = vpop.trf.xlu0
    %v3594 = vpop.trf.xlu0
    %v3595 = vpop.trf.xlu0
    %v3596 = vpop.trf.xlu0
    %v3597 = vpop.trf.xlu0
    %v3598 = vpop.trf.xlu0
    %v3599 = vpop.trf.xlu0
    %v3600 = vpop.trf.xlu0
    %v3601 = vrot.slane %v3425, 4
    %v3602 = vsel %vm143, %v3601, %v3361
    %v3603 = vrot.slane %v3361, 4
    %v3604 = vsel %vm143, %v3425, %v3603
    %v3606 = vunpack.c.l.s4 1983009808
    %v3607 = vunpack.c.0.s8 %v3606
    %v3608 = vperm.slane %v3602, %v3607
    %v3610 = vunpack.c.l.s4 1983009808
    %v3611 = vunpack.c.0.s8 %v3610
    %v3612 = vperm.slane %v3604, %v3611
    %v3613 = vrot.slane %v3457, 4
    %v3614 = vsel %vm143, %v3613, %v3393
    %v3615 = vrot.slane %v3393, 4
    %v3616 = vsel %vm143, %v3457, %v3615
    %v3618 = vunpack.c.l.s4 1983009808
    %v3619 = vunpack.c.0.s8 %v3618
    %v3620 = vperm.slane %v3614, %v3619
    %v3622 = vunpack.c.l.s4 1983009808
    %v3623 = vunpack.c.0.s8 %v3622
    %v3624 = vperm.slane %v3616, %v3623
    %v3625 = vrot.slane %v3553, 4
    %v3626 = vsel %vm143, %v3625, %v3489
    %v3627 = vrot.slane %v3489, 4
    %v3628 = vsel %vm143, %v3553, %v3627
    %v3630 = vunpack.c.l.s4 1983009808
    %v3631 = vunpack.c.0.s8 %v3630
    %v3632 = vperm.slane %v3626, %v3631
    %v3634 = vunpack.c.l.s4 1983009808
    %v3635 = vunpack.c.0.s8 %v3634
    %v3636 = vperm.slane %v3628, %v3635
    %v3637 = vrot.slane %v3585, 4
    %v3638 = vsel %vm143, %v3637, %v3521
    %v3639 = vrot.slane %v3521, 4
    %v3640 = vsel %vm143, %v3585, %v3639
    %v3642 = vunpack.c.l.s4 1983009808
    %v3643 = vunpack.c.0.s8 %v3642
    %v3644 = vperm.slane %v3638, %v3643
    %v3646 = vunpack.c.l.s4 1983009808
    %v3647 = vunpack.c.0.s8 %v3646
    %v3648 = vperm.slane %v3640, %v3647
    %v3649 = vrot.slane %v3620, 4
    %v3650 = vsel %vm143, %v3649, %v3608
    %v3651 = vrot.slane %v3608, 4
    %v3652 = vsel %vm143, %v3620, %v3651
    %v3654 = vunpack.c.l.s4 1934713408
    %v3655 = vunpack.c.0.s8 %v3654
    %v3656 = vperm.slane %v3650, %v3655
    %v3658 = vunpack.c.l.s4 1934713408
    %v3659 = vunpack.c.0.s8 %v3658
    %v3660 = vperm.slane %v3652, %v3659
    %v3661 = vrot.slane %v3624, 4
    %v3662 = vsel %vm143, %v3661, %v3612
    %v3663 = vrot.slane %v3612, 4
    %v3664 = vsel %vm143, %v3624, %v3663
    %v3666 = vunpack.c.l.s4 1934713408
    %v3667 = vunpack.c.0.s8 %v3666
    %v3668 = vperm.slane %v3662, %v3667
    %v3670 = vunpack.c.l.s4 1934713408
    %v3671 = vunpack.c.0.s8 %v3670
    %v3672 = vperm.slane %v3664, %v3671
    %v3673 = vrot.slane %v3644, 4
    %v3674 = vsel %vm143, %v3673, %v3632
    %v3675 = vrot.slane %v3632, 4
    %v3676 = vsel %vm143, %v3644, %v3675
    %v3678 = vunpack.c.l.s4 1934713408
    %v3679 = vunpack.c.0.s8 %v3678
    %v3680 = vperm.slane %v3674, %v3679
    %v3682 = vunpack.c.l.s4 1934713408
    %v3683 = vunpack.c.0.s8 %v3682
    %v3684 = vperm.slane %v3676, %v3683
    %v3685 = vrot.slane %v3648, 4
    %v3686 = vsel %vm143, %v3685, %v3636
    %v3687 = vrot.slane %v3636, 4
    %v3688 = vsel %vm143, %v3648, %v3687
    %v3690 = vunpack.c.l.s4 1934713408
    %v3691 = vunpack.c.0.s8 %v3690
    %v3692 = vperm.slane %v3686, %v3691
    %v3694 = vunpack.c.l.s4 1934713408
    %v3695 = vunpack.c.0.s8 %v3694
    %v3696 = vperm.slane %v3688, %v3695
    %v3697 = vrot.slane %v3680, 4
    %v3698 = vsel %vm143, %v3697, %v3656
    %v3699 = vrot.slane %v3656, 4
    %v3700 = vsel %vm143, %v3680, %v3699
    %v3701 = vrot.slane %v3684, 4
    %v3702 = vsel %vm143, %v3701, %v3660
    %v3703 = vrot.slane %v3660, 4
    %v3704 = vsel %vm143, %v3684, %v3703
    %v3705 = vrot.slane %v3692, 4
    %v3706 = vsel %vm143, %v3705, %v3668
    %v3707 = vrot.slane %v3668, 4
    %v3708 = vsel %vm143, %v3692, %v3707
    %v3709 = vrot.slane %v3696, 4
    %v3710 = vsel %vm143, %v3709, %v3672
    %v3711 = vrot.slane %v3672, 4
    %v3712 = vsel %vm143, %v3696, %v3711
    %3713 = vxpose.xlu0.b32.start [1/16] %v3698, 128
    %3714 = vxpose.xlu0.b32.cont [2/16] 0.0, 128
    %3715 = vxpose.xlu0.b32.cont [3/16] 0.0, 128
    %3716 = vxpose.xlu0.b32.cont [4/16] 0.0, 128
    %3717 = vxpose.xlu0.b32.cont [5/16] 0.0, 128
    %3718 = vxpose.xlu0.b32.cont [6/16] 0.0, 128
    %3719 = vxpose.xlu0.b32.cont [7/16] 0.0, 128
    %3720 = vxpose.xlu0.b32.cont [8/16] 0.0, 128
    %3721 = vxpose.xlu0.b32.cont [9/16] 0.0, 128
    %3722 = vxpose.xlu0.b32.cont [10/16] 0.0, 128
    %3723 = vxpose.xlu0.b32.cont [11/16] 0.0, 128
    %3724 = vxpose.xlu0.b32.cont [12/16] 0.0, 128
    %3725 = vxpose.xlu0.b32.cont [13/16] 0.0, 128
    %3726 = vxpose.xlu0.b32.cont [14/16] 0.0, 128
    %3727 = vxpose.xlu0.b32.cont [15/16] 0.0, 128
    %3728 = vxpose.xlu0.b32.end [16/16] 0.0, 128
    %v3729 = vpop.trf.xlu0
    %v3730 = vpop.trf.xlu0
    %v3731 = vpop.trf.xlu0
    %v3732 = vpop.trf.xlu0
    %v3733 = vpop.trf.xlu0
    %v3734 = vpop.trf.xlu0
    %v3735 = vpop.trf.xlu0
    %v3736 = vpop.trf.xlu0
    %v3737 = vpop.trf.xlu0
    %v3738 = vpop.trf.xlu0
    %v3739 = vpop.trf.xlu0
    %v3740 = vpop.trf.xlu0
    %v3741 = vpop.trf.xlu0
    %v3742 = vpop.trf.xlu0
    %v3743 = vpop.trf.xlu0
    %v3744 = vpop.trf.xlu0
    %3745 = vxpose.xlu0.b32.start [1/16] %v3700, 128
    %3746 = vxpose.xlu0.b32.cont [2/16] 0.0, 128
    %3747 = vxpose.xlu0.b32.cont [3/16] 0.0, 128
    %3748 = vxpose.xlu0.b32.cont [4/16] 0.0, 128
    %3749 = vxpose.xlu0.b32.cont [5/16] 0.0, 128
    %3750 = vxpose.xlu0.b32.cont [6/16] 0.0, 128
    %3751 = vxpose.xlu0.b32.cont [7/16] 0.0, 128
    %3752 = vxpose.xlu0.b32.cont [8/16] 0.0, 128
    %3753 = vxpose.xlu0.b32.cont [9/16] 0.0, 128
    %3754 = vxpose.xlu0.b32.cont [10/16] 0.0, 128
    %3755 = vxpose.xlu0.b32.cont [11/16] 0.0, 128
    %3756 = vxpose.xlu0.b32.cont [12/16] 0.0, 128
    %3757 = vxpose.xlu0.b32.cont [13/16] 0.0, 128
    %3758 = vxpose.xlu0.b32.cont [14/16] 0.0, 128
    %3759 = vxpose.xlu0.b32.cont [15/16] 0.0, 128
    %3760 = vxpose.xlu0.b32.end [16/16] 0.0, 128
    %v3761 = vpop.trf.xlu0
    %v3762 = vpop.trf.xlu0
    %v3763 = vpop.trf.xlu0
    %v3764 = vpop.trf.xlu0
    %v3765 = vpop.trf.xlu0
    %v3766 = vpop.trf.xlu0
    %v3767 = vpop.trf.xlu0
    %v3768 = vpop.trf.xlu0
    %v3769 = vpop.trf.xlu0
    %v3770 = vpop.trf.xlu0
    %v3771 = vpop.trf.xlu0
    %v3772 = vpop.trf.xlu0
    %v3773 = vpop.trf.xlu0
    %v3774 = vpop.trf.xlu0
    %v3775 = vpop.trf.xlu0
    %v3776 = vpop.trf.xlu0
    %3777 = vxpose.xlu0.b32.start [1/16] %v3702, 128
    %3778 = vxpose.xlu0.b32.cont [2/16] 0.0, 128
    %3779 = vxpose.xlu0.b32.cont [3/16] 0.0, 128
    %3780 = vxpose.xlu0.b32.cont [4/16] 0.0, 128
    %3781 = vxpose.xlu0.b32.cont [5/16] 0.0, 128
    %3782 = vxpose.xlu0.b32.cont [6/16] 0.0, 128
    %3783 = vxpose.xlu0.b32.cont [7/16] 0.0, 128
    %3784 = vxpose.xlu0.b32.cont [8/16] 0.0, 128
    %3785 = vxpose.xlu0.b32.cont [9/16] 0.0, 128
    %3786 = vxpose.xlu0.b32.cont [10/16] 0.0, 128
    %3787 = vxpose.xlu0.b32.cont [11/16] 0.0, 128
    %3788 = vxpose.xlu0.b32.cont [12/16] 0.0, 128
    %3789 = vxpose.xlu0.b32.cont [13/16] 0.0, 128
    %3790 = vxpose.xlu0.b32.cont [14/16] 0.0, 128
    %3791 = vxpose.xlu0.b32.cont [15/16] 0.0, 128
    %3792 = vxpose.xlu0.b32.end [16/16] 0.0, 128
    %v3793 = vpop.trf.xlu0
    %v3794 = vpop.trf.xlu0
    %v3795 = vpop.trf.xlu0
    %v3796 = vpop.trf.xlu0
    %v3797 = vpop.trf.xlu0
    %v3798 = vpop.trf.xlu0
    %v3799 = vpop.trf.xlu0
    %v3800 = vpop.trf.xlu0
    %v3801 = vpop.trf.xlu0
    %v3802 = vpop.trf.xlu0
    %v3803 = vpop.trf.xlu0
    %v3804 = vpop.trf.xlu0
    %v3805 = vpop.trf.xlu0
    %v3806 = vpop.trf.xlu0
    %v3807 = vpop.trf.xlu0
    %v3808 = vpop.trf.xlu0
    %3809 = vxpose.xlu0.b32.start [1/16] %v3704, 128
    %3810 = vxpose.xlu0.b32.cont [2/16] 0.0, 128
    %3811 = vxpose.xlu0.b32.cont [3/16] 0.0, 128
    %3812 = vxpose.xlu0.b32.cont [4/16] 0.0, 128
    %3813 = vxpose.xlu0.b32.cont [5/16] 0.0, 128
    %3814 = vxpose.xlu0.b32.cont [6/16] 0.0, 128
    %3815 = vxpose.xlu0.b32.cont [7/16] 0.0, 128
    %3816 = vxpose.xlu0.b32.cont [8/16] 0.0, 128
    %3817 = vxpose.xlu0.b32.cont [9/16] 0.0, 128
    %3818 = vxpose.xlu0.b32.cont [10/16] 0.0, 128
    %3819 = vxpose.xlu0.b32.cont [11/16] 0.0, 128
    %3820 = vxpose.xlu0.b32.cont [12/16] 0.0, 128
    %3821 = vxpose.xlu0.b32.cont [13/16] 0.0, 128
    %3822 = vxpose.xlu0.b32.cont [14/16] 0.0, 128
    %3823 = vxpose.xlu0.b32.cont [15/16] 0.0, 128
    %3824 = vxpose.xlu0.b32.end [16/16] 0.0, 128
    %v3825 = vpop.trf.xlu0
    %v3826 = vpop.trf.xlu0
    %v3827 = vpop.trf.xlu0
    %v3828 = vpop.trf.xlu0
    %v3829 = vpop.trf.xlu0
    %v3830 = vpop.trf.xlu0
    %v3831 = vpop.trf.xlu0
    %v3832 = vpop.trf.xlu0
    %v3833 = vpop.trf.xlu0
    %v3834 = vpop.trf.xlu0
    %v3835 = vpop.trf.xlu0
    %v3836 = vpop.trf.xlu0
    %v3837 = vpop.trf.xlu0
    %v3838 = vpop.trf.xlu0
    %v3839 = vpop.trf.xlu0
    %v3840 = vpop.trf.xlu0
    %3841 = vxpose.xlu0.b32.start [1/16] %v3706, 128
    %3842 = vxpose.xlu0.b32.cont [2/16] 0.0, 128
    %3843 = vxpose.xlu0.b32.cont [3/16] 0.0, 128
    %3844 = vxpose.xlu0.b32.cont [4/16] 0.0, 128
    %3845 = vxpose.xlu0.b32.cont [5/16] 0.0, 128
    %3846 = vxpose.xlu0.b32.cont [6/16] 0.0, 128
    %3847 = vxpose.xlu0.b32.cont [7/16] 0.0, 128
    %3848 = vxpose.xlu0.b32.cont [8/16] 0.0, 128
    %3849 = vxpose.xlu0.b32.cont [9/16] 0.0, 128
    %3850 = vxpose.xlu0.b32.cont [10/16] 0.0, 128
    %3851 = vxpose.xlu0.b32.cont [11/16] 0.0, 128
    %3852 = vxpose.xlu0.b32.cont [12/16] 0.0, 128
    %3853 = vxpose.xlu0.b32.cont [13/16] 0.0, 128
    %3854 = vxpose.xlu0.b32.cont [14/16] 0.0, 128
    %3855 = vxpose.xlu0.b32.cont [15/16] 0.0, 128
    %3856 = vxpose.xlu0.b32.end [16/16] 0.0, 128
    %v3857 = vpop.trf.xlu0
    %v3858 = vpop.trf.xlu0
    %v3859 = vpop.trf.xlu0
    %v3860 = vpop.trf.xlu0
    %v3861 = vpop.trf.xlu0
    %v3862 = vpop.trf.xlu0
    %v3863 = vpop.trf.xlu0
    %v3864 = vpop.trf.xlu0
    %v3865 = vpop.trf.xlu0
    %v3866 = vpop.trf.xlu0
    %v3867 = vpop.trf.xlu0
    %v3868 = vpop.trf.xlu0
    %v3869 = vpop.trf.xlu0
    %v3870 = vpop.trf.xlu0
    %v3871 = vpop.trf.xlu0
    %v3872 = vpop.trf.xlu0
    %3873 = vxpose.xlu0.b32.start [1/16] %v3708, 128
    %3874 = vxpose.xlu0.b32.cont [2/16] 0.0, 128
    %3875 = vxpose.xlu0.b32.cont [3/16] 0.0, 128
    %3876 = vxpose.xlu0.b32.cont [4/16] 0.0, 128
    %3877 = vxpose.xlu0.b32.cont [5/16] 0.0, 128
    %3878 = vxpose.xlu0.b32.cont [6/16] 0.0, 128
    %3879 = vxpose.xlu0.b32.cont [7/16] 0.0, 128
    %3880 = vxpose.xlu0.b32.cont [8/16] 0.0, 128
    %3881 = vxpose.xlu0.b32.cont [9/16] 0.0, 128
    %3882 = vxpose.xlu0.b32.cont [10/16] 0.0, 128
    %3883 = vxpose.xlu0.b32.cont [11/16] 0.0, 128
    %3884 = vxpose.xlu0.b32.cont [12/16] 0.0, 128
    %3885 = vxpose.xlu0.b32.cont [13/16] 0.0, 128
    %3886 = vxpose.xlu0.b32.cont [14/16] 0.0, 128
    %3887 = vxpose.xlu0.b32.cont [15/16] 0.0, 128
    %3888 = vxpose.xlu0.b32.end [16/16] 0.0, 128
    %v3889 = vpop.trf.xlu0
    %v3890 = vpop.trf.xlu0
    %v3891 = vpop.trf.xlu0
    %v3892 = vpop.trf.xlu0
    %v3893 = vpop.trf.xlu0
    %v3894 = vpop.trf.xlu0
    %v3895 = vpop.trf.xlu0
    %v3896 = vpop.trf.xlu0
    %v3897 = vpop.trf.xlu0
    %v3898 = vpop.trf.xlu0
    %v3899 = vpop.trf.xlu0
    %v3900 = vpop.trf.xlu0
    %v3901 = vpop.trf.xlu0
    %v3902 = vpop.trf.xlu0
    %v3903 = vpop.trf.xlu0
    %v3904 = vpop.trf.xlu0
    %3905 = vxpose.xlu0.b32.start [1/16] %v3710, 128
    %3906 = vxpose.xlu0.b32.cont [2/16] 0.0, 128
    %3907 = vxpose.xlu0.b32.cont [3/16] 0.0, 128
    %3908 = vxpose.xlu0.b32.cont [4/16] 0.0, 128
    %3909 = vxpose.xlu0.b32.cont [5/16] 0.0, 128
    %3910 = vxpose.xlu0.b32.cont [6/16] 0.0, 128
    %3911 = vxpose.xlu0.b32.cont [7/16] 0.0, 128
    %3912 = vxpose.xlu0.b32.cont [8/16] 0.0, 128
    %3913 = vxpose.xlu0.b32.cont [9/16] 0.0, 128
    %3914 = vxpose.xlu0.b32.cont [10/16] 0.0, 128
    %3915 = vxpose.xlu0.b32.cont [11/16] 0.0, 128
    %3916 = vxpose.xlu0.b32.cont [12/16] 0.0, 128
    %3917 = vxpose.xlu0.b32.cont [13/16] 0.0, 128
    %3918 = vxpose.xlu0.b32.cont [14/16] 0.0, 128
    %3919 = vxpose.xlu0.b32.cont [15/16] 0.0, 128
    %3920 = vxpose.xlu0.b32.end [16/16] 0.0, 128
    %v3921 = vpop.trf.xlu0
    %v3922 = vpop.trf.xlu0
    %v3923 = vpop.trf.xlu0
    %v3924 = vpop.trf.xlu0
    %v3925 = vpop.trf.xlu0
    %v3926 = vpop.trf.xlu0
    %v3927 = vpop.trf.xlu0
    %v3928 = vpop.trf.xlu0
    %v3929 = vpop.trf.xlu0
    %v3930 = vpop.trf.xlu0
    %v3931 = vpop.trf.xlu0
    %v3932 = vpop.trf.xlu0
    %v3933 = vpop.trf.xlu0
    %v3934 = vpop.trf.xlu0
    %v3935 = vpop.trf.xlu0
    %v3936 = vpop.trf.xlu0
    %3937 = vxpose.xlu0.b32.start [1/16] %v3712, 128
    %3938 = vxpose.xlu0.b32.cont [2/16] 0.0, 128
    %3939 = vxpose.xlu0.b32.cont [3/16] 0.0, 128
    %3940 = vxpose.xlu0.b32.cont [4/16] 0.0, 128
    %3941 = vxpose.xlu0.b32.cont [5/16] 0.0, 128
    %3942 = vxpose.xlu0.b32.cont [6/16] 0.0, 128
    %3943 = vxpose.xlu0.b32.cont [7/16] 0.0, 128
    %3944 = vxpose.xlu0.b32.cont [8/16] 0.0, 128
    %3945 = vxpose.xlu0.b32.cont [9/16] 0.0, 128
    %3946 = vxpose.xlu0.b32.cont [10/16] 0.0, 128
    %3947 = vxpose.xlu0.b32.cont [11/16] 0.0, 128
    %3948 = vxpose.xlu0.b32.cont [12/16] 0.0, 128
    %3949 = vxpose.xlu0.b32.cont [13/16] 0.0, 128
    %3950 = vxpose.xlu0.b32.cont [14/16] 0.0, 128
    %3951 = vxpose.xlu0.b32.cont [15/16] 0.0, 128
    %3952 = vxpose.xlu0.b32.end [16/16] 0.0, 128
    %v3953 = vpop.trf.xlu0
    %v3954 = vpop.trf.xlu0
    %v3955 = vpop.trf.xlu0
    %v3956 = vpop.trf.xlu0
    %v3957 = vpop.trf.xlu0
    %v3958 = vpop.trf.xlu0
    %v3959 = vpop.trf.xlu0
    %v3960 = vpop.trf.xlu0
    %v3961 = vpop.trf.xlu0
    %v3962 = vpop.trf.xlu0
    %v3963 = vpop.trf.xlu0
    %v3964 = vpop.trf.xlu0
    %v3965 = vpop.trf.xlu0
    %v3966 = vpop.trf.xlu0
    %v3967 = vpop.trf.xlu0
    %v3968 = vpop.trf.xlu0
    %v3969 = vrot.slane %v3793, 4
    %v3970 = vsel %vm143, %v3969, %v3729
    %v3972 = vunpack.c.l.s4 1983009808
    %v3973 = vunpack.c.0.s8 %v3972
    %v3974 = vperm.slane %v3970, %v3973
    %v3975 = vrot.slane %v3825, 4
    %v3976 = vsel %vm143, %v3975, %v3761
    %v3978 = vunpack.c.l.s4 1983009808
    %v3979 = vunpack.c.0.s8 %v3978
    %v3980 = vperm.slane %v3976, %v3979
    %v3981 = vrot.slane %v3921, 4
    %v3982 = vsel %vm143, %v3981, %v3857
    %v3984 = vunpack.c.l.s4 1983009808
    %v3985 = vunpack.c.0.s8 %v3984
    %v3986 = vperm.slane %v3982, %v3985
    %v3987 = vrot.slane %v3953, 4
    %v3988 = vsel %vm143, %v3987, %v3889
    %v3990 = vunpack.c.l.s4 1983009808
    %v3991 = vunpack.c.0.s8 %v3990
    %v3992 = vperm.slane %v3988, %v3991
    %v3993 = vrot.slane %v3980, 4
    %v3994 = vsel %vm143, %v3993, %v3974
    %v3995 = vrot.slane %v3974, 4
    %v3996 = vsel %vm143, %v3980, %v3995
    %v3998 = vunpack.c.l.s4 1934713408
    %v3999 = vunpack.c.0.s8 %v3998
    %v4000 = vperm.slane %v3994, %v3999
    %v4002 = vunpack.c.l.s4 1934713408
    %v4003 = vunpack.c.0.s8 %v4002
    %v4004 = vperm.slane %v3996, %v4003
    %v4005 = vrot.slane %v3992, 4
    %v4006 = vsel %vm143, %v4005, %v3986
    %v4007 = vrot.slane %v3986, 4
    %v4008 = vsel %vm143, %v3992, %v4007
    %v4010 = vunpack.c.l.s4 1934713408
    %v4011 = vunpack.c.0.s8 %v4010
    %v4012 = vperm.slane %v4006, %v4011
    %v4014 = vunpack.c.l.s4 1934713408
    %v4015 = vunpack.c.0.s8 %v4014
    %v4016 = vperm.slane %v4008, %v4015
    %v4017 = vrot.slane %v4012, 4
    %v4018 = vsel %vm143, %v4017, %v4000
    %v4019 = vrot.slane %v4000, 4
    %v4020 = vsel %vm143, %v4012, %v4019
    %v4021 = vrot.slane %v4016, 4
    %v4022 = vsel %vm143, %v4021, %v4004
    %v4023 = vrot.slane %v4004, 4
    %v4024 = vsel %vm143, %v4016, %v4023
    %v4026 = vsel %vm1071, %v4018, 0
    %v4029 = vsel %vm1071, %v3341, 0
    %4031 = vmatpush.xpose.msra.mxu0 0.0
    %4032 = vmatpush.xpose.msra.mxu0 0.0
    %4033 = vmatpush.xpose.msra.mxu0 0.0
    %4034 = vmatpush.xpose.msra.mxu0 0.0
    %4035 = vmatpush.xpose.msra.mxu0 0.0
    %4036 = vmatpush.xpose.msra.mxu0 0.0
    %4037 = vmatpush.xpose.msra.mxu0 0.0
    %4038 = vmatpush.xpose.msra.mxu0 0.0
    %4039 = vmatpush.xpose.msra.mxu0 0.0
    %4040 = vmatpush.xpose.msra.mxu0 0.0
    %4041 = vmatpush.xpose.msra.mxu0 0.0
    %4042 = vmatpush.xpose.msra.mxu0 0.0
    %4043 = vmatpush.xpose.msra.mxu0 0.0
    %4044 = vmatpush.xpose.msra.mxu0 0.0
    %4045 = vmatpush.xpose.msra.mxu0 0.0
    %4046 = vmatpush.xpose.msra.mxu0 %v4029
    %4047 = vmatmul.f32.gmra.mxu0 %v4026
    %v4048 = vpop.f32.mrf.mxu0
    %v4049 = vadd.f32 0.0, %v4048
    %4050 = vdwg.mxu0
    %v4052 = vsel %vm1071, %v4020, 0
    %v4055 = vsel %vm1071, %v3342, 0
    %4057 = vmatpush.xpose.msra.mxu0 0.0
    %4058 = vmatpush.xpose.msra.mxu0 0.0
    %4059 = vmatpush.xpose.msra.mxu0 0.0
    %4060 = vmatpush.xpose.msra.mxu0 0.0
    %4061 = vmatpush.xpose.msra.mxu0 0.0
    %4062 = vmatpush.xpose.msra.mxu0 0.0
    %4063 = vmatpush.xpose.msra.mxu0 0.0
    %4064 = vmatpush.xpose.msra.mxu0 0.0
    %4065 = vmatpush.xpose.msra.mxu0 0.0
    %4066 = vmatpush.xpose.msra.mxu0 0.0
    %4067 = vmatpush.xpose.msra.mxu0 0.0
    %4068 = vmatpush.xpose.msra.mxu0 0.0
    %4069 = vmatpush.xpose.msra.mxu0 0.0
    %4070 = vmatpush.xpose.msra.mxu0 0.0
    %4071 = vmatpush.xpose.msra.mxu0 0.0
    %4072 = vmatpush.xpose.msra.mxu0 %v4055
    %4073 = vmatmul.f32.gmra.mxu0 %v4052
    %v4074 = vpop.f32.mrf.mxu0
    %v4075 = vadd.f32 0.0, %v4074
    %4076 = vdwg.mxu0
    %v4078 = vsel %vm1071, %v4022, 0
    %v4081 = vsel %vm1071, %v3343, 0
    %4083 = vmatpush.xpose.msra.mxu0 0.0
    %4084 = vmatpush.xpose.msra.mxu0 0.0
    %4085 = vmatpush.xpose.msra.mxu0 0.0
    %4086 = vmatpush.xpose.msra.mxu0 0.0
    %4087 = vmatpush.xpose.msra.mxu0 0.0
    %4088 = vmatpush.xpose.msra.mxu0 0.0
    %4089 = vmatpush.xpose.msra.mxu0 0.0
    %4090 = vmatpush.xpose.msra.mxu0 0.0
    %4091 = vmatpush.xpose.msra.mxu0 0.0
    %4092 = vmatpush.xpose.msra.mxu0 0.0
    %4093 = vmatpush.xpose.msra.mxu0 0.0
    %4094 = vmatpush.xpose.msra.mxu0 0.0
    %4095 = vmatpush.xpose.msra.mxu0 0.0
    %4096 = vmatpush.xpose.msra.mxu0 0.0
    %4097 = vmatpush.xpose.msra.mxu0 0.0
    %4098 = vmatpush.xpose.msra.mxu0 %v4081
    %4099 = vmatmul.f32.gmra.mxu0 %v4078
    %v4100 = vpop.f32.mrf.mxu0
    %v4101 = vadd.f32 0.0, %v4100
    %4102 = vdwg.mxu0
    %v4104 = vsel %vm1071, %v4024, 0
    %v4107 = vsel %vm1071, %v3344, 0
    %4109 = vmatpush.xpose.msra.mxu0 0.0
    %4110 = vmatpush.xpose.msra.mxu0 0.0
    %4111 = vmatpush.xpose.msra.mxu0 0.0
    %4112 = vmatpush.xpose.msra.mxu0 0.0
    %4113 = vmatpush.xpose.msra.mxu0 0.0
    %4114 = vmatpush.xpose.msra.mxu0 0.0
    %4115 = vmatpush.xpose.msra.mxu0 0.0
    %4116 = vmatpush.xpose.msra.mxu0 0.0
    %4117 = vmatpush.xpose.msra.mxu0 0.0
    %4118 = vmatpush.xpose.msra.mxu0 0.0
    %4119 = vmatpush.xpose.msra.mxu0 0.0
    %4120 = vmatpush.xpose.msra.mxu0 0.0
    %4121 = vmatpush.xpose.msra.mxu0 0.0
    %4122 = vmatpush.xpose.msra.mxu0 0.0
    %4123 = vmatpush.xpose.msra.mxu0 0.0
    %4124 = vmatpush.xpose.msra.mxu0 %v4107
    %4125 = vmatmul.f32.gmra.mxu0 %v4104
    %v4126 = vpop.f32.mrf.mxu0
    %v4127 = vadd.f32 0.0, %v4126
    %4128 = vdwg.mxu0
    %4129 = vxpose.xlu0.b32.start [1/16] %v4049, 128
    %4130 = vxpose.xlu0.b32.cont [2/16] 0.0, 128
    %4131 = vxpose.xlu0.b32.cont [3/16] 0.0, 128
    %4132 = vxpose.xlu0.b32.cont [4/16] 0.0, 128
    %4133 = vxpose.xlu0.b32.cont [5/16] 0.0, 128
    %4134 = vxpose.xlu0.b32.cont [6/16] 0.0, 128
    %4135 = vxpose.xlu0.b32.cont [7/16] 0.0, 128
    %4136 = vxpose.xlu0.b32.cont [8/16] 0.0, 128
    %4137 = vxpose.xlu0.b32.cont [9/16] 0.0, 128
    %4138 = vxpose.xlu0.b32.cont [10/16] 0.0, 128
    %4139 = vxpose.xlu0.b32.cont [11/16] 0.0, 128
    %4140 = vxpose.xlu0.b32.cont [12/16] 0.0, 128
    %4141 = vxpose.xlu0.b32.cont [13/16] 0.0, 128
    %4142 = vxpose.xlu0.b32.cont [14/16] 0.0, 128
    %4143 = vxpose.xlu0.b32.cont [15/16] 0.0, 128
    %4144 = vxpose.xlu0.b32.end [16/16] 0.0, 128
    %v4145 = vpop.trf.xlu0
    %v4146 = vpop.trf.xlu0
    %v4147 = vpop.trf.xlu0
    %v4148 = vpop.trf.xlu0
    %v4149 = vpop.trf.xlu0
    %v4150 = vpop.trf.xlu0
    %v4151 = vpop.trf.xlu0
    %v4152 = vpop.trf.xlu0
    %v4153 = vpop.trf.xlu0
    %v4154 = vpop.trf.xlu0
    %v4155 = vpop.trf.xlu0
    %v4156 = vpop.trf.xlu0
    %v4157 = vpop.trf.xlu0
    %v4158 = vpop.trf.xlu0
    %v4159 = vpop.trf.xlu0
    %v4160 = vpop.trf.xlu0
    %4161 = vxpose.xlu0.b32.start [1/16] %v4075, 128
    %4162 = vxpose.xlu0.b32.cont [2/16] 0.0, 128
    %4163 = vxpose.xlu0.b32.cont [3/16] 0.0, 128
    %4164 = vxpose.xlu0.b32.cont [4/16] 0.0, 128
    %4165 = vxpose.xlu0.b32.cont [5/16] 0.0, 128
    %4166 = vxpose.xlu0.b32.cont [6/16] 0.0, 128
    %4167 = vxpose.xlu0.b32.cont [7/16] 0.0, 128
    %4168 = vxpose.xlu0.b32.cont [8/16] 0.0, 128
    %4169 = vxpose.xlu0.b32.cont [9/16] 0.0, 128
    %4170 = vxpose.xlu0.b32.cont [10/16] 0.0, 128
    %4171 = vxpose.xlu0.b32.cont [11/16] 0.0, 128
    %4172 = vxpose.xlu0.b32.cont [12/16] 0.0, 128
    %4173 = vxpose.xlu0.b32.cont [13/16] 0.0, 128
    %4174 = vxpose.xlu0.b32.cont [14/16] 0.0, 128
    %4175 = vxpose.xlu0.b32.cont [15/16] 0.0, 128
    %4176 = vxpose.xlu0.b32.end [16/16] 0.0, 128
    %v4177 = vpop.trf.xlu0
    %v4178 = vpop.trf.xlu0
    %v4179 = vpop.trf.xlu0
    %v4180 = vpop.trf.xlu0
    %v4181 = vpop.trf.xlu0
    %v4182 = vpop.trf.xlu0
    %v4183 = vpop.trf.xlu0
    %v4184 = vpop.trf.xlu0
    %v4185 = vpop.trf.xlu0
    %v4186 = vpop.trf.xlu0
    %v4187 = vpop.trf.xlu0
    %v4188 = vpop.trf.xlu0
    %v4189 = vpop.trf.xlu0
    %v4190 = vpop.trf.xlu0
    %v4191 = vpop.trf.xlu0
    %v4192 = vpop.trf.xlu0
    %4193 = vxpose.xlu0.b32.start [1/16] %v4101, 128
    %4194 = vxpose.xlu0.b32.cont [2/16] 0.0, 128
    %4195 = vxpose.xlu0.b32.cont [3/16] 0.0, 128
    %4196 = vxpose.xlu0.b32.cont [4/16] 0.0, 128
    %4197 = vxpose.xlu0.b32.cont [5/16] 0.0, 128
    %4198 = vxpose.xlu0.b32.cont [6/16] 0.0, 128
    %4199 = vxpose.xlu0.b32.cont [7/16] 0.0, 128
    %4200 = vxpose.xlu0.b32.cont [8/16] 0.0, 128
    %4201 = vxpose.xlu0.b32.cont [9/16] 0.0, 128
    %4202 = vxpose.xlu0.b32.cont [10/16] 0.0, 128
    %4203 = vxpose.xlu0.b32.cont [11/16] 0.0, 128
    %4204 = vxpose.xlu0.b32.cont [12/16] 0.0, 128
    %4205 = vxpose.xlu0.b32.cont [13/16] 0.0, 128
    %4206 = vxpose.xlu0.b32.cont [14/16] 0.0, 128
    %4207 = vxpose.xlu0.b32.cont [15/16] 0.0, 128
    %4208 = vxpose.xlu0.b32.end [16/16] 0.0, 128
    %v4209 = vpop.trf.xlu0
    %v4210 = vpop.trf.xlu0
    %v4211 = vpop.trf.xlu0
    %v4212 = vpop.trf.xlu0
    %v4213 = vpop.trf.xlu0
    %v4214 = vpop.trf.xlu0
    %v4215 = vpop.trf.xlu0
    %v4216 = vpop.trf.xlu0
    %v4217 = vpop.trf.xlu0
    %v4218 = vpop.trf.xlu0
    %v4219 = vpop.trf.xlu0
    %v4220 = vpop.trf.xlu0
    %v4221 = vpop.trf.xlu0
    %v4222 = vpop.trf.xlu0
    %v4223 = vpop.trf.xlu0
    %v4224 = vpop.trf.xlu0
    %4225 = vxpose.xlu0.b32.start [1/16] %v4127, 128
    %4226 = vxpose.xlu0.b32.cont [2/16] 0.0, 128
    %4227 = vxpose.xlu0.b32.cont [3/16] 0.0, 128
    %4228 = vxpose.xlu0.b32.cont [4/16] 0.0, 128
    %4229 = vxpose.xlu0.b32.cont [5/16] 0.0, 128
    %4230 = vxpose.xlu0.b32.cont [6/16] 0.0, 128
    %4231 = vxpose.xlu0.b32.cont [7/16] 0.0, 128
    %4232 = vxpose.xlu0.b32.cont [8/16] 0.0, 128
    %4233 = vxpose.xlu0.b32.cont [9/16] 0.0, 128
    %4234 = vxpose.xlu0.b32.cont [10/16] 0.0, 128
    %4235 = vxpose.xlu0.b32.cont [11/16] 0.0, 128
    %4236 = vxpose.xlu0.b32.cont [12/16] 0.0, 128
    %4237 = vxpose.xlu0.b32.cont [13/16] 0.0, 128
    %4238 = vxpose.xlu0.b32.cont [14/16] 0.0, 128
    %4239 = vxpose.xlu0.b32.cont [15/16] 0.0, 128
    %4240 = vxpose.xlu0.b32.end [16/16] 0.0, 128
    %v4241 = vpop.trf.xlu0
    %v4242 = vpop.trf.xlu0
    %v4243 = vpop.trf.xlu0
    %v4244 = vpop.trf.xlu0
    %v4245 = vpop.trf.xlu0
    %v4246 = vpop.trf.xlu0
    %v4247 = vpop.trf.xlu0
    %v4248 = vpop.trf.xlu0
    %v4249 = vpop.trf.xlu0
    %v4250 = vpop.trf.xlu0
    %v4251 = vpop.trf.xlu0
    %v4252 = vpop.trf.xlu0
    %v4253 = vpop.trf.xlu0
    %v4254 = vpop.trf.xlu0
    %v4255 = vpop.trf.xlu0
    %v4256 = vpop.trf.xlu0
    %v4257 = vrot.slane %v4209, 4
    %v4258 = vsel %vm143, %v4257, %v4145
    %v4259 = vrot.slane %v4145, 4
    %v4260 = vsel %vm143, %v4209, %v4259
    %v4262 = vunpack.c.l.s4 1983009808
    %v4263 = vunpack.c.0.s8 %v4262
    %v4264 = vperm.slane %v4258, %v4263
    %v4266 = vunpack.c.l.s4 1983009808
    %v4267 = vunpack.c.0.s8 %v4266
    %v4268 = vperm.slane %v4260, %v4267
    %v4269 = vrot.slane %v4241, 4
    %v4270 = vsel %vm143, %v4269, %v4177
    %v4271 = vrot.slane %v4177, 4
    %v4272 = vsel %vm143, %v4241, %v4271
    %v4274 = vunpack.c.l.s4 1983009808
    %v4275 = vunpack.c.0.s8 %v4274
    %v4276 = vperm.slane %v4270, %v4275
    %v4278 = vunpack.c.l.s4 1983009808
    %v4279 = vunpack.c.0.s8 %v4278
    %v4280 = vperm.slane %v4272, %v4279
    %v4281 = vrot.slane %v4276, 4
    %v4282 = vsel %vm143, %v4281, %v4264
    %v4283 = vrot.slane %v4264, 4
    %v4284 = vsel %vm143, %v4276, %v4283
    %v4286 = vunpack.c.l.s4 1934713408
    %v4287 = vunpack.c.0.s8 %v4286
    %v4288 = vperm.slane %v4282, %v4287
    %v4290 = vunpack.c.l.s4 1934713408
    %v4291 = vunpack.c.0.s8 %v4290
    %v4292 = vperm.slane %v4284, %v4291
    %v4293 = vrot.slane %v4280, 4
    %v4294 = vsel %vm143, %v4293, %v4268
    %v4295 = vrot.slane %v4268, 4
    %v4296 = vsel %vm143, %v4280, %v4295
    %v4298 = vunpack.c.l.s4 1934713408
    %v4299 = vunpack.c.0.s8 %v4298
    %v4300 = vperm.slane %v4294, %v4299
    %v4302 = vunpack.c.l.s4 1934713408
    %v4303 = vunpack.c.0.s8 %v4302
    %v4304 = vperm.slane %v4296, %v4303
    %v4305 = vrot.slane %v4288, 4
    %v4306 = vsel %vm143, 0.0, %v4305
    %v4307 = vrot.slane %v4292, 4
    %v4308 = vsel %vm143, 0.0, %v4307
    %v4309 = vrot.slane %v4300, 4
    %v4310 = vsel %vm143, 0.0, %v4309
    %v4311 = vrot.slane %v4304, 4
    %v4312 = vsel %vm143, 0.0, %v4311
    %v4313 = vsel %vm143, %v4307, %v4288
    %v4315 = vunpack.c.l.s4 1983009808
    %v4316 = vunpack.c.0.s8 %v4315
    %v4317 = vperm.slane %v4313, %v4316
    %v4318 = vrot.slane %v4308, 4
    %v4319 = vsel %vm143, %v4318, %v4306
    %v4321 = vunpack.c.l.s4 1983009808
    %v4322 = vunpack.c.0.s8 %v4321
    %v4323 = vperm.slane %v4319, %v4322
    %v4324 = vsel %vm143, %v4311, %v4300
    %v4326 = vunpack.c.l.s4 1983009808
    %v4327 = vunpack.c.0.s8 %v4326
    %v4328 = vperm.slane %v4324, %v4327
    %v4329 = vrot.slane %v4312, 4
    %v4330 = vsel %vm143, %v4329, %v4310
    %v4332 = vunpack.c.l.s4 1983009808
    %v4333 = vunpack.c.0.s8 %v4332
    %v4334 = vperm.slane %v4330, %v4333
    %v4335 = vrot.slane %v4323, 4
    %v4336 = vsel %vm143, %v4335, %v4317
    %v4337 = vrot.slane %v4317, 4
    %v4338 = vsel %vm143, %v4323, %v4337
    %v4340 = vunpack.c.l.s4 1934713408
    %v4341 = vunpack.c.0.s8 %v4340
    %v4342 = vperm.slane %v4336, %v4341
    %v4344 = vunpack.c.l.s4 1934713408
    %v4345 = vunpack.c.0.s8 %v4344
    %v4346 = vperm.slane %v4338, %v4345
    %v4347 = vrot.slane %v4334, 4
    %v4348 = vsel %vm143, %v4347, %v4328
    %v4349 = vrot.slane %v4328, 4
    %v4350 = vsel %vm143, %v4334, %v4349
    %v4352 = vunpack.c.l.s4 1934713408
    %v4353 = vunpack.c.0.s8 %v4352
    %v4354 = vperm.slane %v4348, %v4353
    %v4356 = vunpack.c.l.s4 1934713408
    %v4357 = vunpack.c.0.s8 %v4356
    %v4358 = vperm.slane %v4350, %v4357
    %v4359 = vrot.slane %v4354, 4
    %v4360 = vsel %vm143, %v4359, %v4342
    %v4361 = vrot.slane %v4342, 4
    %v4362 = vsel %vm143, %v4354, %v4361
    %v4363 = vrot.slane %v4358, 4
    %v4364 = vsel %vm143, %v4363, %v4346
    %v4365 = vrot.slane %v4346, 4
    %v4366 = vsel %vm143, %v4358, %v4365
    %4368 = vrot.lane.b32.xlu0 %v4362, 8
    %v4369 = vpop.permute.xlu0 %4368
    %4372 = vrot.lane.b32.xlu0 %v4364, 16
    %v4373 = vpop.permute.xlu0 %4372
    %4376 = vrot.lane.b32.xlu0 %v4366, 24
    %v4377 = vpop.permute.xlu0 %4376
    %v4379 = vsel %vm1071, %v4360, %v4369
    %v4380 = vsel %vm2243, %v4379, %v4373
    %v4381 = vsel %vm2245, %v4380, %v4377
    %v4382 = vld [vmem:[#allocation7] sm:$0xff]
    %v4383 = vld [vmem:[#allocation7 + $0x8] sm:$0xff]
    %v4384 = vld [vmem:[#allocation7 + $0x10] sm:$0xff]
    %v4385 = vld [vmem:[#allocation7 + $0x18] sm:$0xff]
    %v4386 = vld [vmem:[%s4] sm:$0x1]
    %v4388 = vperm.slane %v4386, 0
    %v4391 = vsel %vm78, %v2246, 0
    %v4394 = vsel %vm78, %v4381, 0
    %4396 = vmatpush.msra.mxu0 0.0
    %4397 = vmatpush.msra.mxu0 0.0
    %4398 = vmatpush.msra.mxu0 0.0
    %4399 = vmatpush.msra.mxu0 0.0
    %4400 = vmatpush.msra.mxu0 0.0
    %4401 = vmatpush.msra.mxu0 0.0
    %4402 = vmatpush.msra.mxu0 0.0
    %4403 = vmatpush.msra.mxu0 0.0
    %4404 = vmatpush.msra.mxu0 0.0
    %4405 = vmatpush.msra.mxu0 0.0
    %4406 = vmatpush.msra.mxu0 0.0
    %4407 = vmatpush.msra.mxu0 0.0
    %4408 = vmatpush.msra.mxu0 %v4385
    %4409 = vmatpush.msra.mxu0 %v4384
    %4410 = vmatpush.msra.mxu0 %v4383
    %4411 = vmatpush.msra.mxu0 %v4382
    %4412 = vmatmul.f32.gmra.mxu0 %v4391
    %v4413 = vpop.f32.mrf.mxu0
    %v4414 = vadd.f32 %v4388, %v4413
    %4415 = vmatmul.f32.gmra.mxu0 %v4394
    %v4416 = vpop.f32.mrf.mxu0
    %v4417 = vadd.f32 %v4388, %v4416
    %4418 = vdwg.mxu0
    %4419 = vst.msk [vmem:[#allocation8] sm:$0xff] %vm78, %v4414
    %4420 = vst.msk [vmem:[#allocation8 + $0x8] sm:$0xff] %vm78, %v4417
    // Predicated region
    $region34: #{tpu_custom_call.1} parent=1 // pred_check
      _
    $region35: #{tpu_custom_call.1} parent=1 // pred_check_branch
      %4422 = sbr.rel (0) target = $region37
    $region36: #{tpu_custom_call.1} parent=1 // pred_region
      %4424 = vsyncadd [#allocation4], 0
      %s4425 = sshll.u32 [#allocation8], 4
      %s4426 = int_to_ptr.vmem [resolvable:$true] %s4425
      %s4427 = sshll.u32 %s5, 4
      %s4428 = int_to_ptr.hbm [resolvable:$true] %s4427
      %4433 = dma.vmem_to_hbm [thread:$0]  %s4426, 256, %s4428, [#allocation4], 128, 128, 8
    $region37: #{tpu_custom_call.1} parent=1 // pred_fallthru
      _
    // Predicated region
    $region38: #{tpu_custom_call.1} parent=1 // pred_check
      _
    $region39: #{tpu_custom_call.1} parent=1 // pred_check_branch
      %4435 = sbr.rel (0) target = $region41
    $region40: #{tpu_custom_call.1} parent=1 // pred_region
      %4437 = dma.done [#allocation4], 256
    $region41: #{tpu_custom_call.1} parent=1 // pred_fallthru
      _
    %4438 = vsyncpa [#allocation3], 1
    %4439 = vsyncpa [#allocation6], 1
    %4440 = vsyncpa [#allocation4], 1

</llo_original>
